<compile_context>
chip_gen: v7x
topology: tpu7x:2x2x1
jax: 0.10.0
libtpu: 0.0.40
codegen_flags: <defaults>
</compile_context>

<pallas_src>
import jax
import jax.numpy as jnp
from jax import lax
from jax.experimental import pallas as pl
from jax.experimental.pallas import tpu as pltpu


# ------------------------------ fused kernel ---------------------------------

def _make_nmf_kernel(steps, inv_t, eps=1e-6):
    """One grid step == one (batch * S) element; full NMF inference inside."""

    def kernel(x_ref, bases_ref, out_ref):
        x = x_ref[0]          # (D, N) f32
        bases = bases_ref[0]  # (D, R) f32

        def xT_dot(m):        # x^T @ m  -> (N, R), no materialized transpose
            return lax.dot_general(x, m, (((0,), (0,)), ((), ())),
                                   preferred_element_type=jnp.float32)

        def gram(m):          # m^T @ m  -> (R, R)
            return lax.dot_general(m, m, (((0,), (0,)), ((), ())),
                                   preferred_element_type=jnp.float32)

        # local_inference: coef = softmax(inv_t * x^T @ bases, axis=-1)
        s = inv_t * xT_dot(bases)                               # (N, R)
        s = s - jnp.max(s, axis=-1, keepdims=True)
        p = jnp.exp(s)
        coef = p / jnp.sum(p, axis=-1, keepdims=True)           # exact (R is tiny)

        # local_step (NMF2D multiplicative updates), unrolled: steps is small/static
        for _ in range(steps):
            num_c = xT_dot(bases)                                       # (N, R)
            den_c = jnp.dot(coef, gram(bases),
                            preferred_element_type=jnp.float32)         # (N, R)
            coef = coef * num_c / (den_c + eps)
            num_b = jnp.dot(x, coef, preferred_element_type=jnp.float32)  # (D, R)
            den_b = jnp.dot(bases, gram(coef),
                            preferred_element_type=jnp.float32)           # (D, R)
            bases = bases * num_b / (den_b + eps)

        # compute_coef (NMF2D)
        num_c = xT_dot(bases)
        den_c = jnp.dot(coef, gram(bases), preferred_element_type=jnp.float32)
        coef = coef * num_c / (den_c + eps)

        # reconstruction: bases @ coef^T -> (D, N)
        recon = lax.dot_general(bases, coef, (((1,), (1,)), ((), ())),
                                preferred_element_type=jnp.float32)
        out_ref[0] = recon.astype(out_ref.dtype)

    return kernel


# ------------------------------ forward wrapper -------------------------------

def matrix_decomposition_2d(x, bases_init, *, S=1, inv_t=100.0, steps=2,
                            spatial=True):
    """Pallas forward of _MatrixDecomposition2DBase (NMF2D), eval mode."""
    B, C, H, W = x.shape
    if spatial:
        D = C // S
        N = H * W
        xk = x.reshape(B * S, D, N)
    else:
        # non-spatial branch: pure layout reshuffle outside the kernel
        D = H * W
        N = C // S
        xk = x.reshape(B * S, N, D).transpose(0, 2, 1)

    BS, _, R = bases_init.shape
    assert BS == B * S and bases_init.shape[1] == D

    out = pl.pallas_call(
        _make_nmf_kernel(steps, float(inv_t)),
        out_shape=jax.ShapeDtypeStruct((BS, D, N), jnp.float32),
        grid_spec=pltpu.PrefetchScalarGridSpec(
            num_scalar_prefetch=0,
            grid=(BS,),                        # one step per batch*S element
            in_specs=[
                pl.BlockSpec((1, D, N), lambda b: (b, 0, 0)),   # x slab
                pl.BlockSpec((1, D, R), lambda b: (b, 0, 0)),   # init bases
            ],
            out_specs=pl.BlockSpec((1, D, N), lambda b: (b, 0, 0)),
        ),
        compiler_params=pltpu.CompilerParams(
            dimension_semantics=("parallel",),   # v7x: 2 TCs split the batch axis
        ),
    )(xk.astype(jnp.float32), bases_init.astype(jnp.float32))

    if spatial:
        return out.reshape(B, C, H, W)
    return out.transpose(0, 2, 1).reshape(B, C, H, W)


def build_bases(key, B, S, D, R):
    """_build_bases (NMF2D): uniform bases, L2-normalized along D (torch dim=1)."""
    bases = jax.random.uniform(key, (B * S, D, R), jnp.float32)
    norm = jnp.sqrt(jnp.sum(bases * bases, axis=1, keepdims=True))
    return bases / jnp.maximum(norm, 1e-12)


# --------------------------- pure-JAX reference -------------------------------

def reference_forward(x, bases_init, *, S=1, inv_t=100.0, steps=2, eps=1e-6):
    B, C, H, W = x.shape
    D, N = C // S, H * W
    xr = x.reshape(B * S, D, N)
    bases = bases_init
    hp = lax.Precision.HIGHEST

    coef = jnp.einsum('bdn,bdr->bnr', xr, bases, precision=hp)
    coef = jax.nn.softmax(inv_t * coef, axis=-1)
    for _ in range(steps):
        num = jnp.einsum('bdn,bdr->bnr', xr, bases, precision=hp)
        den = jnp.einsum('bnr,brk->bnk', coef,
                         jnp.einsum('bdr,bdk->brk', bases, bases, precision=hp),
                         precision=hp)
        coef = coef * num / (den + eps)
        num = jnp.einsum('bdn,bnr->bdr', xr, coef, precision=hp)
        den = jnp.einsum('bdr,brk->bdk', bases,
                         jnp.einsum('bnr,bnk->brk', coef, coef, precision=hp),
                         precision=hp)
        bases = bases * num / (den + eps)
    num = jnp.einsum('bdn,bdr->bnr', xr, bases, precision=hp)
    den = jnp.einsum('bnr,brk->bnk', coef,
                     jnp.einsum('bdr,bdk->brk', bases, bases, precision=hp),
                     precision=hp)
    coef = coef * num / (den + eps)
    recon = jnp.einsum('bdr,bnr->bdn', bases, coef, precision=hp)
    return recon.reshape(B, C, H, W)


# ---------------------------------- main --------------------------------------

if __name__ == "__main__":
    # Small shapes consistent with the module's forward: x is (B, C, H, W).
    B, C, H, W = 2, 32, 16, 16
    S, R = 1, 16            # MD_S, MD_R (scaled down for the small example)
    inv_t, eval_steps = 100.0, 2
    D = C // S

    key = jax.random.PRNGKey(0)
    kx, kb = jax.random.split(key)
    # Non-negative features (this head sits after a ReLU in its parent network),
    # which keeps the NMF multiplicative updates well-conditioned.
    x = jax.nn.relu(jax.random.normal(kx, (B, C, H, W), jnp.float32))
    bases0 = build_bases(kb, B, S, D, R)

    fwd = jax.jit(lambda xx, bb: matrix_decomposition_2d(
        xx, bb, S=S, inv_t=inv_t, steps=eval_steps, spatial=True))
    out = jax.block_until_ready(fwd(x, bases0))

    ref = reference_forward(x, bases0, S=S, inv_t=inv_t, steps=eval_steps)
    assert out.shape == (B, C, H, W)
    err = float(jnp.max(jnp.abs(out - ref)))
    scale = float(jnp.max(jnp.abs(ref))) + 1.0
    assert err < 2e-2 * scale, f"max abs err {err} (scale {scale})"

    print("KERNEL_OK")
</pallas_src>

<mosaic_0001>
module attributes {stable_mosaic.version = 11 : i64} {
  func.func @kernel(%arg0: i32, %arg1: memref<1x32x256xf32, #tpu.memory_space<vmem>>, %arg2: memref<1x32x16xf32, #tpu.memory_space<vmem>>, %arg3: memref<1x32x256xf32, #tpu.memory_space<vmem>>) attributes {dimension_semantics = [#tpu.dimension_semantics<parallel>], iteration_bounds = array<i64: 2>, scalar_prefetch = 0 : i64, scratch_operands = 0 : i64, tpu.core_type = #tpu.core_type<tc>, window_params = [{transform_indices = @transform_0, window_bounds = array<i64: 1, 32, 256>}, {transform_indices = @transform_1, window_bounds = array<i64: 1, 32, 16>}, {transform_indices = @transform_2, window_bounds = array<i64: 1, 32, 256>}]} {
    %c0 = arith.constant 0 : index
    %c0_0 = arith.constant 0 : index
    %c0_1 = arith.constant 0 : index
    %0 = vector.load %arg1[%c0, %c0_0, %c0_1] : memref<1x32x256xf32, #tpu.memory_space<vmem>>, vector<1x32x256xf32>
    %1 = vector.shape_cast %0 : vector<1x32x256xf32> to vector<32x256xf32>
    %c0_2 = arith.constant 0 : index
    %c0_3 = arith.constant 0 : index
    %c0_4 = arith.constant 0 : index
    %2 = vector.load %arg2[%c0_2, %c0_3, %c0_4] : memref<1x32x16xf32, #tpu.memory_space<vmem>>, vector<1x32x16xf32>
    %3 = vector.shape_cast %2 : vector<1x32x16xf32> to vector<32x16xf32>
    %cst = arith.constant dense<0.000000e+00> : vector<256x16xf32>
    %4 = tpu.matmul %1, %3, %cst {dimension_numbers = #tpu.dot_dimension_numbers<[0], [0], [1], [1], [0, 1, 1, 1], [], []>} : vector<32x256xf32>, vector<32x16xf32>, vector<256x16xf32> -> vector<256x16xf32>
    %cst_5 = arith.constant 1.000000e+02 : f32
    %5 = vector.broadcast %cst_5 : f32 to vector<256x16xf32>
    %6 = arith.mulf %5, %4 : vector<256x16xf32>
    %cst_6 = arith.constant dense<0xFF800000> : vector<256xf32>
    %7 = vector.multi_reduction <maximumf>, %6, %cst_6 [1] : vector<256x16xf32> to vector<256xf32>
    %8 = vector.shape_cast %7 : vector<256xf32> to vector<256x1xf32>
    %9 = vector.broadcast %8 : vector<256x1xf32> to vector<256x16xf32>
    %10 = arith.subf %6, %9 : vector<256x16xf32>
    %11 = math.exp %10 : vector<256x16xf32>
    %cst_7 = arith.constant dense<0.000000e+00> : vector<256xf32>
    %12 = vector.multi_reduction <add>, %11, %cst_7 [1] : vector<256x16xf32> to vector<256xf32>
    %13 = vector.shape_cast %12 : vector<256xf32> to vector<256x1xf32>
    %14 = vector.broadcast %13 : vector<256x1xf32> to vector<256x16xf32>
    %15 = arith.divf %11, %14 : vector<256x16xf32>
    %cst_8 = arith.constant dense<0.000000e+00> : vector<256x16xf32>
    %16 = tpu.matmul %1, %3, %cst_8 {dimension_numbers = #tpu.dot_dimension_numbers<[0], [0], [1], [1], [0, 1, 1, 1], [], []>} : vector<32x256xf32>, vector<32x16xf32>, vector<256x16xf32> -> vector<256x16xf32>
    %cst_9 = arith.constant dense<0.000000e+00> : vector<16x16xf32>
    %17 = tpu.matmul %3, %3, %cst_9 {dimension_numbers = #tpu.dot_dimension_numbers<[0], [0], [1], [1], [0, 1, 1, 1], [], []>} : vector<32x16xf32>, vector<32x16xf32>, vector<16x16xf32> -> vector<16x16xf32>
    %cst_10 = arith.constant dense<0.000000e+00> : vector<256x16xf32>
    %18 = tpu.matmul %15, %17, %cst_10 {dimension_numbers = #tpu.dot_dimension_numbers<[1], [0], [0], [1], [0, 0, 1, 1], [], []>} : vector<256x16xf32>, vector<16x16xf32>, vector<256x16xf32> -> vector<256x16xf32>
    %19 = arith.mulf %15, %16 : vector<256x16xf32>
    %cst_11 = arith.constant 9.99999997E-7 : f32
    %20 = vector.broadcast %cst_11 : f32 to vector<256x16xf32>
    %21 = arith.addf %18, %20 : vector<256x16xf32>
    %22 = arith.divf %19, %21 : vector<256x16xf32>
    %cst_12 = arith.constant dense<0.000000e+00> : vector<32x16xf32>
    %23 = tpu.matmul %1, %22, %cst_12 {dimension_numbers = #tpu.dot_dimension_numbers<[1], [0], [0], [1], [0, 0, 1, 1], [], []>} : vector<32x256xf32>, vector<256x16xf32>, vector<32x16xf32> -> vector<32x16xf32>
    %cst_13 = arith.constant dense<0.000000e+00> : vector<16x16xf32>
    %24 = tpu.matmul %22, %22, %cst_13 {dimension_numbers = #tpu.dot_dimension_numbers<[0], [0], [1], [1], [0, 1, 1, 1], [], []>} : vector<256x16xf32>, vector<256x16xf32>, vector<16x16xf32> -> vector<16x16xf32>
    %cst_14 = arith.constant dense<0.000000e+00> : vector<32x16xf32>
    %25 = tpu.matmul %3, %24, %cst_14 {dimension_numbers = #tpu.dot_dimension_numbers<[1], [0], [0], [1], [0, 0, 1, 1], [], []>} : vector<32x16xf32>, vector<16x16xf32>, vector<32x16xf32> -> vector<32x16xf32>
    %26 = arith.mulf %3, %23 : vector<32x16xf32>
    %cst_15 = arith.constant 9.99999997E-7 : f32
    %27 = vector.broadcast %cst_15 : f32 to vector<32x16xf32>
    %28 = arith.addf %25, %27 : vector<32x16xf32>
    %29 = arith.divf %26, %28 : vector<32x16xf32>
    %cst_16 = arith.constant dense<0.000000e+00> : vector<256x16xf32>
    %30 = tpu.matmul %1, %29, %cst_16 {dimension_numbers = #tpu.dot_dimension_numbers<[0], [0], [1], [1], [0, 1, 1, 1], [], []>} : vector<32x256xf32>, vector<32x16xf32>, vector<256x16xf32> -> vector<256x16xf32>
    %cst_17 = arith.constant dense<0.000000e+00> : vector<16x16xf32>
    %31 = tpu.matmul %29, %29, %cst_17 {dimension_numbers = #tpu.dot_dimension_numbers<[0], [0], [1], [1], [0, 1, 1, 1], [], []>} : vector<32x16xf32>, vector<32x16xf32>, vector<16x16xf32> -> vector<16x16xf32>
    %cst_18 = arith.constant dense<0.000000e+00> : vector<256x16xf32>
    %32 = tpu.matmul %22, %31, %cst_18 {dimension_numbers = #tpu.dot_dimension_numbers<[1], [0], [0], [1], [0, 0, 1, 1], [], []>} : vector<256x16xf32>, vector<16x16xf32>, vector<256x16xf32> -> vector<256x16xf32>
    %33 = arith.mulf %22, %30 : vector<256x16xf32>
    %cst_19 = arith.constant 9.99999997E-7 : f32
    %34 = vector.broadcast %cst_19 : f32 to vector<256x16xf32>
    %35 = arith.addf %32, %34 : vector<256x16xf32>
    %36 = arith.divf %33, %35 : vector<256x16xf32>
    %cst_20 = arith.constant dense<0.000000e+00> : vector<32x16xf32>
    %37 = tpu.matmul %1, %36, %cst_20 {dimension_numbers = #tpu.dot_dimension_numbers<[1], [0], [0], [1], [0, 0, 1, 1], [], []>} : vector<32x256xf32>, vector<256x16xf32>, vector<32x16xf32> -> vector<32x16xf32>
    %cst_21 = arith.constant dense<0.000000e+00> : vector<16x16xf32>
    %38 = tpu.matmul %36, %36, %cst_21 {dimension_numbers = #tpu.dot_dimension_numbers<[0], [0], [1], [1], [0, 1, 1, 1], [], []>} : vector<256x16xf32>, vector<256x16xf32>, vector<16x16xf32> -> vector<16x16xf32>
    %cst_22 = arith.constant dense<0.000000e+00> : vector<32x16xf32>
    %39 = tpu.matmul %29, %38, %cst_22 {dimension_numbers = #tpu.dot_dimension_numbers<[1], [0], [0], [1], [0, 0, 1, 1], [], []>} : vector<32x16xf32>, vector<16x16xf32>, vector<32x16xf32> -> vector<32x16xf32>
    %40 = arith.mulf %29, %37 : vector<32x16xf32>
    %cst_23 = arith.constant 9.99999997E-7 : f32
    %41 = vector.broadcast %cst_23 : f32 to vector<32x16xf32>
    %42 = arith.addf %39, %41 : vector<32x16xf32>
    %43 = arith.divf %40, %42 : vector<32x16xf32>
    %cst_24 = arith.constant dense<0.000000e+00> : vector<256x16xf32>
    %44 = tpu.matmul %1, %43, %cst_24 {dimension_numbers = #tpu.dot_dimension_numbers<[0], [0], [1], [1], [0, 1, 1, 1], [], []>} : vector<32x256xf32>, vector<32x16xf32>, vector<256x16xf32> -> vector<256x16xf32>
    %cst_25 = arith.constant dense<0.000000e+00> : vector<16x16xf32>
    %45 = tpu.matmul %43, %43, %cst_25 {dimension_numbers = #tpu.dot_dimension_numbers<[0], [0], [1], [1], [0, 1, 1, 1], [], []>} : vector<32x16xf32>, vector<32x16xf32>, vector<16x16xf32> -> vector<16x16xf32>
    %cst_26 = arith.constant dense<0.000000e+00> : vector<256x16xf32>
    %46 = tpu.matmul %36, %45, %cst_26 {dimension_numbers = #tpu.dot_dimension_numbers<[1], [0], [0], [1], [0, 0, 1, 1], [], []>} : vector<256x16xf32>, vector<16x16xf32>, vector<256x16xf32> -> vector<256x16xf32>
    %47 = arith.mulf %36, %44 : vector<256x16xf32>
    %cst_27 = arith.constant 9.99999997E-7 : f32
    %48 = vector.broadcast %cst_27 : f32 to vector<256x16xf32>
    %49 = arith.addf %46, %48 : vector<256x16xf32>
    %50 = arith.divf %47, %49 : vector<256x16xf32>
    %cst_28 = arith.constant dense<0.000000e+00> : vector<32x256xf32>
    %51 = tpu.matmul %43, %50, %cst_28 {dimension_numbers = #tpu.dot_dimension_numbers<[1], [1], [0], [0], [0, 0, 1, 0], [], []>} : vector<32x16xf32>, vector<256x16xf32>, vector<32x256xf32> -> vector<32x256xf32>
    %c0_29 = arith.constant 0 : index
    %c0_30 = arith.constant 0 : index
    %c0_31 = arith.constant 0 : index
    %52 = vector.load %arg3[%c0_29, %c0_30, %c0_31] : memref<1x32x256xf32, #tpu.memory_space<vmem>>, vector<1x32x256xf32>
    %53 = vector.shape_cast %52 : vector<1x32x256xf32> to vector<32x256xf32>
    %54 = vector.shape_cast %51 : vector<32x256xf32> to vector<1x32x256xf32>
    tpu.vector_store %arg3[%c0_29, %c0_30, %c0_31], %54 {strides = array<i32>} : memref<1x32x256xf32, #tpu.memory_space<vmem>>, vector<1x32x256xf32>,
    return
  }
  func.func @transform_0(%arg0: i32) -> (i32, i32, i32) {
    %c0_i32 = arith.constant 0 : i32
    %c0_i32_0 = arith.constant 0 : i32
    %c0_i32_1 = arith.constant 0 : i32
    return %arg0, %c0_i32, %c0_i32_0 : i32, i32, i32
  }
  func.func @transform_1(%arg0: i32) -> (i32, i32, i32) {
    %c0_i32 = arith.constant 0 : i32
    %c0_i32_0 = arith.constant 0 : i32
    %c0_i32_1 = arith.constant 0 : i32
    return %arg0, %c0_i32, %c0_i32_0 : i32, i32, i32
  }
  func.func @transform_2(%arg0: i32) -> (i32, i32, i32) {
    %c0_i32 = arith.constant 0 : i32
    %c0_i32_0 = arith.constant 0 : i32
    %c0_i32_1 = arith.constant 0 : i32
    return %arg0, %c0_i32, %c0_i32_0 : i32, i32, i32
  }
}

</mosaic_0001>

<llo_original>
// kernel: _lambda_.1
$region0: #{_lambda_.1}
  #allocation0 [shape = 'u32[]', space=smem, size = 0x4, offset = 0x4, fixed_abs, tag = 'smem constant byte address 0x4 - core index']
  #allocation1 [shape = 'u32[144,128]{1,0:T(1,128)}', space=vmem, size = 0x12000, scoped, tag = 'internal scratch']
  %s0 = inlined_call_operand.vmem [shape: f32[2,32,256], index: 0, kind: input, shape index: {}]
  %s1 = inlined_call_operand.vmem [shape: f32[2,32,16], index: 1, kind: input, shape index: {}]
  %s2 = inlined_call_operand.vmem [shape: f32[2,32,256], index: 2, kind: output, shape index: {}]
  %s3 = sld [smem:[#allocation0]]
  $region41: #{_lambda_.1} parent=0
    _
  %s5 = ssub.s32 1, %s3
  %s6 = scalar_select 0, %s5, %s3
  loop: start=0, step=1, limit=4
  $region2: #{_lambda_.1} parent=0 // loop_pre_header
    _
  $region3: #{_lambda_.1} parent=0 // loop_header
    %s8 = sphi 0, %s12
    %p9 = scmp.ge.s32.totalorder %s8, 4
    %s18 = sphi 0, %s20
    %s21 = sphi 0, %s18
    %s22 = sphi 0, %s21
    %s38 = sphi 0, %s22
    %s44 = sphi 0, %s46
    %s47 = sphi 0, %s44
    %s48 = sphi 0, %s47
    %s64 = sphi 0, %s48
    %s70 = sphi 0, %s72
    %s73 = sphi 0, %s70
    %s74 = sphi 0, %s73
    %s90 = sphi 0, %s74
  $region4: #{_lambda_.1} parent=0 // loop_header_branch
    %11 = sbr.rel (%p9) target = $region8
  $region5: #{_lambda_.1} parent=0 // loop_body
    %s13 = ssub.s32 %s8, 1
    %s14 = ssub.s32 %s8, 2
    %s15 = sadd.s32 %s8, 1
    %s16 = ssub.s32 %s8, %s15
    %p17 = scmp.eq.s32.totalorder %s16, 0
    %s19 = sadd.s32 %s18, 1
    %s20 = scalar_select %p17, %s18, %s19
    %p23 = pneg %p17
    %p24 = scmp.eq.s32.totalorder %s8, 1
    %p25 = por %p23, %p24
    %p26 = scmp.ne.s32.totalorder %s18, %s21
    %p27 = scmp.eq.s32.totalorder %s8, 0
    %p28 = por %p26, %p27
    %p29 = scmp.ne.s32.totalorder %s18, %s21
    %p30 = scmp.eq.s32.totalorder %s13, 1
    %p31 = por %p29, %p30
    %p32 = scmp.ne.s32.totalorder %s21, %s22
    %p33 = scmp.eq.s32.totalorder %s13, 0
    %p34 = por %p32, %p33
    %p35 = scmp.ne.s32.totalorder %s21, %s22
    %p36 = scmp.eq.s32.totalorder %s14, 1
    %p37 = por %p35, %p36
    %p39 = scmp.ne.s32.totalorder %s22, %s38
    %p40 = scmp.eq.s32.totalorder %s14, 0
    %p41 = por %p39, %p40
    %s42 = ssub.s32 %s8, %s15
    %p43 = scmp.eq.s32.totalorder %s42, 0
    %s45 = sadd.s32 %s44, 1
    %s46 = scalar_select %p43, %s44, %s45
    %p49 = pneg %p43
    %p50 = scmp.eq.s32.totalorder %s8, 1
    %p51 = por %p49, %p50
    %p52 = scmp.ne.s32.totalorder %s44, %s47
    %p53 = scmp.eq.s32.totalorder %s8, 0
    %p54 = por %p52, %p53
    %p55 = scmp.ne.s32.totalorder %s44, %s47
    %p56 = scmp.eq.s32.totalorder %s13, 1
    %p57 = por %p55, %p56
    %p58 = scmp.ne.s32.totalorder %s47, %s48
    %p59 = scmp.eq.s32.totalorder %s13, 0
    %p60 = por %p58, %p59
    %p61 = scmp.ne.s32.totalorder %s47, %s48
    %p62 = scmp.eq.s32.totalorder %s14, 1
    %p63 = por %p61, %p62
    %p65 = scmp.ne.s32.totalorder %s48, %s64
    %p66 = scmp.eq.s32.totalorder %s14, 0
    %p67 = por %p65, %p66
    %s68 = ssub.s32 %s8, %s15
    %p69 = scmp.eq.s32.totalorder %s68, 0
    %s71 = sadd.s32 %s70, 1
    %s72 = scalar_select %p69, %s70, %s71
    %p75 = pneg %p69
    %p76 = scmp.eq.s32.totalorder %s8, 1
    %p77 = por %p75, %p76
    %p78 = scmp.ne.s32.totalorder %s70, %s73
    %p79 = scmp.eq.s32.totalorder %s8, 0
    %p80 = por %p78, %p79
    %p81 = scmp.ne.s32.totalorder %s70, %s73
    %p82 = scmp.eq.s32.totalorder %s13, 1
    %p83 = por %p81, %p82
    %p84 = scmp.ne.s32.totalorder %s73, %s74
    %p85 = scmp.eq.s32.totalorder %s13, 0
    %p86 = por %p84, %p85
    %p87 = scmp.ne.s32.totalorder %s73, %s74
    %p88 = scmp.eq.s32.totalorder %s14, 1
    %p89 = por %p87, %p88
    %p91 = scmp.ne.s32.totalorder %s74, %s90
    %p92 = scmp.eq.s32.totalorder %s14, 0
    %p93 = por %p91, %p92
    %p94 = scmp.le.s32.totalorder 1, %s8
    %p95 = scmp.lt.s32.totalorder %s8, 3
    %p96 = pnand %p94, %p95
    %p97 = pneg %p96
    // Predicated region
    $region9: #{_lambda_.1} parent=5 // pred_check
      _
    $region10: #{_lambda_.1} parent=5 // pred_check_branch
      %99 = sbr.rel (%p96) target = $region12
    $region11: #{_lambda_.1} parent=5 // pred_region
      %s100 = ssub.s32 %s8, 1
    $region12: #{_lambda_.1} parent=5 // pred_fallthru
      _
    %p101 = scmp.lt.s32.totalorder %s8, 2
    // Predicated region
    $region13: #{_lambda_.1} parent=5 // pred_check
      %p102 = pneg %p101
    $region14: #{_lambda_.1} parent=5 // pred_check_branch
      %104 = sbr.rel (%p102) target = $region16
    $region15: #{_lambda_.1} parent=5 // pred_region
      // Predicated region
      $region17: #{_lambda_.1} parent=15 // pred_check
        %p105 = pneg %p28
      $region18: #{_lambda_.1} parent=15 // pred_check_branch
        %107 = sbr.rel (%p105) target = $region20
      $region19: #{_lambda_.1} parent=15 // pred_region
        %p108 = scmp.lt.s32.totalorder %s8, 1
        %s109 = scalar_select %p108, %s8, 1
        %s110 = smul.addr %s109, 8
        %s111 = smul.addr %s110, 8
        %s112 = scalar_lea.vmem %s0, %s111
      $region20: #{_lambda_.1} parent=15 // pred_fallthru
        _
      // Predicated region
      $region21: #{_lambda_.1} parent=15 // pred_check
        %p113 = pneg %p54
      $region22: #{_lambda_.1} parent=15 // pred_check_branch
        %115 = sbr.rel (%p113) target = $region24
      $region23: #{_lambda_.1} parent=15 // pred_region
        %p116 = scmp.lt.s32.totalorder %s8, 1
        %s117 = scalar_select %p116, %s8, 1
        %s118 = smul.addr %s117, 4
        %s119 = smul.addr %s118, 8
        %s120 = scalar_lea.vmem %s1, %s119
      $region24: #{_lambda_.1} parent=15 // pred_fallthru
        _
    $region16: #{_lambda_.1} parent=5 // pred_fallthru
      _
    %p121 = scmp.le.s32.totalorder 1, %s8
    %p122 = scmp.lt.s32.totalorder %s8, 3
    %p123 = pnand %p121, %p122
    %p124 = pneg %p123
    // Predicated region
    $region25: #{_lambda_.1} parent=5 // pred_check
      _
    $region26: #{_lambda_.1} parent=5 // pred_check_branch
      %126 = sbr.rel (%p123) target = $region28
    $region27: #{_lambda_.1} parent=5 // pred_region
      %s127 = ssub.s32 %s8, 1
      %p128 = scmp.lt.s32.totalorder %s13, 1
      %s129 = scalar_select %p128, %s13, 1
      %s130 = smul.addr %s129, 8
      %s131 = smul.addr %s130, 8
      %s132 = scalar_lea.vmem %s0, %s131
      %p133 = pneg %p34
      %p134 = pneg %p31
      %p135 = scmp.lt.s32.totalorder %s13, 1
      %s136 = scalar_select %p135, %s13, 1
      %s137 = smul.addr %s136, 4
      %s138 = smul.addr %s137, 8
      %s139 = scalar_lea.vmem %s1, %s138
      %p140 = pneg %p60
      %p141 = pneg %p57
      %p142 = pneg %p86
      %p143 = pneg %p83
      %p144 = scmp.lt.s32.totalorder %s13, 1
      %s145 = scalar_select %p144, %s13, 1
      %s146 = smul.addr %s145, 8
      %s147 = smul.addr %s146, 8
      %s148 = scalar_lea.vmem %s2, %s147
      %p149 = scmp.lt.s32.totalorder %s13, 1
      %s150 = scalar_select %p149, %s13, 1
      %s151 = smul.addr %s150, 8
      %s152 = smul.addr %s151, 8
      %s153 = scalar_lea.vmem %s0, %s152
      %p154 = scmp.lt.s32.totalorder %s13, 1
      %s155 = scalar_select %p154, %s13, 1
      %s156 = smul.addr %s155, 4
      %s157 = smul.addr %s156, 8
      %s158 = scalar_lea.vmem %s1, %s157
      %p159 = scmp.lt.s32.totalorder %s13, 1
      %s160 = scalar_select %p159, %s13, 1
      %s161 = smul.addr %s160, 8
      %s162 = smul.addr %s161, 8
      %s163 = scalar_lea.vmem %s2, %s162
      %v164 = vld [vmem:[%s153] sm:$0xff]
      %v165 = vld [vmem:[%s153 + $0x8] sm:$0xff]
      %v166 = vld [vmem:[%s153 + $0x10] sm:$0xff]
      %v167 = vld [vmem:[%s153 + $0x18] sm:$0xff]
      %v168 = vld [vmem:[%s153 + $0x20] sm:$0xff]
      %v169 = vld [vmem:[%s153 + $0x28] sm:$0xff]
      %v170 = vld [vmem:[%s153 + $0x30] sm:$0xff]
      %v171 = vld [vmem:[%s153 + $0x38] sm:$0xff]
      %v172 = vld [vmem:[%s158] sm:$0xff]
      %v173 = vld [vmem:[%s158 + $0x8] sm:$0xff]
      %v174 = vld [vmem:[%s158 + $0x10] sm:$0xff]
      %v175 = vld [vmem:[%s158 + $0x18] sm:$0xff]
      %176 = vxpose.xlu0.b32.start [1/16] %v164, 128
      %177 = vxpose.xlu0.b32.cont [2/16] %v166, 128
      %178 = vxpose.xlu0.b32.cont [3/16] %v168, 128
      %179 = vxpose.xlu0.b32.cont [4/16] %v170, 128
      %180 = vxpose.xlu0.b32.cont [5/16] 0.0, 128
      %181 = vxpose.xlu0.b32.cont [6/16] 0.0, 128
      %182 = vxpose.xlu0.b32.cont [7/16] 0.0, 128
      %183 = vxpose.xlu0.b32.cont [8/16] 0.0, 128
      %184 = vxpose.xlu0.b32.cont [9/16] 0.0, 128
      %185 = vxpose.xlu0.b32.cont [10/16] 0.0, 128
      %186 = vxpose.xlu0.b32.cont [11/16] 0.0, 128
      %187 = vxpose.xlu0.b32.cont [12/16] 0.0, 128
      %188 = vxpose.xlu0.b32.cont [13/16] 0.0, 128
      %189 = vxpose.xlu0.b32.cont [14/16] 0.0, 128
      %190 = vxpose.xlu0.b32.cont [15/16] 0.0, 128
      %191 = vxpose.xlu0.b32.end [16/16] 0.0, 128
      %v192 = vpop.trf.xlu0
      %v193 = vpop.trf.xlu0
      %v194 = vpop.trf.xlu0
      %v195 = vpop.trf.xlu0
      %v196 = vpop.trf.xlu0
      %v197 = vpop.trf.xlu0
      %v198 = vpop.trf.xlu0
      %v199 = vpop.trf.xlu0
      %v200 = vpop.trf.xlu0
      %v201 = vpop.trf.xlu0
      %v202 = vpop.trf.xlu0
      %v203 = vpop.trf.xlu0
      %v204 = vpop.trf.xlu0
      %v205 = vpop.trf.xlu0
      %v206 = vpop.trf.xlu0
      %v207 = vpop.trf.xlu0
      %208 = vxpose.xlu0.b32.start [1/16] %v165, 128
      %209 = vxpose.xlu0.b32.cont [2/16] %v167, 128
      %210 = vxpose.xlu0.b32.cont [3/16] %v169, 128
      %211 = vxpose.xlu0.b32.cont [4/16] %v171, 128
      %212 = vxpose.xlu0.b32.cont [5/16] 0.0, 128
      %213 = vxpose.xlu0.b32.cont [6/16] 0.0, 128
      %214 = vxpose.xlu0.b32.cont [7/16] 0.0, 128
      %215 = vxpose.xlu0.b32.cont [8/16] 0.0, 128
      %216 = vxpose.xlu0.b32.cont [9/16] 0.0, 128
      %217 = vxpose.xlu0.b32.cont [10/16] 0.0, 128
      %218 = vxpose.xlu0.b32.cont [11/16] 0.0, 128
      %219 = vxpose.xlu0.b32.cont [12/16] 0.0, 128
      %220 = vxpose.xlu0.b32.cont [13/16] 0.0, 128
      %221 = vxpose.xlu0.b32.cont [14/16] 0.0, 128
      %222 = vxpose.xlu0.b32.cont [15/16] 0.0, 128
      %223 = vxpose.xlu0.b32.end [16/16] 0.0, 128
      %v224 = vpop.trf.xlu0
      %v225 = vpop.trf.xlu0
      %v226 = vpop.trf.xlu0
      %v227 = vpop.trf.xlu0
      %v228 = vpop.trf.xlu0
      %v229 = vpop.trf.xlu0
      %v230 = vpop.trf.xlu0
      %v231 = vpop.trf.xlu0
      %v232 = vpop.trf.xlu0
      %v233 = vpop.trf.xlu0
      %v234 = vpop.trf.xlu0
      %v235 = vpop.trf.xlu0
      %v236 = vpop.trf.xlu0
      %v237 = vpop.trf.xlu0
      %v238 = vpop.trf.xlu0
      %v239 = vpop.trf.xlu0
      %vm240 = vcmask 261120
      %v242 = vsel %vm240, %v192, 0
      %v245 = vsel %vm240, %v193, 0
      %v248 = vsel %vm240, %v194, 0
      %v251 = vsel %vm240, %v195, 0
      %v254 = vsel %vm240, %v196, 0
      %v257 = vsel %vm240, %v197, 0
      %v260 = vsel %vm240, %v198, 0
      %v263 = vsel %vm240, %v199, 0
      %v266 = vsel %vm240, %v200, 0
      %v269 = vsel %vm240, %v201, 0
      %v272 = vsel %vm240, %v202, 0
      %v275 = vsel %vm240, %v203, 0
      %v278 = vsel %vm240, %v204, 0
      %v281 = vsel %vm240, %v205, 0
      %v284 = vsel %vm240, %v206, 0
      %v287 = vsel %vm240, %v207, 0
      %v290 = vsel %vm240, %v224, 0
      %v293 = vsel %vm240, %v225, 0
      %v296 = vsel %vm240, %v226, 0
      %v299 = vsel %vm240, %v227, 0
      %v302 = vsel %vm240, %v228, 0
      %v305 = vsel %vm240, %v229, 0
      %v308 = vsel %vm240, %v230, 0
      %v311 = vsel %vm240, %v231, 0
      %v314 = vsel %vm240, %v232, 0
      %v317 = vsel %vm240, %v233, 0
      %v320 = vsel %vm240, %v234, 0
      %v323 = vsel %vm240, %v235, 0
      %v326 = vsel %vm240, %v236, 0
      %v329 = vsel %vm240, %v237, 0
      %v332 = vsel %vm240, %v238, 0
      %v335 = vsel %vm240, %v239, 0
      %337 = vmatprep.subr.mxu0 0.0
      %338 = vmatpush1.msra.mxu0 %v172
      %339 = vmatprep.subr.mxu0 0.0
      %340 = vmatpush1.msra.mxu0 %v173
      %341 = vmatprep.subr.mxu0 0.0
      %342 = vmatpush1.msra.mxu0 %v174
      %343 = vmatprep.subr.mxu0 0.0
      %344 = vmatpush1.msra.mxu0 %v175
      %345 = vmatprep.subr.mxu0 0.0
      %346 = vmatpush1.msra.mxu0 0.0
      %347 = vmatprep.subr.mxu0 0.0
      %348 = vmatpush1.msra.mxu0 0.0
      %349 = vmatprep.subr.mxu0 0.0
      %350 = vmatpush1.msra.mxu0 0.0
      %351 = vmatprep.subr.mxu0 0.0
      %352 = vmatpush1.msra.mxu0 0.0
      %353 = vmatprep.subr.mxu0 0.0
      %354 = vmatpush1.msra.mxu0 0.0
      %355 = vmatprep.subr.mxu0 0.0
      %356 = vmatpush1.msra.mxu0 0.0
      %357 = vmatprep.subr.mxu0 0.0
      %358 = vmatpush1.msra.mxu0 0.0
      %359 = vmatprep.subr.mxu0 0.0
      %360 = vmatpush1.msra.mxu0 0.0
      %361 = vmatprep.subr.mxu0 0.0
      %362 = vmatpush1.msra.mxu0 0.0
      %363 = vmatprep.subr.mxu0 0.0
      %364 = vmatpush1.msra.mxu0 0.0
      %365 = vmatprep.subr.mxu0 0.0
      %366 = vmatpush1.msra.mxu0 0.0
      %367 = vmatprep.subr.mxu0 0.0
      %368 = vmatpush1.msra.mxu0 0.0
      %369 = vmatprep.subr.mxu0 0.0
      %370 = vmatpush1.msra.mxu0 0.0
      %371 = vmatprep.subr.mxu0 0.0
      %372 = vmatpush1.msra.mxu0 0.0
      %373 = vmatprep.subr.mxu0 0.0
      %374 = vmatpush1.msra.mxu0 0.0
      %375 = vmatprep.subr.mxu0 0.0
      %376 = vmatpush1.msra.mxu0 0.0
      %377 = vmatprep.subr.mxu0 0.0
      %378 = vmatpush1.msra.mxu0 0.0
      %379 = vmatprep.subr.mxu0 0.0
      %380 = vmatpush1.msra.mxu0 0.0
      %381 = vmatprep.subr.mxu0 0.0
      %382 = vmatpush1.msra.mxu0 0.0
      %383 = vmatprep.subr.mxu0 0.0
      %384 = vmatpush1.msra.mxu0 0.0
      %385 = vmatprep.subr.mxu0 0.0
      %386 = vmatpush1.msra.mxu0 0.0
      %387 = vmatprep.subr.mxu0 0.0
      %388 = vmatpush1.msra.mxu0 0.0
      %389 = vmatprep.subr.mxu0 0.0
      %390 = vmatpush1.msra.mxu0 0.0
      %391 = vmatprep.subr.mxu0 0.0
      %392 = vmatpush1.msra.mxu0 0.0
      %393 = vmatprep.subr.mxu0 0.0
      %394 = vmatpush1.msra.mxu0 0.0
      %395 = vmatprep.subr.mxu0 0.0
      %396 = vmatpush1.msra.mxu0 0.0
      %397 = vmatprep.subr.mxu0 0.0
      %398 = vmatpush1.msra.mxu0 0.0
      %399 = vmatprep.subr.mxu0 0.0
      %400 = vmatpush1.msra.mxu0 0.0
      %401 = vmatprep.mubr.f32.mxu0 0.0
      %402 = vmatmul.mubr.f32.gmra.mrb[0].mxu0 %v242
      %v403 = vpop.f32.mrb[0].mxu0
      %v404 = vadd.f32 0.0, %v403
      %v405 = vpop.f32.mrb[0].mxu0
      %406 = vmatprep.mubr.f32.mxu0 0.0
      %407 = vmatmul.mubr.f32.gmra.mrb[0].mxu0 %v245
      %v408 = vpop.f32.mrb[0].mxu0
      %v409 = vadd.f32 0.0, %v408
      %v410 = vpop.f32.mrb[0].mxu0
      %411 = vmatprep.mubr.f32.mxu0 0.0
      %412 = vmatmul.mubr.f32.gmra.mrb[0].mxu0 %v248
      %v413 = vpop.f32.mrb[0].mxu0
      %v414 = vadd.f32 0.0, %v413
      %v415 = vpop.f32.mrb[0].mxu0
      %416 = vmatprep.mubr.f32.mxu0 0.0
      %417 = vmatmul.mubr.f32.gmra.mrb[0].mxu0 %v251
      %v418 = vpop.f32.mrb[0].mxu0
      %v419 = vadd.f32 0.0, %v418
      %v420 = vpop.f32.mrb[0].mxu0
      %421 = vmatprep.mubr.f32.mxu0 0.0
      %422 = vmatmul.mubr.f32.gmra.mrb[0].mxu0 %v254
      %v423 = vpop.f32.mrb[0].mxu0
      %v424 = vadd.f32 0.0, %v423
      %v425 = vpop.f32.mrb[0].mxu0
      %426 = vmatprep.mubr.f32.mxu0 0.0
      %427 = vmatmul.mubr.f32.gmra.mrb[0].mxu0 %v257
      %v428 = vpop.f32.mrb[0].mxu0
      %v429 = vadd.f32 0.0, %v428
      %v430 = vpop.f32.mrb[0].mxu0
      %431 = vmatprep.mubr.f32.mxu0 0.0
      %432 = vmatmul.mubr.f32.gmra.mrb[0].mxu0 %v260
      %v433 = vpop.f32.mrb[0].mxu0
      %v434 = vadd.f32 0.0, %v433
      %v435 = vpop.f32.mrb[0].mxu0
      %436 = vmatprep.mubr.f32.mxu0 0.0
      %437 = vmatmul.mubr.f32.gmra.mrb[0].mxu0 %v263
      %v438 = vpop.f32.mrb[0].mxu0
      %v439 = vadd.f32 0.0, %v438
      %v440 = vpop.f32.mrb[0].mxu0
      %441 = vmatprep.mubr.f32.mxu0 0.0
      %442 = vmatmul.mubr.f32.gmra.mrb[0].mxu0 %v266
      %v443 = vpop.f32.mrb[0].mxu0
      %v444 = vadd.f32 0.0, %v443
      %v445 = vpop.f32.mrb[0].mxu0
      %446 = vmatprep.mubr.f32.mxu0 0.0
      %447 = vmatmul.mubr.f32.gmra.mrb[0].mxu0 %v269
      %v448 = vpop.f32.mrb[0].mxu0
      %v449 = vadd.f32 0.0, %v448
      %v450 = vpop.f32.mrb[0].mxu0
      %451 = vmatprep.mubr.f32.mxu0 0.0
      %452 = vmatmul.mubr.f32.gmra.mrb[0].mxu0 %v272
      %v453 = vpop.f32.mrb[0].mxu0
      %v454 = vadd.f32 0.0, %v453
      %v455 = vpop.f32.mrb[0].mxu0
      %456 = vmatprep.mubr.f32.mxu0 0.0
      %457 = vmatmul.mubr.f32.gmra.mrb[0].mxu0 %v275
      %v458 = vpop.f32.mrb[0].mxu0
      %v459 = vadd.f32 0.0, %v458
      %v460 = vpop.f32.mrb[0].mxu0
      %461 = vmatprep.mubr.f32.mxu0 0.0
      %462 = vmatmul.mubr.f32.gmra.mrb[0].mxu0 %v278
      %v463 = vpop.f32.mrb[0].mxu0
      %v464 = vadd.f32 0.0, %v463
      %v465 = vpop.f32.mrb[0].mxu0
      %466 = vmatprep.mubr.f32.mxu0 0.0
      %467 = vmatmul.mubr.f32.gmra.mrb[0].mxu0 %v281
      %v468 = vpop.f32.mrb[0].mxu0
      %v469 = vadd.f32 0.0, %v468
      %v470 = vpop.f32.mrb[0].mxu0
      %471 = vmatprep.mubr.f32.mxu0 0.0
      %472 = vmatmul.mubr.f32.gmra.mrb[0].mxu0 %v284
      %v473 = vpop.f32.mrb[0].mxu0
      %v474 = vadd.f32 0.0, %v473
      %v475 = vpop.f32.mrb[0].mxu0
      %476 = vmatprep.mubr.f32.mxu0 0.0
      %477 = vmatmul.mubr.f32.gmra.mrb[0].mxu0 %v287
      %v478 = vpop.f32.mrb[0].mxu0
      %v479 = vadd.f32 0.0, %v478
      %v480 = vpop.f32.mrb[0].mxu0
      %481 = vmatprep.mubr.f32.mxu0 0.0
      %482 = vmatmul.mubr.f32.gmra.mrb[0].mxu0 %v290
      %v483 = vpop.f32.mrb[0].mxu0
      %v484 = vadd.f32 0.0, %v483
      %v485 = vpop.f32.mrb[0].mxu0
      %486 = vmatprep.mubr.f32.mxu0 0.0
      %487 = vmatmul.mubr.f32.gmra.mrb[0].mxu0 %v293
      %v488 = vpop.f32.mrb[0].mxu0
      %v489 = vadd.f32 0.0, %v488
      %v490 = vpop.f32.mrb[0].mxu0
      %491 = vmatprep.mubr.f32.mxu0 0.0
      %492 = vmatmul.mubr.f32.gmra.mrb[0].mxu0 %v296
      %v493 = vpop.f32.mrb[0].mxu0
      %v494 = vadd.f32 0.0, %v493
      %v495 = vpop.f32.mrb[0].mxu0
      %496 = vmatprep.mubr.f32.mxu0 0.0
      %497 = vmatmul.mubr.f32.gmra.mrb[0].mxu0 %v299
      %v498 = vpop.f32.mrb[0].mxu0
      %v499 = vadd.f32 0.0, %v498
      %v500 = vpop.f32.mrb[0].mxu0
      %501 = vmatprep.mubr.f32.mxu0 0.0
      %502 = vmatmul.mubr.f32.gmra.mrb[0].mxu0 %v302
      %v503 = vpop.f32.mrb[0].mxu0
      %v504 = vadd.f32 0.0, %v503
      %v505 = vpop.f32.mrb[0].mxu0
      %506 = vmatprep.mubr.f32.mxu0 0.0
      %507 = vmatmul.mubr.f32.gmra.mrb[0].mxu0 %v305
      %v508 = vpop.f32.mrb[0].mxu0
      %v509 = vadd.f32 0.0, %v508
      %v510 = vpop.f32.mrb[0].mxu0
      %511 = vmatprep.mubr.f32.mxu0 0.0
      %512 = vmatmul.mubr.f32.gmra.mrb[0].mxu0 %v308
      %v513 = vpop.f32.mrb[0].mxu0
      %v514 = vadd.f32 0.0, %v513
      %v515 = vpop.f32.mrb[0].mxu0
      %516 = vmatprep.mubr.f32.mxu0 0.0
      %517 = vmatmul.mubr.f32.gmra.mrb[0].mxu0 %v311
      %v518 = vpop.f32.mrb[0].mxu0
      %v519 = vadd.f32 0.0, %v518
      %v520 = vpop.f32.mrb[0].mxu0
      %521 = vmatprep.mubr.f32.mxu0 0.0
      %522 = vmatmul.mubr.f32.gmra.mrb[0].mxu0 %v314
      %v523 = vpop.f32.mrb[0].mxu0
      %v524 = vadd.f32 0.0, %v523
      %v525 = vpop.f32.mrb[0].mxu0
      %526 = vmatprep.mubr.f32.mxu0 0.0
      %527 = vmatmul.mubr.f32.gmra.mrb[0].mxu0 %v317
      %v528 = vpop.f32.mrb[0].mxu0
      %v529 = vadd.f32 0.0, %v528
      %v530 = vpop.f32.mrb[0].mxu0
      %531 = vmatprep.mubr.f32.mxu0 0.0
      %532 = vmatmul.mubr.f32.gmra.mrb[0].mxu0 %v320
      %v533 = vpop.f32.mrb[0].mxu0
      %v534 = vadd.f32 0.0, %v533
      %v535 = vpop.f32.mrb[0].mxu0
      %536 = vmatprep.mubr.f32.mxu0 0.0
      %537 = vmatmul.mubr.f32.gmra.mrb[0].mxu0 %v323
      %v538 = vpop.f32.mrb[0].mxu0
      %v539 = vadd.f32 0.0, %v538
      %v540 = vpop.f32.mrb[0].mxu0
      %541 = vmatprep.mubr.f32.mxu0 0.0
      %542 = vmatmul.mubr.f32.gmra.mrb[0].mxu0 %v326
      %v543 = vpop.f32.mrb[0].mxu0
      %v544 = vadd.f32 0.0, %v543
      %v545 = vpop.f32.mrb[0].mxu0
      %546 = vmatprep.mubr.f32.mxu0 0.0
      %547 = vmatmul.mubr.f32.gmra.mrb[0].mxu0 %v329
      %v548 = vpop.f32.mrb[0].mxu0
      %v549 = vadd.f32 0.0, %v548
      %v550 = vpop.f32.mrb[0].mxu0
      %551 = vmatprep.mubr.f32.mxu0 0.0
      %552 = vmatmul.mubr.f32.gmra.mrb[0].mxu0 %v332
      %v553 = vpop.f32.mrb[0].mxu0
      %v554 = vadd.f32 0.0, %v553
      %v555 = vpop.f32.mrb[0].mxu0
      %556 = vmatprep.mubr.f32.mxu0 0.0
      %557 = vmatmul.mubr.f32.gmra.mrb[0].mxu0 %v335
      %v558 = vpop.f32.mrb[0].mxu0
      %v559 = vadd.f32 0.0, %v558
      %v560 = vpop.f32.mrb[0].mxu0
      %561 = vdwg.mxu0
      %v562 = vmul.f32 %v404, 100.0
      %v563 = vmul.f32 %v409, 100.0
      %v564 = vmul.f32 %v414, 100.0
      %v565 = vmul.f32 %v419, 100.0
      %v566 = vmul.f32 %v424, 100.0
      %v567 = vmul.f32 %v429, 100.0
      %v568 = vmul.f32 %v434, 100.0
      %v569 = vmul.f32 %v439, 100.0
      %v570 = vmul.f32 %v444, 100.0
      %v571 = vmul.f32 %v449, 100.0
      %v572 = vmul.f32 %v454, 100.0
      %v573 = vmul.f32 %v459, 100.0
      %v574 = vmul.f32 %v464, 100.0
      %v575 = vmul.f32 %v469, 100.0
      %v576 = vmul.f32 %v474, 100.0
      %v577 = vmul.f32 %v479, 100.0
      %v578 = vmul.f32 %v484, 100.0
      %v579 = vmul.f32 %v489, 100.0
      %v580 = vmul.f32 %v494, 100.0
      %v581 = vmul.f32 %v499, 100.0
      %v582 = vmul.f32 %v504, 100.0
      %v583 = vmul.f32 %v509, 100.0
      %v584 = vmul.f32 %v514, 100.0
      %v585 = vmul.f32 %v519, 100.0
      %v586 = vmul.f32 %v524, 100.0
      %v587 = vmul.f32 %v529, 100.0
      %v588 = vmul.f32 %v534, 100.0
      %v589 = vmul.f32 %v539, 100.0
      %v590 = vmul.f32 %v544, 100.0
      %v591 = vmul.f32 %v549, 100.0
      %v592 = vmul.f32 %v554, 100.0
      %v593 = vmul.f32 %v559, 100.0
      %vm594 = vcmask 130048
      %v595 = vsel %vm594, %v562, -inf
      %596 = vmax.xlane.f32.xlu0 %v595
      %v597 = vpop.xlane.xlu0 %596
      %v598 = vsel %vm594, %v563, -inf
      %599 = vmax.xlane.f32.xlu0 %v598
      %v600 = vpop.xlane.xlu0 %599
      %v601 = vsel %vm594, %v564, -inf
      %602 = vmax.xlane.f32.xlu0 %v601
      %v603 = vpop.xlane.xlu0 %602
      %v604 = vsel %vm594, %v565, -inf
      %605 = vmax.xlane.f32.xlu0 %v604
      %v606 = vpop.xlane.xlu0 %605
      %v607 = vsel %vm594, %v566, -inf
      %608 = vmax.xlane.f32.xlu0 %v607
      %v609 = vpop.xlane.xlu0 %608
      %v610 = vsel %vm594, %v567, -inf
      %611 = vmax.xlane.f32.xlu0 %v610
      %v612 = vpop.xlane.xlu0 %611
      %v613 = vsel %vm594, %v568, -inf
      %614 = vmax.xlane.f32.xlu0 %v613
      %v615 = vpop.xlane.xlu0 %614
      %v616 = vsel %vm594, %v569, -inf
      %617 = vmax.xlane.f32.xlu0 %v616
      %v618 = vpop.xlane.xlu0 %617
      %v619 = vsel %vm594, %v570, -inf
      %620 = vmax.xlane.f32.xlu0 %v619
      %v621 = vpop.xlane.xlu0 %620
      %v622 = vsel %vm594, %v571, -inf
      %623 = vmax.xlane.f32.xlu0 %v622
      %v624 = vpop.xlane.xlu0 %623
      %v625 = vsel %vm594, %v572, -inf
      %626 = vmax.xlane.f32.xlu0 %v625
      %v627 = vpop.xlane.xlu0 %626
      %v628 = vsel %vm594, %v573, -inf
      %629 = vmax.xlane.f32.xlu0 %v628
      %v630 = vpop.xlane.xlu0 %629
      %v631 = vsel %vm594, %v574, -inf
      %632 = vmax.xlane.f32.xlu0 %v631
      %v633 = vpop.xlane.xlu0 %632
      %v634 = vsel %vm594, %v575, -inf
      %635 = vmax.xlane.f32.xlu0 %v634
      %v636 = vpop.xlane.xlu0 %635
      %v637 = vsel %vm594, %v576, -inf
      %638 = vmax.xlane.f32.xlu0 %v637
      %v639 = vpop.xlane.xlu0 %638
      %v640 = vsel %vm594, %v577, -inf
      %641 = vmax.xlane.f32.xlu0 %v640
      %v642 = vpop.xlane.xlu0 %641
      %v643 = vsel %vm594, %v578, -inf
      %644 = vmax.xlane.f32.xlu0 %v643
      %v645 = vpop.xlane.xlu0 %644
      %v646 = vsel %vm594, %v579, -inf
      %647 = vmax.xlane.f32.xlu0 %v646
      %v648 = vpop.xlane.xlu0 %647
      %v649 = vsel %vm594, %v580, -inf
      %650 = vmax.xlane.f32.xlu0 %v649
      %v651 = vpop.xlane.xlu0 %650
      %v652 = vsel %vm594, %v581, -inf
      %653 = vmax.xlane.f32.xlu0 %v652
      %v654 = vpop.xlane.xlu0 %653
      %v655 = vsel %vm594, %v582, -inf
      %656 = vmax.xlane.f32.xlu0 %v655
      %v657 = vpop.xlane.xlu0 %656
      %v658 = vsel %vm594, %v583, -inf
      %659 = vmax.xlane.f32.xlu0 %v658
      %v660 = vpop.xlane.xlu0 %659
      %v661 = vsel %vm594, %v584, -inf
      %662 = vmax.xlane.f32.xlu0 %v661
      %v663 = vpop.xlane.xlu0 %662
      %v664 = vsel %vm594, %v585, -inf
      %665 = vmax.xlane.f32.xlu0 %v664
      %v666 = vpop.xlane.xlu0 %665
      %v667 = vsel %vm594, %v586, -inf
      %668 = vmax.xlane.f32.xlu0 %v667
      %v669 = vpop.xlane.xlu0 %668
      %v670 = vsel %vm594, %v587, -inf
      %671 = vmax.xlane.f32.xlu0 %v670
      %v672 = vpop.xlane.xlu0 %671
      %v673 = vsel %vm594, %v588, -inf
      %674 = vmax.xlane.f32.xlu0 %v673
      %v675 = vpop.xlane.xlu0 %674
      %v676 = vsel %vm594, %v589, -inf
      %677 = vmax.xlane.f32.xlu0 %v676
      %v678 = vpop.xlane.xlu0 %677
      %v679 = vsel %vm594, %v590, -inf
      %680 = vmax.xlane.f32.xlu0 %v679
      %v681 = vpop.xlane.xlu0 %680
      %v682 = vsel %vm594, %v591, -inf
      %683 = vmax.xlane.f32.xlu0 %v682
      %v684 = vpop.xlane.xlu0 %683
      %v685 = vsel %vm594, %v592, -inf
      %686 = vmax.xlane.f32.xlu0 %v685
      %v687 = vpop.xlane.xlu0 %686
      %v688 = vsel %vm594, %v593, -inf
      %689 = vmax.xlane.f32.xlu0 %v688
      %v690 = vpop.xlane.xlu0 %689
      %v691 = vsub.f32 %v562, %v597
      %v692 = vsub.f32 %v563, %v600
      %v693 = vsub.f32 %v564, %v603
      %v694 = vsub.f32 %v565, %v606
      %v695 = vsub.f32 %v566, %v609
      %v696 = vsub.f32 %v567, %v612
      %v697 = vsub.f32 %v568, %v615
      %v698 = vsub.f32 %v569, %v618
      %v699 = vsub.f32 %v570, %v621
      %v700 = vsub.f32 %v571, %v624
      %v701 = vsub.f32 %v572, %v627
      %v702 = vsub.f32 %v573, %v630
      %v703 = vsub.f32 %v574, %v633
      %v704 = vsub.f32 %v575, %v636
      %v705 = vsub.f32 %v576, %v639
      %v706 = vsub.f32 %v577, %v642
      %v707 = vsub.f32 %v578, %v645
      %v708 = vsub.f32 %v579, %v648
      %v709 = vsub.f32 %v580, %v651
      %v710 = vsub.f32 %v581, %v654
      %v711 = vsub.f32 %v582, %v657
      %v712 = vsub.f32 %v583, %v660
      %v713 = vsub.f32 %v584, %v663
      %v714 = vsub.f32 %v585, %v666
      %v715 = vsub.f32 %v586, %v669
      %v716 = vsub.f32 %v587, %v672
      %v717 = vsub.f32 %v588, %v675
      %v718 = vsub.f32 %v589, %v678
      %v719 = vsub.f32 %v590, %v681
      %v720 = vsub.f32 %v591, %v684
      %v721 = vsub.f32 %v592, %v687
      %v722 = vsub.f32 %v593, %v690
      %v723 = vmul.f32 %v691, 1.442695
      %v724 = vpow.pop %v723
      %v725 = vmul.f32 %v692, 1.442695
      %v726 = vpow.pop %v725
      %v727 = vmul.f32 %v693, 1.442695
      %v728 = vpow.pop %v727
      %v729 = vmul.f32 %v694, 1.442695
      %v730 = vpow.pop %v729
      %v731 = vmul.f32 %v695, 1.442695
      %v732 = vpow.pop %v731
      %v733 = vmul.f32 %v696, 1.442695
      %v734 = vpow.pop %v733
      %v735 = vmul.f32 %v697, 1.442695
      %v736 = vpow.pop %v735
      %v737 = vmul.f32 %v698, 1.442695
      %v738 = vpow.pop %v737
      %v739 = vmul.f32 %v699, 1.442695
      %v740 = vpow.pop %v739
      %v741 = vmul.f32 %v700, 1.442695
      %v742 = vpow.pop %v741
      %v743 = vmul.f32 %v701, 1.442695
      %v744 = vpow.pop %v743
      %v745 = vmul.f32 %v702, 1.442695
      %v746 = vpow.pop %v745
      %v747 = vmul.f32 %v703, 1.442695
      %v748 = vpow.pop %v747
      %v749 = vmul.f32 %v704, 1.442695
      %v750 = vpow.pop %v749
      %v751 = vmul.f32 %v705, 1.442695
      %v752 = vpow.pop %v751
      %v753 = vmul.f32 %v706, 1.442695
      %v754 = vpow.pop %v753
      %v755 = vmul.f32 %v707, 1.442695
      %v756 = vpow.pop %v755
      %v757 = vmul.f32 %v708, 1.442695
      %v758 = vpow.pop %v757
      %v759 = vmul.f32 %v709, 1.442695
      %v760 = vpow.pop %v759
      %v761 = vmul.f32 %v710, 1.442695
      %v762 = vpow.pop %v761
      %v763 = vmul.f32 %v711, 1.442695
      %v764 = vpow.pop %v763
      %v765 = vmul.f32 %v712, 1.442695
      %v766 = vpow.pop %v765
      %v767 = vmul.f32 %v713, 1.442695
      %v768 = vpow.pop %v767
      %v769 = vmul.f32 %v714, 1.442695
      %v770 = vpow.pop %v769
      %v771 = vmul.f32 %v715, 1.442695
      %v772 = vpow.pop %v771
      %v773 = vmul.f32 %v716, 1.442695
      %v774 = vpow.pop %v773
      %v775 = vmul.f32 %v717, 1.442695
      %v776 = vpow.pop %v775
      %v777 = vmul.f32 %v718, 1.442695
      %v778 = vpow.pop %v777
      %v779 = vmul.f32 %v719, 1.442695
      %v780 = vpow.pop %v779
      %v781 = vmul.f32 %v720, 1.442695
      %v782 = vpow.pop %v781
      %v783 = vmul.f32 %v721, 1.442695
      %v784 = vpow.pop %v783
      %v785 = vmul.f32 %v722, 1.442695
      %v786 = vpow.pop %v785
      %v787 = vsel %vm594, %v724, 0.0
      %788 = vadd.xlane.f32.xlu0 %v787
      %v789 = vpop.xlane.xlu0 %788
      %v790 = vsel %vm594, %v726, 0.0
      %791 = vadd.xlane.f32.xlu0 %v790
      %v792 = vpop.xlane.xlu0 %791
      %v793 = vsel %vm594, %v728, 0.0
      %794 = vadd.xlane.f32.xlu0 %v793
      %v795 = vpop.xlane.xlu0 %794
      %v796 = vsel %vm594, %v730, 0.0
      %797 = vadd.xlane.f32.xlu0 %v796
      %v798 = vpop.xlane.xlu0 %797
      %v799 = vsel %vm594, %v732, 0.0
      %800 = vadd.xlane.f32.xlu0 %v799
      %v801 = vpop.xlane.xlu0 %800
      %v802 = vsel %vm594, %v734, 0.0
      %803 = vadd.xlane.f32.xlu0 %v802
      %v804 = vpop.xlane.xlu0 %803
      %v805 = vsel %vm594, %v736, 0.0
      %806 = vadd.xlane.f32.xlu0 %v805
      %v807 = vpop.xlane.xlu0 %806
      %v808 = vsel %vm594, %v738, 0.0
      %809 = vadd.xlane.f32.xlu0 %v808
      %v810 = vpop.xlane.xlu0 %809
      %v811 = vsel %vm594, %v740, 0.0
      %812 = vadd.xlane.f32.xlu0 %v811
      %v813 = vpop.xlane.xlu0 %812
      %v814 = vsel %vm594, %v742, 0.0
      %815 = vadd.xlane.f32.xlu0 %v814
      %v816 = vpop.xlane.xlu0 %815
      %v817 = vsel %vm594, %v744, 0.0
      %818 = vadd.xlane.f32.xlu0 %v817
      %v819 = vpop.xlane.xlu0 %818
      %v820 = vsel %vm594, %v746, 0.0
      %821 = vadd.xlane.f32.xlu0 %v820
      %v822 = vpop.xlane.xlu0 %821
      %v823 = vsel %vm594, %v748, 0.0
      %824 = vadd.xlane.f32.xlu0 %v823
      %v825 = vpop.xlane.xlu0 %824
      %v826 = vsel %vm594, %v750, 0.0
      %827 = vadd.xlane.f32.xlu0 %v826
      %v828 = vpop.xlane.xlu0 %827
      %v829 = vsel %vm594, %v752, 0.0
      %830 = vadd.xlane.f32.xlu0 %v829
      %v831 = vpop.xlane.xlu0 %830
      %v832 = vsel %vm594, %v754, 0.0
      %833 = vadd.xlane.f32.xlu0 %v832
      %v834 = vpop.xlane.xlu0 %833
      %v835 = vsel %vm594, %v756, 0.0
      %836 = vadd.xlane.f32.xlu0 %v835
      %v837 = vpop.xlane.xlu0 %836
      %v838 = vsel %vm594, %v758, 0.0
      %839 = vadd.xlane.f32.xlu0 %v838
      %v840 = vpop.xlane.xlu0 %839
      %v841 = vsel %vm594, %v760, 0.0
      %842 = vadd.xlane.f32.xlu0 %v841
      %v843 = vpop.xlane.xlu0 %842
      %v844 = vsel %vm594, %v762, 0.0
      %845 = vadd.xlane.f32.xlu0 %v844
      %v846 = vpop.xlane.xlu0 %845
      %v847 = vsel %vm594, %v764, 0.0
      %848 = vadd.xlane.f32.xlu0 %v847
      %v849 = vpop.xlane.xlu0 %848
      %v850 = vsel %vm594, %v766, 0.0
      %851 = vadd.xlane.f32.xlu0 %v850
      %v852 = vpop.xlane.xlu0 %851
      %v853 = vsel %vm594, %v768, 0.0
      %854 = vadd.xlane.f32.xlu0 %v853
      %v855 = vpop.xlane.xlu0 %854
      %v856 = vsel %vm594, %v770, 0.0
      %857 = vadd.xlane.f32.xlu0 %v856
      %v858 = vpop.xlane.xlu0 %857
      %v859 = vsel %vm594, %v772, 0.0
      %860 = vadd.xlane.f32.xlu0 %v859
      %v861 = vpop.xlane.xlu0 %860
      %v862 = vsel %vm594, %v774, 0.0
      %863 = vadd.xlane.f32.xlu0 %v862
      %v864 = vpop.xlane.xlu0 %863
      %v865 = vsel %vm594, %v776, 0.0
      %866 = vadd.xlane.f32.xlu0 %v865
      %v867 = vpop.xlane.xlu0 %866
      %v868 = vsel %vm594, %v778, 0.0
      %869 = vadd.xlane.f32.xlu0 %v868
      %v870 = vpop.xlane.xlu0 %869
      %v871 = vsel %vm594, %v780, 0.0
      %872 = vadd.xlane.f32.xlu0 %v871
      %v873 = vpop.xlane.xlu0 %872
      %v874 = vsel %vm594, %v782, 0.0
      %875 = vadd.xlane.f32.xlu0 %v874
      %v876 = vpop.xlane.xlu0 %875
      %v877 = vsel %vm594, %v784, 0.0
      %878 = vadd.xlane.f32.xlu0 %v877
      %v879 = vpop.xlane.xlu0 %878
      %v880 = vsel %vm594, %v786, 0.0
      %881 = vadd.xlane.f32.xlu0 %v880
      %v882 = vpop.xlane.xlu0 %881
      %v883 = vrcp.pop %v789
      %v884 = vmul.f32 %v724, %v883
      %v885 = vrcp.pop %v792
      %v886 = vmul.f32 %v726, %v885
      %v887 = vrcp.pop %v795
      %v888 = vmul.f32 %v728, %v887
      %v889 = vrcp.pop %v798
      %v890 = vmul.f32 %v730, %v889
      %v891 = vrcp.pop %v801
      %v892 = vmul.f32 %v732, %v891
      %v893 = vrcp.pop %v804
      %v894 = vmul.f32 %v734, %v893
      %v895 = vrcp.pop %v807
      %v896 = vmul.f32 %v736, %v895
      %v897 = vrcp.pop %v810
      %v898 = vmul.f32 %v738, %v897
      %v899 = vrcp.pop %v813
      %v900 = vmul.f32 %v740, %v899
      %v901 = vrcp.pop %v816
      %v902 = vmul.f32 %v742, %v901
      %v903 = vrcp.pop %v819
      %v904 = vmul.f32 %v744, %v903
      %v905 = vrcp.pop %v822
      %v906 = vmul.f32 %v746, %v905
      %v907 = vrcp.pop %v825
      %v908 = vmul.f32 %v748, %v907
      %v909 = vrcp.pop %v828
      %v910 = vmul.f32 %v750, %v909
      %v911 = vrcp.pop %v831
      %v912 = vmul.f32 %v752, %v911
      %v913 = vrcp.pop %v834
      %v914 = vmul.f32 %v754, %v913
      %v915 = vrcp.pop %v837
      %v916 = vmul.f32 %v756, %v915
      %v917 = vrcp.pop %v840
      %v918 = vmul.f32 %v758, %v917
      %v919 = vrcp.pop %v843
      %v920 = vmul.f32 %v760, %v919
      %v921 = vrcp.pop %v846
      %v922 = vmul.f32 %v762, %v921
      %v923 = vrcp.pop %v849
      %v924 = vmul.f32 %v764, %v923
      %v925 = vrcp.pop %v852
      %v926 = vmul.f32 %v766, %v925
      %v927 = vrcp.pop %v855
      %v928 = vmul.f32 %v768, %v927
      %v929 = vrcp.pop %v858
      %v930 = vmul.f32 %v770, %v929
      %v931 = vrcp.pop %v861
      %v932 = vmul.f32 %v772, %v931
      %v933 = vrcp.pop %v864
      %v934 = vmul.f32 %v774, %v933
      %v935 = vrcp.pop %v867
      %v936 = vmul.f32 %v776, %v935
      %v937 = vrcp.pop %v870
      %v938 = vmul.f32 %v778, %v937
      %v939 = vrcp.pop %v873
      %v940 = vmul.f32 %v780, %v939
      %v941 = vrcp.pop %v876
      %v942 = vmul.f32 %v782, %v941
      %v943 = vrcp.pop %v879
      %v944 = vmul.f32 %v784, %v943
      %v945 = vrcp.pop %v882
      %v946 = vmul.f32 %v786, %v945
      %947 = vxpose.xlu0.b32.start [1/16] %v172, 128
      %948 = vxpose.xlu0.b32.cont [2/16] %v173, 128
      %949 = vxpose.xlu0.b32.cont [3/16] %v174, 128
      %950 = vxpose.xlu0.b32.cont [4/16] %v175, 128
      %951 = vxpose.xlu0.b32.cont [5/16] 0.0, 128
      %952 = vxpose.xlu0.b32.cont [6/16] 0.0, 128
      %953 = vxpose.xlu0.b32.cont [7/16] 0.0, 128
      %954 = vxpose.xlu0.b32.cont [8/16] 0.0, 128
      %955 = vxpose.xlu0.b32.cont [9/16] 0.0, 128
      %956 = vxpose.xlu0.b32.cont [10/16] 0.0, 128
      %957 = vxpose.xlu0.b32.cont [11/16] 0.0, 128
      %958 = vxpose.xlu0.b32.cont [12/16] 0.0, 128
      %959 = vxpose.xlu0.b32.cont [13/16] 0.0, 128
      %960 = vxpose.xlu0.b32.cont [14/16] 0.0, 128
      %961 = vxpose.xlu0.b32.cont [15/16] 0.0, 128
      %962 = vxpose.xlu0.b32.end [16/16] 0.0, 128
      %v963 = vpop.trf.xlu0
      %v964 = vpop.trf.xlu0
      %v965 = vpop.trf.xlu0
      %v966 = vpop.trf.xlu0
      %v967 = vpop.trf.xlu0
      %v968 = vpop.trf.xlu0
      %v969 = vpop.trf.xlu0
      %v970 = vpop.trf.xlu0
      %v971 = vpop.trf.xlu0
      %v972 = vpop.trf.xlu0
      %v973 = vpop.trf.xlu0
      %v974 = vpop.trf.xlu0
      %v975 = vpop.trf.xlu0
      %v976 = vpop.trf.xlu0
      %v977 = vpop.trf.xlu0
      %v978 = vpop.trf.xlu0
      %v980 = vsel %vm240, %v963, 0
      %v983 = vsel %vm240, %v964, 0
      %985 = vmatprep.subr.mxu0 0.0
      %986 = vmatpush1.msra.mxu0 %v172
      %987 = vmatprep.subr.mxu0 0.0
      %988 = vmatpush1.msra.mxu0 %v173
      %989 = vmatprep.subr.mxu0 0.0
      %990 = vmatpush1.msra.mxu0 %v174
      %991 = vmatprep.subr.mxu0 0.0
      %992 = vmatpush1.msra.mxu0 %v175
      %993 = vmatprep.subr.mxu0 0.0
      %994 = vmatpush1.msra.mxu0 0.0
      %995 = vmatprep.subr.mxu0 0.0
      %996 = vmatpush1.msra.mxu0 0.0
      %997 = vmatprep.subr.mxu0 0.0
      %998 = vmatpush1.msra.mxu0 0.0
      %999 = vmatprep.subr.mxu0 0.0
      %1000 = vmatpush1.msra.mxu0 0.0
      %1001 = vmatprep.subr.mxu0 0.0
      %1002 = vmatpush1.msra.mxu0 0.0
      %1003 = vmatprep.subr.mxu0 0.0
      %1004 = vmatpush1.msra.mxu0 0.0
      %1005 = vmatprep.subr.mxu0 0.0
      %1006 = vmatpush1.msra.mxu0 0.0
      %1007 = vmatprep.subr.mxu0 0.0
      %1008 = vmatpush1.msra.mxu0 0.0
      %1009 = vmatprep.subr.mxu0 0.0
      %1010 = vmatpush1.msra.mxu0 0.0
      %1011 = vmatprep.subr.mxu0 0.0
      %1012 = vmatpush1.msra.mxu0 0.0
      %1013 = vmatprep.subr.mxu0 0.0
      %1014 = vmatpush1.msra.mxu0 0.0
      %1015 = vmatprep.subr.mxu0 0.0
      %1016 = vmatpush1.msra.mxu0 0.0
      %1017 = vmatprep.subr.mxu0 0.0
      %1018 = vmatpush1.msra.mxu0 0.0
      %1019 = vmatprep.subr.mxu0 0.0
      %1020 = vmatpush1.msra.mxu0 0.0
      %1021 = vmatprep.subr.mxu0 0.0
      %1022 = vmatpush1.msra.mxu0 0.0
      %1023 = vmatprep.subr.mxu0 0.0
      %1024 = vmatpush1.msra.mxu0 0.0
      %1025 = vmatprep.subr.mxu0 0.0
      %1026 = vmatpush1.msra.mxu0 0.0
      %1027 = vmatprep.subr.mxu0 0.0
      %1028 = vmatpush1.msra.mxu0 0.0
      %1029 = vmatprep.subr.mxu0 0.0
      %1030 = vmatpush1.msra.mxu0 0.0
      %1031 = vmatprep.subr.mxu0 0.0
      %1032 = vmatpush1.msra.mxu0 0.0
      %1033 = vmatprep.subr.mxu0 0.0
      %1034 = vmatpush1.msra.mxu0 0.0
      %1035 = vmatprep.subr.mxu0 0.0
      %1036 = vmatpush1.msra.mxu0 0.0
      %1037 = vmatprep.subr.mxu0 0.0
      %1038 = vmatpush1.msra.mxu0 0.0
      %1039 = vmatprep.subr.mxu0 0.0
      %1040 = vmatpush1.msra.mxu0 0.0
      %1041 = vmatprep.subr.mxu0 0.0
      %1042 = vmatpush1.msra.mxu0 0.0
      %1043 = vmatprep.subr.mxu0 0.0
      %1044 = vmatpush1.msra.mxu0 0.0
      %1045 = vmatprep.subr.mxu0 0.0
      %1046 = vmatpush1.msra.mxu0 0.0
      %1047 = vmatprep.subr.mxu0 0.0
      %1048 = vmatpush1.msra.mxu0 0.0
      %1049 = vmatprep.mubr.f32.mxu0 0.0
      %1050 = vmatmul.mubr.f32.gmra.mrb[0].mxu0 %v980
      %v1051 = vpop.f32.mrb[0].mxu0
      %v1052 = vadd.f32 0.0, %v1051
      %v1053 = vpop.f32.mrb[0].mxu0
      %1054 = vmatprep.mubr.f32.mxu0 0.0
      %1055 = vmatmul.mubr.f32.gmra.mrb[0].mxu0 %v983
      %v1056 = vpop.f32.mrb[0].mxu0
      %v1057 = vadd.f32 0.0, %v1056
      %v1058 = vpop.f32.mrb[0].mxu0
      %1059 = vdwg.mxu0
      %v1060 = vmul.f32 %v884, %v404
      %v1061 = vmul.f32 %v886, %v409
      %v1062 = vmul.f32 %v888, %v414
      %v1063 = vmul.f32 %v890, %v419
      %v1064 = vmul.f32 %v892, %v424
      %v1065 = vmul.f32 %v894, %v429
      %v1066 = vmul.f32 %v896, %v434
      %v1067 = vmul.f32 %v898, %v439
      %v1068 = vmul.f32 %v900, %v444
      %v1069 = vmul.f32 %v902, %v449
      %v1070 = vmul.f32 %v904, %v454
      %v1071 = vmul.f32 %v906, %v459
      %v1072 = vmul.f32 %v908, %v464
      %v1073 = vmul.f32 %v910, %v469
      %v1074 = vmul.f32 %v912, %v474
      %v1075 = vmul.f32 %v914, %v479
      %v1076 = vmul.f32 %v916, %v484
      %v1077 = vmul.f32 %v918, %v489
      %v1078 = vmul.f32 %v920, %v494
      %v1079 = vmul.f32 %v922, %v499
      %v1080 = vmul.f32 %v924, %v504
      %v1081 = vmul.f32 %v926, %v509
      %v1082 = vmul.f32 %v928, %v514
      %v1083 = vmul.f32 %v930, %v519
      %v1084 = vmul.f32 %v932, %v524
      %v1085 = vmul.f32 %v934, %v529
      %v1086 = vmul.f32 %v936, %v534
      %v1087 = vmul.f32 %v938, %v539
      %v1088 = vmul.f32 %v940, %v544
      %v1089 = vmul.f32 %v942, %v549
      %v1090 = vmul.f32 %v944, %v554
      %v1091 = vmul.f32 %v946, %v559
      %v1093 = vsel %vm594, %v884, 0
      %v1096 = vsel %vm594, %v886, 0
      %v1099 = vsel %vm594, %v888, 0
      %v1102 = vsel %vm594, %v890, 0
      %v1105 = vsel %vm594, %v892, 0
      %v1108 = vsel %vm594, %v894, 0
      %v1111 = vsel %vm594, %v896, 0
      %v1114 = vsel %vm594, %v898, 0
      %v1117 = vsel %vm594, %v900, 0
      %v1120 = vsel %vm594, %v902, 0
      %v1123 = vsel %vm594, %v904, 0
      %v1126 = vsel %vm594, %v906, 0
      %v1129 = vsel %vm594, %v908, 0
      %v1132 = vsel %vm594, %v910, 0
      %v1135 = vsel %vm594, %v912, 0
      %v1138 = vsel %vm594, %v914, 0
      %v1141 = vsel %vm594, %v916, 0
      %v1144 = vsel %vm594, %v918, 0
      %v1147 = vsel %vm594, %v920, 0
      %v1150 = vsel %vm594, %v922, 0
      %v1153 = vsel %vm594, %v924, 0
      %v1156 = vsel %vm594, %v926, 0
      %v1159 = vsel %vm594, %v928, 0
      %v1162 = vsel %vm594, %v930, 0
      %v1165 = vsel %vm594, %v932, 0
      %v1168 = vsel %vm594, %v934, 0
      %v1171 = vsel %vm594, %v936, 0
      %v1174 = vsel %vm594, %v938, 0
      %v1177 = vsel %vm594, %v940, 0
      %v1180 = vsel %vm594, %v942, 0
      %v1183 = vsel %vm594, %v944, 0
      %v1186 = vsel %vm594, %v946, 0
      %1188 = vmatprep.subr.mxu0 0.0
      %1189 = vmatpush1.msra.mxu0 %v1052
      %1190 = vmatprep.subr.mxu0 0.0
      %1191 = vmatpush1.msra.mxu0 %v1057
      %1192 = vmatprep.subr.mxu0 0.0
      %1193 = vmatpush1.msra.mxu0 0.0
      %1194 = vmatprep.subr.mxu0 0.0
      %1195 = vmatpush1.msra.mxu0 0.0
      %1196 = vmatprep.subr.mxu0 0.0
      %1197 = vmatpush1.msra.mxu0 0.0
      %1198 = vmatprep.subr.mxu0 0.0
      %1199 = vmatpush1.msra.mxu0 0.0
      %1200 = vmatprep.subr.mxu0 0.0
      %1201 = vmatpush1.msra.mxu0 0.0
      %1202 = vmatprep.subr.mxu0 0.0
      %1203 = vmatpush1.msra.mxu0 0.0
      %1204 = vmatprep.subr.mxu0 0.0
      %1205 = vmatpush1.msra.mxu0 0.0
      %1206 = vmatprep.subr.mxu0 0.0
      %1207 = vmatpush1.msra.mxu0 0.0
      %1208 = vmatprep.subr.mxu0 0.0
      %1209 = vmatpush1.msra.mxu0 0.0
      %1210 = vmatprep.subr.mxu0 0.0
      %1211 = vmatpush1.msra.mxu0 0.0
      %1212 = vmatprep.subr.mxu0 0.0
      %1213 = vmatpush1.msra.mxu0 0.0
      %1214 = vmatprep.subr.mxu0 0.0
      %1215 = vmatpush1.msra.mxu0 0.0
      %1216 = vmatprep.subr.mxu0 0.0
      %1217 = vmatpush1.msra.mxu0 0.0
      %1218 = vmatprep.subr.mxu0 0.0
      %1219 = vmatpush1.msra.mxu0 0.0
      %1220 = vmatprep.subr.mxu0 0.0
      %1221 = vmatpush1.msra.mxu0 0.0
      %1222 = vmatprep.subr.mxu0 0.0
      %1223 = vmatpush1.msra.mxu0 0.0
      %1224 = vmatprep.subr.mxu0 0.0
      %1225 = vmatpush1.msra.mxu0 0.0
      %1226 = vmatprep.subr.mxu0 0.0
      %1227 = vmatpush1.msra.mxu0 0.0
      %1228 = vmatprep.subr.mxu0 0.0
      %1229 = vmatpush1.msra.mxu0 0.0
      %1230 = vmatprep.subr.mxu0 0.0
      %1231 = vmatpush1.msra.mxu0 0.0
      %1232 = vmatprep.subr.mxu0 0.0
      %1233 = vmatpush1.msra.mxu0 0.0
      %1234 = vmatprep.subr.mxu0 0.0
      %1235 = vmatpush1.msra.mxu0 0.0
      %1236 = vmatprep.subr.mxu0 0.0
      %1237 = vmatpush1.msra.mxu0 0.0
      %1238 = vmatprep.subr.mxu0 0.0
      %1239 = vmatpush1.msra.mxu0 0.0
      %1240 = vmatprep.subr.mxu0 0.0
      %1241 = vmatpush1.msra.mxu0 0.0
      %1242 = vmatprep.subr.mxu0 0.0
      %1243 = vmatpush1.msra.mxu0 0.0
      %1244 = vmatprep.subr.mxu0 0.0
      %1245 = vmatpush1.msra.mxu0 0.0
      %1246 = vmatprep.subr.mxu0 0.0
      %1247 = vmatpush1.msra.mxu0 0.0
      %1248 = vmatprep.subr.mxu0 0.0
      %1249 = vmatpush1.msra.mxu0 0.0
      %1250 = vmatprep.subr.mxu0 0.0
      %1251 = vmatpush1.msra.mxu0 0.0
      %1252 = vmatprep.mubr.f32.mxu0 0.0
      %1253 = vmatmul.mubr.f32.gmra.mrb[0].mxu0 %v1093
      %v1254 = vpop.f32.mrb[0].mxu0
      %v1255 = vadd.f32 1e-06, %v1254
      %v1256 = vpop.f32.mrb[0].mxu0
      %1257 = vmatprep.mubr.f32.mxu0 0.0
      %1258 = vmatmul.mubr.f32.gmra.mrb[0].mxu0 %v1096
      %v1259 = vpop.f32.mrb[0].mxu0
      %v1260 = vadd.f32 1e-06, %v1259
      %v1261 = vpop.f32.mrb[0].mxu0
      %1262 = vmatprep.mubr.f32.mxu0 0.0
      %1263 = vmatmul.mubr.f32.gmra.mrb[0].mxu0 %v1099
      %v1264 = vpop.f32.mrb[0].mxu0
      %v1265 = vadd.f32 1e-06, %v1264
      %v1266 = vpop.f32.mrb[0].mxu0
      %1267 = vmatprep.mubr.f32.mxu0 0.0
      %1268 = vmatmul.mubr.f32.gmra.mrb[0].mxu0 %v1102
      %v1269 = vpop.f32.mrb[0].mxu0
      %v1270 = vadd.f32 1e-06, %v1269
      %v1271 = vpop.f32.mrb[0].mxu0
      %1272 = vmatprep.mubr.f32.mxu0 0.0
      %1273 = vmatmul.mubr.f32.gmra.mrb[0].mxu0 %v1105
      %v1274 = vpop.f32.mrb[0].mxu0
      %v1275 = vadd.f32 1e-06, %v1274
      %v1276 = vpop.f32.mrb[0].mxu0
      %1277 = vmatprep.mubr.f32.mxu0 0.0
      %1278 = vmatmul.mubr.f32.gmra.mrb[0].mxu0 %v1108
      %v1279 = vpop.f32.mrb[0].mxu0
      %v1280 = vadd.f32 1e-06, %v1279
      %v1281 = vpop.f32.mrb[0].mxu0
      %1282 = vmatprep.mubr.f32.mxu0 0.0
      %1283 = vmatmul.mubr.f32.gmra.mrb[0].mxu0 %v1111
      %v1284 = vpop.f32.mrb[0].mxu0
      %v1285 = vadd.f32 1e-06, %v1284
      %v1286 = vpop.f32.mrb[0].mxu0
      %1287 = vmatprep.mubr.f32.mxu0 0.0
      %1288 = vmatmul.mubr.f32.gmra.mrb[0].mxu0 %v1114
      %v1289 = vpop.f32.mrb[0].mxu0
      %v1290 = vadd.f32 1e-06, %v1289
      %v1291 = vpop.f32.mrb[0].mxu0
      %1292 = vmatprep.mubr.f32.mxu0 0.0
      %1293 = vmatmul.mubr.f32.gmra.mrb[0].mxu0 %v1117
      %v1294 = vpop.f32.mrb[0].mxu0
      %v1295 = vadd.f32 1e-06, %v1294
      %v1296 = vpop.f32.mrb[0].mxu0
      %1297 = vmatprep.mubr.f32.mxu0 0.0
      %1298 = vmatmul.mubr.f32.gmra.mrb[0].mxu0 %v1120
      %v1299 = vpop.f32.mrb[0].mxu0
      %v1300 = vadd.f32 1e-06, %v1299
      %v1301 = vpop.f32.mrb[0].mxu0
      %1302 = vmatprep.mubr.f32.mxu0 0.0
      %1303 = vmatmul.mubr.f32.gmra.mrb[0].mxu0 %v1123
      %v1304 = vpop.f32.mrb[0].mxu0
      %v1305 = vadd.f32 1e-06, %v1304
      %v1306 = vpop.f32.mrb[0].mxu0
      %1307 = vmatprep.mubr.f32.mxu0 0.0
      %1308 = vmatmul.mubr.f32.gmra.mrb[0].mxu0 %v1126
      %v1309 = vpop.f32.mrb[0].mxu0
      %v1310 = vadd.f32 1e-06, %v1309
      %v1311 = vpop.f32.mrb[0].mxu0
      %1312 = vmatprep.mubr.f32.mxu0 0.0
      %1313 = vmatmul.mubr.f32.gmra.mrb[0].mxu0 %v1129
      %v1314 = vpop.f32.mrb[0].mxu0
      %v1315 = vadd.f32 1e-06, %v1314
      %v1316 = vpop.f32.mrb[0].mxu0
      %1317 = vmatprep.mubr.f32.mxu0 0.0
      %1318 = vmatmul.mubr.f32.gmra.mrb[0].mxu0 %v1132
      %v1319 = vpop.f32.mrb[0].mxu0
      %v1320 = vadd.f32 1e-06, %v1319
      %v1321 = vpop.f32.mrb[0].mxu0
      %1322 = vmatprep.mubr.f32.mxu0 0.0
      %1323 = vmatmul.mubr.f32.gmra.mrb[0].mxu0 %v1135
      %v1324 = vpop.f32.mrb[0].mxu0
      %v1325 = vadd.f32 1e-06, %v1324
      %v1326 = vpop.f32.mrb[0].mxu0
      %1327 = vmatprep.mubr.f32.mxu0 0.0
      %1328 = vmatmul.mubr.f32.gmra.mrb[0].mxu0 %v1138
      %v1329 = vpop.f32.mrb[0].mxu0
      %v1330 = vadd.f32 1e-06, %v1329
      %v1331 = vpop.f32.mrb[0].mxu0
      %1332 = vmatprep.mubr.f32.mxu0 0.0
      %1333 = vmatmul.mubr.f32.gmra.mrb[0].mxu0 %v1141
      %v1334 = vpop.f32.mrb[0].mxu0
      %v1335 = vadd.f32 1e-06, %v1334
      %v1336 = vpop.f32.mrb[0].mxu0
      %1337 = vmatprep.mubr.f32.mxu0 0.0
      %1338 = vmatmul.mubr.f32.gmra.mrb[0].mxu0 %v1144
      %v1339 = vpop.f32.mrb[0].mxu0
      %v1340 = vadd.f32 1e-06, %v1339
      %v1341 = vpop.f32.mrb[0].mxu0
      %1342 = vmatprep.mubr.f32.mxu0 0.0
      %1343 = vmatmul.mubr.f32.gmra.mrb[0].mxu0 %v1147
      %v1344 = vpop.f32.mrb[0].mxu0
      %v1345 = vadd.f32 1e-06, %v1344
      %v1346 = vpop.f32.mrb[0].mxu0
      %1347 = vmatprep.mubr.f32.mxu0 0.0
      %1348 = vmatmul.mubr.f32.gmra.mrb[0].mxu0 %v1150
      %v1349 = vpop.f32.mrb[0].mxu0
      %v1350 = vadd.f32 1e-06, %v1349
      %v1351 = vpop.f32.mrb[0].mxu0
      %1352 = vmatprep.mubr.f32.mxu0 0.0
      %1353 = vmatmul.mubr.f32.gmra.mrb[0].mxu0 %v1153
      %v1354 = vpop.f32.mrb[0].mxu0
      %v1355 = vadd.f32 1e-06, %v1354
      %v1356 = vpop.f32.mrb[0].mxu0
      %1357 = vmatprep.mubr.f32.mxu0 0.0
      %1358 = vmatmul.mubr.f32.gmra.mrb[0].mxu0 %v1156
      %v1359 = vpop.f32.mrb[0].mxu0
      %v1360 = vadd.f32 1e-06, %v1359
      %v1361 = vpop.f32.mrb[0].mxu0
      %1362 = vmatprep.mubr.f32.mxu0 0.0
      %1363 = vmatmul.mubr.f32.gmra.mrb[0].mxu0 %v1159
      %v1364 = vpop.f32.mrb[0].mxu0
      %v1365 = vadd.f32 1e-06, %v1364
      %v1366 = vpop.f32.mrb[0].mxu0
      %1367 = vmatprep.mubr.f32.mxu0 0.0
      %1368 = vmatmul.mubr.f32.gmra.mrb[0].mxu0 %v1162
      %v1369 = vpop.f32.mrb[0].mxu0
      %v1370 = vadd.f32 1e-06, %v1369
      %v1371 = vpop.f32.mrb[0].mxu0
      %1372 = vmatprep.mubr.f32.mxu0 0.0
      %1373 = vmatmul.mubr.f32.gmra.mrb[0].mxu0 %v1165
      %v1374 = vpop.f32.mrb[0].mxu0
      %v1375 = vadd.f32 1e-06, %v1374
      %v1376 = vpop.f32.mrb[0].mxu0
      %1377 = vmatprep.mubr.f32.mxu0 0.0
      %1378 = vmatmul.mubr.f32.gmra.mrb[0].mxu0 %v1168
      %v1379 = vpop.f32.mrb[0].mxu0
      %v1380 = vadd.f32 1e-06, %v1379
      %v1381 = vpop.f32.mrb[0].mxu0
      %1382 = vmatprep.mubr.f32.mxu0 0.0
      %1383 = vmatmul.mubr.f32.gmra.mrb[0].mxu0 %v1171
      %v1384 = vpop.f32.mrb[0].mxu0
      %v1385 = vadd.f32 1e-06, %v1384
      %v1386 = vpop.f32.mrb[0].mxu0
      %1387 = vmatprep.mubr.f32.mxu0 0.0
      %1388 = vmatmul.mubr.f32.gmra.mrb[0].mxu0 %v1174
      %v1389 = vpop.f32.mrb[0].mxu0
      %v1390 = vadd.f32 1e-06, %v1389
      %v1391 = vpop.f32.mrb[0].mxu0
      %1392 = vmatprep.mubr.f32.mxu0 0.0
      %1393 = vmatmul.mubr.f32.gmra.mrb[0].mxu0 %v1177
      %v1394 = vpop.f32.mrb[0].mxu0
      %v1395 = vadd.f32 1e-06, %v1394
      %v1396 = vpop.f32.mrb[0].mxu0
      %1397 = vmatprep.mubr.f32.mxu0 0.0
      %1398 = vmatmul.mubr.f32.gmra.mrb[0].mxu0 %v1180
      %v1399 = vpop.f32.mrb[0].mxu0
      %v1400 = vadd.f32 1e-06, %v1399
      %v1401 = vpop.f32.mrb[0].mxu0
      %1402 = vmatprep.mubr.f32.mxu0 0.0
      %1403 = vmatmul.mubr.f32.gmra.mrb[0].mxu0 %v1183
      %v1404 = vpop.f32.mrb[0].mxu0
      %v1405 = vadd.f32 1e-06, %v1404
      %v1406 = vpop.f32.mrb[0].mxu0
      %1407 = vmatprep.mubr.f32.mxu0 0.0
      %1408 = vmatmul.mubr.f32.gmra.mrb[0].mxu0 %v1186
      %v1409 = vpop.f32.mrb[0].mxu0
      %v1410 = vadd.f32 1e-06, %v1409
      %v1411 = vpop.f32.mrb[0].mxu0
      %1412 = vdwg.mxu0
      %v1413 = vrcp.pop %v1255
      %v1414 = vmul.f32 %v1060, %v1413
      %v1415 = vrcp.pop %v1260
      %v1416 = vmul.f32 %v1061, %v1415
      %v1417 = vrcp.pop %v1265
      %v1418 = vmul.f32 %v1062, %v1417
      %v1419 = vrcp.pop %v1270
      %v1420 = vmul.f32 %v1063, %v1419
      %v1421 = vrcp.pop %v1275
      %v1422 = vmul.f32 %v1064, %v1421
      %v1423 = vrcp.pop %v1280
      %v1424 = vmul.f32 %v1065, %v1423
      %v1425 = vrcp.pop %v1285
      %v1426 = vmul.f32 %v1066, %v1425
      %v1427 = vrcp.pop %v1290
      %v1428 = vmul.f32 %v1067, %v1427
      %v1429 = vrcp.pop %v1295
      %v1430 = vmul.f32 %v1068, %v1429
      %v1431 = vrcp.pop %v1300
      %v1432 = vmul.f32 %v1069, %v1431
      %v1433 = vrcp.pop %v1305
      %v1434 = vmul.f32 %v1070, %v1433
      %v1435 = vrcp.pop %v1310
      %v1436 = vmul.f32 %v1071, %v1435
      %v1437 = vrcp.pop %v1315
      %v1438 = vmul.f32 %v1072, %v1437
      %v1439 = vrcp.pop %v1320
      %v1440 = vmul.f32 %v1073, %v1439
      %v1441 = vrcp.pop %v1325
      %v1442 = vmul.f32 %v1074, %v1441
      %v1443 = vrcp.pop %v1330
      %v1444 = vmul.f32 %v1075, %v1443
      %v1445 = vrcp.pop %v1335
      %v1446 = vmul.f32 %v1076, %v1445
      %v1447 = vrcp.pop %v1340
      %v1448 = vmul.f32 %v1077, %v1447
      %v1449 = vrcp.pop %v1345
      %v1450 = vmul.f32 %v1078, %v1449
      %v1451 = vrcp.pop %v1350
      %v1452 = vmul.f32 %v1079, %v1451
      %v1453 = vrcp.pop %v1355
      %v1454 = vmul.f32 %v1080, %v1453
      %v1455 = vrcp.pop %v1360
      %v1456 = vmul.f32 %v1081, %v1455
      %v1457 = vrcp.pop %v1365
      %v1458 = vmul.f32 %v1082, %v1457
      %v1459 = vrcp.pop %v1370
      %v1460 = vmul.f32 %v1083, %v1459
      %v1461 = vrcp.pop %v1375
      %v1462 = vmul.f32 %v1084, %v1461
      %v1463 = vrcp.pop %v1380
      %v1464 = vmul.f32 %v1085, %v1463
      %v1465 = vrcp.pop %v1385
      %v1466 = vmul.f32 %v1086, %v1465
      %v1467 = vrcp.pop %v1390
      %v1468 = vmul.f32 %v1087, %v1467
      %v1469 = vrcp.pop %v1395
      %v1470 = vmul.f32 %v1088, %v1469
      %v1471 = vrcp.pop %v1400
      %v1472 = vmul.f32 %v1089, %v1471
      %v1473 = vrcp.pop %v1405
      %v1474 = vmul.f32 %v1090, %v1473
      %v1475 = vrcp.pop %v1410
      %v1476 = vmul.f32 %v1091, %v1475
      %1477 = vmatprep.subr.mxu0 0.0
      %1478 = vmatpush1.msra.mxu0 %v1414
      %1479 = vmatprep.subr.mxu0 0.0
      %1480 = vmatpush1.msra.mxu0 %v1416
      %1481 = vmatprep.subr.mxu0 0.0
      %1482 = vmatpush1.msra.mxu0 %v1418
      %1483 = vmatprep.subr.mxu0 0.0
      %1484 = vmatpush1.msra.mxu0 %v1420
      %1485 = vmatprep.subr.mxu0 0.0
      %1486 = vmatpush1.msra.mxu0 %v1422
      %1487 = vmatprep.subr.mxu0 0.0
      %1488 = vmatpush1.msra.mxu0 %v1424
      %1489 = vmatprep.subr.mxu0 0.0
      %1490 = vmatpush1.msra.mxu0 %v1426
      %1491 = vmatprep.subr.mxu0 0.0
      %1492 = vmatpush1.msra.mxu0 %v1428
      %1493 = vmatprep.subr.mxu0 0.0
      %1494 = vmatpush1.msra.mxu0 %v1430
      %1495 = vmatprep.subr.mxu0 0.0
      %1496 = vmatpush1.msra.mxu0 %v1432
      %1497 = vmatprep.subr.mxu0 0.0
      %1498 = vmatpush1.msra.mxu0 %v1434
      %1499 = vmatprep.subr.mxu0 0.0
      %1500 = vmatpush1.msra.mxu0 %v1436
      %1501 = vmatprep.subr.mxu0 0.0
      %1502 = vmatpush1.msra.mxu0 %v1438
      %1503 = vmatprep.subr.mxu0 0.0
      %1504 = vmatpush1.msra.mxu0 %v1440
      %1505 = vmatprep.subr.mxu0 0.0
      %1506 = vmatpush1.msra.mxu0 %v1442
      %1507 = vmatprep.subr.mxu0 0.0
      %1508 = vmatpush1.msra.mxu0 %v1444
      %1509 = vmatprep.subr.mxu0 0.0
      %1510 = vmatpush1.msra.mxu0 %v1446
      %1511 = vmatprep.subr.mxu0 0.0
      %1512 = vmatpush1.msra.mxu0 %v1448
      %1513 = vmatprep.subr.mxu0 0.0
      %1514 = vmatpush1.msra.mxu0 %v1450
      %1515 = vmatprep.subr.mxu0 0.0
      %1516 = vmatpush1.msra.mxu0 %v1452
      %1517 = vmatprep.subr.mxu0 0.0
      %1518 = vmatpush1.msra.mxu0 %v1454
      %1519 = vmatprep.subr.mxu0 0.0
      %1520 = vmatpush1.msra.mxu0 %v1456
      %1521 = vmatprep.subr.mxu0 0.0
      %1522 = vmatpush1.msra.mxu0 %v1458
      %1523 = vmatprep.subr.mxu0 0.0
      %1524 = vmatpush1.msra.mxu0 %v1460
      %1525 = vmatprep.subr.mxu0 0.0
      %1526 = vmatpush1.msra.mxu0 %v1462
      %1527 = vmatprep.subr.mxu0 0.0
      %1528 = vmatpush1.msra.mxu0 %v1464
      %1529 = vmatprep.subr.mxu0 0.0
      %1530 = vmatpush1.msra.mxu0 %v1466
      %1531 = vmatprep.subr.mxu0 0.0
      %1532 = vmatpush1.msra.mxu0 %v1468
      %1533 = vmatprep.subr.mxu0 0.0
      %1534 = vmatpush1.msra.mxu0 %v1470
      %1535 = vmatprep.subr.mxu0 0.0
      %1536 = vmatpush1.msra.mxu0 %v1472
      %1537 = vmatprep.subr.mxu0 0.0
      %1538 = vmatpush1.msra.mxu0 %v1474
      %1539 = vmatprep.subr.mxu0 0.0
      %1540 = vmatpush1.msra.mxu0 %v1476
      %1541 = vmatprep.mubr.f32.mxu0 %v165
      %1542 = vmatmul.mubr.f32.gmra.mrb[0].mxu0 %v164
      %v1543 = vpop.f32.mrb[0].mxu0
      %v1544 = vadd.f32 0.0, %v1543
      %v1545 = vpop.f32.mrb[0].mxu0
      %1546 = vmatprep.mubr.f32.mxu0 %v167
      %1547 = vmatmul.mubr.f32.gmra.mrb[0].mxu0 %v166
      %v1548 = vpop.f32.mrb[0].mxu0
      %v1549 = vadd.f32 0.0, %v1548
      %v1550 = vpop.f32.mrb[0].mxu0
      %1551 = vmatprep.mubr.f32.mxu0 %v169
      %1552 = vmatmul.mubr.f32.gmra.mrb[0].mxu0 %v168
      %v1553 = vpop.f32.mrb[0].mxu0
      %v1554 = vadd.f32 0.0, %v1553
      %v1555 = vpop.f32.mrb[0].mxu0
      %1556 = vmatprep.mubr.f32.mxu0 %v171
      %1557 = vmatmul.mubr.f32.gmra.mrb[0].mxu0 %v170
      %v1558 = vpop.f32.mrb[0].mxu0
      %v1559 = vadd.f32 0.0, %v1558
      %v1560 = vpop.f32.mrb[0].mxu0
      %1561 = vdwg.mxu0
      %1562 = vxpose.xlu0.b32.start [1/16] %v1414, 128
      %1563 = vxpose.xlu0.b32.cont [2/16] %v1416, 128
      %1564 = vxpose.xlu0.b32.cont [3/16] %v1418, 128
      %1565 = vxpose.xlu0.b32.cont [4/16] %v1420, 128
      %1566 = vxpose.xlu0.b32.cont [5/16] %v1422, 128
      %1567 = vxpose.xlu0.b32.cont [6/16] %v1424, 128
      %1568 = vxpose.xlu0.b32.cont [7/16] %v1426, 128
      %1569 = vxpose.xlu0.b32.cont [8/16] %v1428, 128
      %1570 = vxpose.xlu0.b32.cont [9/16] %v1430, 128
      %1571 = vxpose.xlu0.b32.cont [10/16] %v1432, 128
      %1572 = vxpose.xlu0.b32.cont [11/16] %v1434, 128
      %1573 = vxpose.xlu0.b32.cont [12/16] %v1436, 128
      %1574 = vxpose.xlu0.b32.cont [13/16] %v1438, 128
      %1575 = vxpose.xlu0.b32.cont [14/16] %v1440, 128
      %1576 = vxpose.xlu0.b32.cont [15/16] %v1442, 128
      %1577 = vxpose.xlu0.b32.end [16/16] %v1444, 128
      %v1578 = vpop.trf.xlu0
      %v1579 = vpop.trf.xlu0
      %v1580 = vpop.trf.xlu0
      %v1581 = vpop.trf.xlu0
      %v1582 = vpop.trf.xlu0
      %v1583 = vpop.trf.xlu0
      %v1584 = vpop.trf.xlu0
      %v1585 = vpop.trf.xlu0
      %v1586 = vpop.trf.xlu0
      %v1587 = vpop.trf.xlu0
      %v1588 = vpop.trf.xlu0
      %v1589 = vpop.trf.xlu0
      %v1590 = vpop.trf.xlu0
      %v1591 = vpop.trf.xlu0
      %v1592 = vpop.trf.xlu0
      %v1593 = vpop.trf.xlu0
      %1594 = vxpose.xlu0.b32.start [1/16] %v1446, 128
      %1595 = vxpose.xlu0.b32.cont [2/16] %v1448, 128
      %1596 = vxpose.xlu0.b32.cont [3/16] %v1450, 128
      %1597 = vxpose.xlu0.b32.cont [4/16] %v1452, 128
      %1598 = vxpose.xlu0.b32.cont [5/16] %v1454, 128
      %1599 = vxpose.xlu0.b32.cont [6/16] %v1456, 128
      %1600 = vxpose.xlu0.b32.cont [7/16] %v1458, 128
      %1601 = vxpose.xlu0.b32.cont [8/16] %v1460, 128
      %1602 = vxpose.xlu0.b32.cont [9/16] %v1462, 128
      %1603 = vxpose.xlu0.b32.cont [10/16] %v1464, 128
      %1604 = vxpose.xlu0.b32.cont [11/16] %v1466, 128
      %1605 = vxpose.xlu0.b32.cont [12/16] %v1468, 128
      %1606 = vxpose.xlu0.b32.cont [13/16] %v1470, 128
      %1607 = vxpose.xlu0.b32.cont [14/16] %v1472, 128
      %1608 = vxpose.xlu0.b32.cont [15/16] %v1474, 128
      %1609 = vxpose.xlu0.b32.end [16/16] %v1476, 128
      %v1610 = vpop.trf.xlu0
      %v1611 = vpop.trf.xlu0
      %v1612 = vpop.trf.xlu0
      %v1613 = vpop.trf.xlu0
      %v1614 = vpop.trf.xlu0
      %v1615 = vpop.trf.xlu0
      %v1616 = vpop.trf.xlu0
      %v1617 = vpop.trf.xlu0
      %v1618 = vpop.trf.xlu0
      %v1619 = vpop.trf.xlu0
      %v1620 = vpop.trf.xlu0
      %v1621 = vpop.trf.xlu0
      %v1622 = vpop.trf.xlu0
      %v1623 = vpop.trf.xlu0
      %v1624 = vpop.trf.xlu0
      %v1625 = vpop.trf.xlu0
      %1626 = vmatprep.subr.mxu0 0.0
      %1627 = vmatpush1.msra.mxu0 %v1414
      %1628 = vmatprep.subr.mxu0 0.0
      %1629 = vmatpush1.msra.mxu0 %v1416
      %1630 = vmatprep.subr.mxu0 0.0
      %1631 = vmatpush1.msra.mxu0 %v1418
      %1632 = vmatprep.subr.mxu0 0.0
      %1633 = vmatpush1.msra.mxu0 %v1420
      %1634 = vmatprep.subr.mxu0 0.0
      %1635 = vmatpush1.msra.mxu0 %v1422
      %1636 = vmatprep.subr.mxu0 0.0
      %1637 = vmatpush1.msra.mxu0 %v1424
      %1638 = vmatprep.subr.mxu0 0.0
      %1639 = vmatpush1.msra.mxu0 %v1426
      %1640 = vmatprep.subr.mxu0 0.0
      %1641 = vmatpush1.msra.mxu0 %v1428
      %1642 = vmatprep.subr.mxu0 0.0
      %1643 = vmatpush1.msra.mxu0 %v1430
      %1644 = vmatprep.subr.mxu0 0.0
      %1645 = vmatpush1.msra.mxu0 %v1432
      %1646 = vmatprep.subr.mxu0 0.0
      %1647 = vmatpush1.msra.mxu0 %v1434
      %1648 = vmatprep.subr.mxu0 0.0
      %1649 = vmatpush1.msra.mxu0 %v1436
      %1650 = vmatprep.subr.mxu0 0.0
      %1651 = vmatpush1.msra.mxu0 %v1438
      %1652 = vmatprep.subr.mxu0 0.0
      %1653 = vmatpush1.msra.mxu0 %v1440
      %1654 = vmatprep.subr.mxu0 0.0
      %1655 = vmatpush1.msra.mxu0 %v1442
      %1656 = vmatprep.subr.mxu0 0.0
      %1657 = vmatpush1.msra.mxu0 %v1444
      %1658 = vmatprep.subr.mxu0 0.0
      %1659 = vmatpush1.msra.mxu0 %v1446
      %1660 = vmatprep.subr.mxu0 0.0
      %1661 = vmatpush1.msra.mxu0 %v1448
      %1662 = vmatprep.subr.mxu0 0.0
      %1663 = vmatpush1.msra.mxu0 %v1450
      %1664 = vmatprep.subr.mxu0 0.0
      %1665 = vmatpush1.msra.mxu0 %v1452
      %1666 = vmatprep.subr.mxu0 0.0
      %1667 = vmatpush1.msra.mxu0 %v1454
      %1668 = vmatprep.subr.mxu0 0.0
      %1669 = vmatpush1.msra.mxu0 %v1456
      %1670 = vmatprep.subr.mxu0 0.0
      %1671 = vmatpush1.msra.mxu0 %v1458
      %1672 = vmatprep.subr.mxu0 0.0
      %1673 = vmatpush1.msra.mxu0 %v1460
      %1674 = vmatprep.subr.mxu0 0.0
      %1675 = vmatpush1.msra.mxu0 %v1462
      %1676 = vmatprep.subr.mxu0 0.0
      %1677 = vmatpush1.msra.mxu0 %v1464
      %1678 = vmatprep.subr.mxu0 0.0
      %1679 = vmatpush1.msra.mxu0 %v1466
      %1680 = vmatprep.subr.mxu0 0.0
      %1681 = vmatpush1.msra.mxu0 %v1468
      %1682 = vmatprep.subr.mxu0 0.0
      %1683 = vmatpush1.msra.mxu0 %v1470
      %1684 = vmatprep.subr.mxu0 0.0
      %1685 = vmatpush1.msra.mxu0 %v1472
      %1686 = vmatprep.subr.mxu0 0.0
      %1687 = vmatpush1.msra.mxu0 %v1474
      %1688 = vmatprep.subr.mxu0 0.0
      %1689 = vmatpush1.msra.mxu0 %v1476
      %1690 = vmatprep.mubr.f32.mxu0 %v1610
      %1691 = vmatmul.mubr.f32.gmra.mrb[0].mxu0 %v1578
      %v1692 = vpop.f32.mrb[0].mxu0
      %v1693 = vadd.f32 0.0, %v1692
      %v1694 = vpop.f32.mrb[0].mxu0
      %1695 = vmatprep.mubr.f32.mxu0 %v1611
      %1696 = vmatmul.mubr.f32.gmra.mrb[0].mxu0 %v1579
      %v1697 = vpop.f32.mrb[0].mxu0
      %v1698 = vadd.f32 0.0, %v1697
      %v1699 = vpop.f32.mrb[0].mxu0
      %1700 = vdwg.mxu0
      %v1701 = vmul.f32 %v172, %v1544
      %v1702 = vmul.f32 %v173, %v1549
      %v1703 = vmul.f32 %v174, %v1554
      %v1704 = vmul.f32 %v175, %v1559
      %v1706 = vsel %vm594, %v172, 0
      %v1709 = vsel %vm594, %v173, 0
      %v1712 = vsel %vm594, %v174, 0
      %v1715 = vsel %vm594, %v175, 0
      %1717 = vmatprep.subr.mxu0 0.0
      %1718 = vmatpush1.msra.mxu0 %v1693
      %1719 = vmatprep.subr.mxu0 0.0
      %1720 = vmatpush1.msra.mxu0 %v1698
      %1721 = vmatprep.subr.mxu0 0.0
      %1722 = vmatpush1.msra.mxu0 0.0
      %1723 = vmatprep.subr.mxu0 0.0
      %1724 = vmatpush1.msra.mxu0 0.0
      %1725 = vmatprep.subr.mxu0 0.0
      %1726 = vmatpush1.msra.mxu0 0.0
      %1727 = vmatprep.subr.mxu0 0.0
      %1728 = vmatpush1.msra.mxu0 0.0
      %1729 = vmatprep.subr.mxu0 0.0
      %1730 = vmatpush1.msra.mxu0 0.0
      %1731 = vmatprep.subr.mxu0 0.0
      %1732 = vmatpush1.msra.mxu0 0.0
      %1733 = vmatprep.subr.mxu0 0.0
      %1734 = vmatpush1.msra.mxu0 0.0
      %1735 = vmatprep.subr.mxu0 0.0
      %1736 = vmatpush1.msra.mxu0 0.0
      %1737 = vmatprep.subr.mxu0 0.0
      %1738 = vmatpush1.msra.mxu0 0.0
      %1739 = vmatprep.subr.mxu0 0.0
      %1740 = vmatpush1.msra.mxu0 0.0
      %1741 = vmatprep.subr.mxu0 0.0
      %1742 = vmatpush1.msra.mxu0 0.0
      %1743 = vmatprep.subr.mxu0 0.0
      %1744 = vmatpush1.msra.mxu0 0.0
      %1745 = vmatprep.subr.mxu0 0.0
      %1746 = vmatpush1.msra.mxu0 0.0
      %1747 = vmatprep.subr.mxu0 0.0
      %1748 = vmatpush1.msra.mxu0 0.0
      %1749 = vmatprep.subr.mxu0 0.0
      %1750 = vmatpush1.msra.mxu0 0.0
      %1751 = vmatprep.subr.mxu0 0.0
      %1752 = vmatpush1.msra.mxu0 0.0
      %1753 = vmatprep.subr.mxu0 0.0
      %1754 = vmatpush1.msra.mxu0 0.0
      %1755 = vmatprep.subr.mxu0 0.0
      %1756 = vmatpush1.msra.mxu0 0.0
      %1757 = vmatprep.subr.mxu0 0.0
      %1758 = vmatpush1.msra.mxu0 0.0
      %1759 = vmatprep.subr.mxu0 0.0
      %1760 = vmatpush1.msra.mxu0 0.0
      %1761 = vmatprep.subr.mxu0 0.0
      %1762 = vmatpush1.msra.mxu0 0.0
      %1763 = vmatprep.subr.mxu0 0.0
      %1764 = vmatpush1.msra.mxu0 0.0
      %1765 = vmatprep.subr.mxu0 0.0
      %1766 = vmatpush1.msra.mxu0 0.0
      %1767 = vmatprep.subr.mxu0 0.0
      %1768 = vmatpush1.msra.mxu0 0.0
      %1769 = vmatprep.subr.mxu0 0.0
      %1770 = vmatpush1.msra.mxu0 0.0
      %1771 = vmatprep.subr.mxu0 0.0
      %1772 = vmatpush1.msra.mxu0 0.0
      %1773 = vmatprep.subr.mxu0 0.0
      %1774 = vmatpush1.msra.mxu0 0.0
      %1775 = vmatprep.subr.mxu0 0.0
      %1776 = vmatpush1.msra.mxu0 0.0
      %1777 = vmatprep.subr.mxu0 0.0
      %1778 = vmatpush1.msra.mxu0 0.0
      %1779 = vmatprep.subr.mxu0 0.0
      %1780 = vmatpush1.msra.mxu0 0.0
      %1781 = vmatprep.mubr.f32.mxu0 0.0
      %1782 = vmatmul.mubr.f32.gmra.mrb[0].mxu0 %v1706
      %v1783 = vpop.f32.mrb[0].mxu0
      %v1784 = vadd.f32 1e-06, %v1783
      %v1785 = vpop.f32.mrb[0].mxu0
      %1786 = vmatprep.mubr.f32.mxu0 0.0
      %1787 = vmatmul.mubr.f32.gmra.mrb[0].mxu0 %v1709
      %v1788 = vpop.f32.mrb[0].mxu0
      %v1789 = vadd.f32 1e-06, %v1788
      %v1790 = vpop.f32.mrb[0].mxu0
      %1791 = vmatprep.mubr.f32.mxu0 0.0
      %1792 = vmatmul.mubr.f32.gmra.mrb[0].mxu0 %v1712
      %v1793 = vpop.f32.mrb[0].mxu0
      %v1794 = vadd.f32 1e-06, %v1793
      %v1795 = vpop.f32.mrb[0].mxu0
      %1796 = vmatprep.mubr.f32.mxu0 0.0
      %1797 = vmatmul.mubr.f32.gmra.mrb[0].mxu0 %v1715
      %v1798 = vpop.f32.mrb[0].mxu0
      %v1799 = vadd.f32 1e-06, %v1798
      %v1800 = vpop.f32.mrb[0].mxu0
      %1801 = vdwg.mxu0
      %v1802 = vrcp.pop %v1784
      %v1803 = vmul.f32 %v1701, %v1802
      %v1804 = vrcp.pop %v1789
      %v1805 = vmul.f32 %v1702, %v1804
      %v1806 = vrcp.pop %v1794
      %v1807 = vmul.f32 %v1703, %v1806
      %v1808 = vrcp.pop %v1799
      %v1809 = vmul.f32 %v1704, %v1808
      %1810 = vmatprep.subr.mxu0 0.0
      %1811 = vmatpush1.msra.mxu0 %v1803
      %1812 = vmatprep.subr.mxu0 0.0
      %1813 = vmatpush1.msra.mxu0 %v1805
      %1814 = vmatprep.subr.mxu0 0.0
      %1815 = vmatpush1.msra.mxu0 %v1807
      %1816 = vmatprep.subr.mxu0 0.0
      %1817 = vmatpush1.msra.mxu0 %v1809
      %1818 = vmatprep.subr.mxu0 0.0
      %1819 = vmatpush1.msra.mxu0 0.0
      %1820 = vmatprep.subr.mxu0 0.0
      %1821 = vmatpush1.msra.mxu0 0.0
      %1822 = vmatprep.subr.mxu0 0.0
      %1823 = vmatpush1.msra.mxu0 0.0
      %1824 = vmatprep.subr.mxu0 0.0
      %1825 = vmatpush1.msra.mxu0 0.0
      %1826 = vmatprep.subr.mxu0 0.0
      %1827 = vmatpush1.msra.mxu0 0.0
      %1828 = vmatprep.subr.mxu0 0.0
      %1829 = vmatpush1.msra.mxu0 0.0
      %1830 = vmatprep.subr.mxu0 0.0
      %1831 = vmatpush1.msra.mxu0 0.0
      %1832 = vmatprep.subr.mxu0 0.0
      %1833 = vmatpush1.msra.mxu0 0.0
      %1834 = vmatprep.subr.mxu0 0.0
      %1835 = vmatpush1.msra.mxu0 0.0
      %1836 = vmatprep.subr.mxu0 0.0
      %1837 = vmatpush1.msra.mxu0 0.0
      %1838 = vmatprep.subr.mxu0 0.0
      %1839 = vmatpush1.msra.mxu0 0.0
      %1840 = vmatprep.subr.mxu0 0.0
      %1841 = vmatpush1.msra.mxu0 0.0
      %1842 = vmatprep.subr.mxu0 0.0
      %1843 = vmatpush1.msra.mxu0 0.0
      %1844 = vmatprep.subr.mxu0 0.0
      %1845 = vmatpush1.msra.mxu0 0.0
      %1846 = vmatprep.subr.mxu0 0.0
      %1847 = vmatpush1.msra.mxu0 0.0
      %1848 = vmatprep.subr.mxu0 0.0
      %1849 = vmatpush1.msra.mxu0 0.0
      %1850 = vmatprep.subr.mxu0 0.0
      %1851 = vmatpush1.msra.mxu0 0.0
      %1852 = vmatprep.subr.mxu0 0.0
      %1853 = vmatpush1.msra.mxu0 0.0
      %1854 = vmatprep.subr.mxu0 0.0
      %1855 = vmatpush1.msra.mxu0 0.0
      %1856 = vmatprep.subr.mxu0 0.0
      %1857 = vmatpush1.msra.mxu0 0.0
      %1858 = vmatprep.subr.mxu0 0.0
      %1859 = vmatpush1.msra.mxu0 0.0
      %1860 = vmatprep.subr.mxu0 0.0
      %1861 = vmatpush1.msra.mxu0 0.0
      %1862 = vmatprep.subr.mxu0 0.0
      %1863 = vmatpush1.msra.mxu0 0.0
      %1864 = vmatprep.subr.mxu0 0.0
      %1865 = vmatpush1.msra.mxu0 0.0
      %1866 = vmatprep.subr.mxu0 0.0
      %1867 = vmatpush1.msra.mxu0 0.0
      %1868 = vmatprep.subr.mxu0 0.0
      %1869 = vmatpush1.msra.mxu0 0.0
      %1870 = vmatprep.subr.mxu0 0.0
      %1871 = vmatpush1.msra.mxu0 0.0
      %1872 = vmatprep.subr.mxu0 0.0
      %1873 = vmatpush1.msra.mxu0 0.0
      %1874 = vmatprep.mubr.f32.mxu0 0.0
      %1875 = vmatmul.mubr.f32.gmra.mrb[0].mxu0 %v242
      %v1876 = vpop.f32.mrb[0].mxu0
      %v1877 = vadd.f32 0.0, %v1876
      %v1878 = vpop.f32.mrb[0].mxu0
      %1879 = vmatprep.mubr.f32.mxu0 0.0
      %1880 = vmatmul.mubr.f32.gmra.mrb[0].mxu0 %v245
      %v1881 = vpop.f32.mrb[0].mxu0
      %v1882 = vadd.f32 0.0, %v1881
      %v1883 = vpop.f32.mrb[0].mxu0
      %1884 = vmatprep.mubr.f32.mxu0 0.0
      %1885 = vmatmul.mubr.f32.gmra.mrb[0].mxu0 %v248
      %v1886 = vpop.f32.mrb[0].mxu0
      %v1887 = vadd.f32 0.0, %v1886
      %v1888 = vpop.f32.mrb[0].mxu0
      %1889 = vmatprep.mubr.f32.mxu0 0.0
      %1890 = vmatmul.mubr.f32.gmra.mrb[0].mxu0 %v251
      %v1891 = vpop.f32.mrb[0].mxu0
      %v1892 = vadd.f32 0.0, %v1891
      %v1893 = vpop.f32.mrb[0].mxu0
      %1894 = vmatprep.mubr.f32.mxu0 0.0
      %1895 = vmatmul.mubr.f32.gmra.mrb[0].mxu0 %v254
      %v1896 = vpop.f32.mrb[0].mxu0
      %v1897 = vadd.f32 0.0, %v1896
      %v1898 = vpop.f32.mrb[0].mxu0
      %1899 = vmatprep.mubr.f32.mxu0 0.0
      %1900 = vmatmul.mubr.f32.gmra.mrb[0].mxu0 %v257
      %v1901 = vpop.f32.mrb[0].mxu0
      %v1902 = vadd.f32 0.0, %v1901
      %v1903 = vpop.f32.mrb[0].mxu0
      %1904 = vmatprep.mubr.f32.mxu0 0.0
      %1905 = vmatmul.mubr.f32.gmra.mrb[0].mxu0 %v260
      %v1906 = vpop.f32.mrb[0].mxu0
      %v1907 = vadd.f32 0.0, %v1906
      %v1908 = vpop.f32.mrb[0].mxu0
      %1909 = vmatprep.mubr.f32.mxu0 0.0
      %1910 = vmatmul.mubr.f32.gmra.mrb[0].mxu0 %v263
      %v1911 = vpop.f32.mrb[0].mxu0
      %v1912 = vadd.f32 0.0, %v1911
      %v1913 = vpop.f32.mrb[0].mxu0
      %1914 = vmatprep.mubr.f32.mxu0 0.0
      %1915 = vmatmul.mubr.f32.gmra.mrb[0].mxu0 %v266
      %v1916 = vpop.f32.mrb[0].mxu0
      %v1917 = vadd.f32 0.0, %v1916
      %v1918 = vpop.f32.mrb[0].mxu0
      %1919 = vmatprep.mubr.f32.mxu0 0.0
      %1920 = vmatmul.mubr.f32.gmra.mrb[0].mxu0 %v269
      %v1921 = vpop.f32.mrb[0].mxu0
      %v1922 = vadd.f32 0.0, %v1921
      %v1923 = vpop.f32.mrb[0].mxu0
      %1924 = vmatprep.mubr.f32.mxu0 0.0
      %1925 = vmatmul.mubr.f32.gmra.mrb[0].mxu0 %v272
      %v1926 = vpop.f32.mrb[0].mxu0
      %v1927 = vadd.f32 0.0, %v1926
      %v1928 = vpop.f32.mrb[0].mxu0
      %1929 = vmatprep.mubr.f32.mxu0 0.0
      %1930 = vmatmul.mubr.f32.gmra.mrb[0].mxu0 %v275
      %v1931 = vpop.f32.mrb[0].mxu0
      %v1932 = vadd.f32 0.0, %v1931
      %v1933 = vpop.f32.mrb[0].mxu0
      %1934 = vmatprep.mubr.f32.mxu0 0.0
      %1935 = vmatmul.mubr.f32.gmra.mrb[0].mxu0 %v278
      %v1936 = vpop.f32.mrb[0].mxu0
      %v1937 = vadd.f32 0.0, %v1936
      %v1938 = vpop.f32.mrb[0].mxu0
      %1939 = vmatprep.mubr.f32.mxu0 0.0
      %1940 = vmatmul.mubr.f32.gmra.mrb[0].mxu0 %v281
      %v1941 = vpop.f32.mrb[0].mxu0
      %v1942 = vadd.f32 0.0, %v1941
      %v1943 = vpop.f32.mrb[0].mxu0
      %1944 = vmatprep.mubr.f32.mxu0 0.0
      %1945 = vmatmul.mubr.f32.gmra.mrb[0].mxu0 %v284
      %v1946 = vpop.f32.mrb[0].mxu0
      %v1947 = vadd.f32 0.0, %v1946
      %v1948 = vpop.f32.mrb[0].mxu0
      %1949 = vmatprep.mubr.f32.mxu0 0.0
      %1950 = vmatmul.mubr.f32.gmra.mrb[0].mxu0 %v287
      %v1951 = vpop.f32.mrb[0].mxu0
      %v1952 = vadd.f32 0.0, %v1951
      %v1953 = vpop.f32.mrb[0].mxu0
      %1954 = vmatprep.mubr.f32.mxu0 0.0
      %1955 = vmatmul.mubr.f32.gmra.mrb[0].mxu0 %v290
      %v1956 = vpop.f32.mrb[0].mxu0
      %v1957 = vadd.f32 0.0, %v1956
      %v1958 = vpop.f32.mrb[0].mxu0
      %1959 = vmatprep.mubr.f32.mxu0 0.0
      %1960 = vmatmul.mubr.f32.gmra.mrb[0].mxu0 %v293
      %v1961 = vpop.f32.mrb[0].mxu0
      %v1962 = vadd.f32 0.0, %v1961
      %v1963 = vpop.f32.mrb[0].mxu0
      %1964 = vmatprep.mubr.f32.mxu0 0.0
      %1965 = vmatmul.mubr.f32.gmra.mrb[0].mxu0 %v296
      %v1966 = vpop.f32.mrb[0].mxu0
      %v1967 = vadd.f32 0.0, %v1966
      %v1968 = vpop.f32.mrb[0].mxu0
      %1969 = vmatprep.mubr.f32.mxu0 0.0
      %1970 = vmatmul.mubr.f32.gmra.mrb[0].mxu0 %v299
      %v1971 = vpop.f32.mrb[0].mxu0
      %v1972 = vadd.f32 0.0, %v1971
      %v1973 = vpop.f32.mrb[0].mxu0
      %1974 = vmatprep.mubr.f32.mxu0 0.0
      %1975 = vmatmul.mubr.f32.gmra.mrb[0].mxu0 %v302
      %v1976 = vpop.f32.mrb[0].mxu0
      %v1977 = vadd.f32 0.0, %v1976
      %v1978 = vpop.f32.mrb[0].mxu0
      %1979 = vmatprep.mubr.f32.mxu0 0.0
      %1980 = vmatmul.mubr.f32.gmra.mrb[0].mxu0 %v305
      %v1981 = vpop.f32.mrb[0].mxu0
      %v1982 = vadd.f32 0.0, %v1981
      %v1983 = vpop.f32.mrb[0].mxu0
      %1984 = vmatprep.mubr.f32.mxu0 0.0
      %1985 = vmatmul.mubr.f32.gmra.mrb[0].mxu0 %v308
      %v1986 = vpop.f32.mrb[0].mxu0
      %v1987 = vadd.f32 0.0, %v1986
      %v1988 = vpop.f32.mrb[0].mxu0
      %1989 = vmatprep.mubr.f32.mxu0 0.0
      %1990 = vmatmul.mubr.f32.gmra.mrb[0].mxu0 %v311
      %v1991 = vpop.f32.mrb[0].mxu0
      %v1992 = vadd.f32 0.0, %v1991
      %v1993 = vpop.f32.mrb[0].mxu0
      %1994 = vmatprep.mubr.f32.mxu0 0.0
      %1995 = vmatmul.mubr.f32.gmra.mrb[0].mxu0 %v314
      %v1996 = vpop.f32.mrb[0].mxu0
      %v1997 = vadd.f32 0.0, %v1996
      %v1998 = vpop.f32.mrb[0].mxu0
      %1999 = vmatprep.mubr.f32.mxu0 0.0
      %2000 = vmatmul.mubr.f32.gmra.mrb[0].mxu0 %v317
      %v2001 = vpop.f32.mrb[0].mxu0
      %v2002 = vadd.f32 0.0, %v2001
      %v2003 = vpop.f32.mrb[0].mxu0
      %2004 = vmatprep.mubr.f32.mxu0 0.0
      %2005 = vmatmul.mubr.f32.gmra.mrb[0].mxu0 %v320
      %v2006 = vpop.f32.mrb[0].mxu0
      %v2007 = vadd.f32 0.0, %v2006
      %v2008 = vpop.f32.mrb[0].mxu0
      %2009 = vmatprep.mubr.f32.mxu0 0.0
      %2010 = vmatmul.mubr.f32.gmra.mrb[0].mxu0 %v323
      %v2011 = vpop.f32.mrb[0].mxu0
      %v2012 = vadd.f32 0.0, %v2011
      %v2013 = vpop.f32.mrb[0].mxu0
      %2014 = vmatprep.mubr.f32.mxu0 0.0
      %2015 = vmatmul.mubr.f32.gmra.mrb[0].mxu0 %v326
      %v2016 = vpop.f32.mrb[0].mxu0
      %v2017 = vadd.f32 0.0, %v2016
      %v2018 = vpop.f32.mrb[0].mxu0
      %2019 = vmatprep.mubr.f32.mxu0 0.0
      %2020 = vmatmul.mubr.f32.gmra.mrb[0].mxu0 %v329
      %v2021 = vpop.f32.mrb[0].mxu0
      %v2022 = vadd.f32 0.0, %v2021
      %v2023 = vpop.f32.mrb[0].mxu0
      %2024 = vmatprep.mubr.f32.mxu0 0.0
      %2025 = vmatmul.mubr.f32.gmra.mrb[0].mxu0 %v332
      %v2026 = vpop.f32.mrb[0].mxu0
      %v2027 = vadd.f32 0.0, %v2026
      %v2028 = vpop.f32.mrb[0].mxu0
      %2029 = vmatprep.mubr.f32.mxu0 0.0
      %2030 = vmatmul.mubr.f32.gmra.mrb[0].mxu0 %v335
      %v2031 = vpop.f32.mrb[0].mxu0
      %v2032 = vadd.f32 0.0, %v2031
      %v2033 = vpop.f32.mrb[0].mxu0
      %2034 = vdwg.mxu0
      %2035 = vxpose.xlu0.b32.start [1/16] %v1803, 128
      %2036 = vxpose.xlu0.b32.cont [2/16] %v1805, 128
      %2037 = vxpose.xlu0.b32.cont [3/16] %v1807, 128
      %2038 = vxpose.xlu0.b32.cont [4/16] %v1809, 128
      %2039 = vxpose.xlu0.b32.cont [5/16] 0.0, 128
      %2040 = vxpose.xlu0.b32.cont [6/16] 0.0, 128
      %2041 = vxpose.xlu0.b32.cont [7/16] 0.0, 128
      %2042 = vxpose.xlu0.b32.cont [8/16] 0.0, 128
      %2043 = vxpose.xlu0.b32.cont [9/16] 0.0, 128
      %2044 = vxpose.xlu0.b32.cont [10/16] 0.0, 128
      %2045 = vxpose.xlu0.b32.cont [11/16] 0.0, 128
      %2046 = vxpose.xlu0.b32.cont [12/16] 0.0, 128
      %2047 = vxpose.xlu0.b32.cont [13/16] 0.0, 128
      %2048 = vxpose.xlu0.b32.cont [14/16] 0.0, 128
      %2049 = vxpose.xlu0.b32.cont [15/16] 0.0, 128
      %2050 = vxpose.xlu0.b32.end [16/16] 0.0, 128
      %v2051 = vpop.trf.xlu0
      %v2052 = vpop.trf.xlu0
      %v2053 = vpop.trf.xlu0
      %v2054 = vpop.trf.xlu0
      %v2055 = vpop.trf.xlu0
      %v2056 = vpop.trf.xlu0
      %v2057 = vpop.trf.xlu0
      %v2058 = vpop.trf.xlu0
      %v2059 = vpop.trf.xlu0
      %v2060 = vpop.trf.xlu0
      %v2061 = vpop.trf.xlu0
      %v2062 = vpop.trf.xlu0
      %v2063 = vpop.trf.xlu0
      %v2064 = vpop.trf.xlu0
      %v2065 = vpop.trf.xlu0
      %v2066 = vpop.trf.xlu0
      %v2068 = vsel %vm240, %v2051, 0
      %v2071 = vsel %vm240, %v2052, 0
      %2073 = vmatprep.subr.mxu0 0.0
      %2074 = vmatpush1.msra.mxu0 %v1803
      %2075 = vmatprep.subr.mxu0 0.0
      %2076 = vmatpush1.msra.mxu0 %v1805
      %2077 = vmatprep.subr.mxu0 0.0
      %2078 = vmatpush1.msra.mxu0 %v1807
      %2079 = vmatprep.subr.mxu0 0.0
      %2080 = vmatpush1.msra.mxu0 %v1809
      %2081 = vmatprep.subr.mxu0 0.0
      %2082 = vmatpush1.msra.mxu0 0.0
      %2083 = vmatprep.subr.mxu0 0.0
      %2084 = vmatpush1.msra.mxu0 0.0
      %2085 = vmatprep.subr.mxu0 0.0
      %2086 = vmatpush1.msra.mxu0 0.0
      %2087 = vmatprep.subr.mxu0 0.0
      %2088 = vmatpush1.msra.mxu0 0.0
      %2089 = vmatprep.subr.mxu0 0.0
      %2090 = vmatpush1.msra.mxu0 0.0
      %2091 = vmatprep.subr.mxu0 0.0
      %2092 = vmatpush1.msra.mxu0 0.0
      %2093 = vmatprep.subr.mxu0 0.0
      %2094 = vmatpush1.msra.mxu0 0.0
      %2095 = vmatprep.subr.mxu0 0.0
      %2096 = vmatpush1.msra.mxu0 0.0
      %2097 = vmatprep.subr.mxu0 0.0
      %2098 = vmatpush1.msra.mxu0 0.0
      %2099 = vmatprep.subr.mxu0 0.0
      %2100 = vmatpush1.msra.mxu0 0.0
      %2101 = vmatprep.subr.mxu0 0.0
      %2102 = vmatpush1.msra.mxu0 0.0
      %2103 = vmatprep.subr.mxu0 0.0
      %2104 = vmatpush1.msra.mxu0 0.0
      %2105 = vmatprep.subr.mxu0 0.0
      %2106 = vmatpush1.msra.mxu0 0.0
      %2107 = vmatprep.subr.mxu0 0.0
      %2108 = vmatpush1.msra.mxu0 0.0
      %2109 = vmatprep.subr.mxu0 0.0
      %2110 = vmatpush1.msra.mxu0 0.0
      %2111 = vmatprep.subr.mxu0 0.0
      %2112 = vmatpush1.msra.mxu0 0.0
      %2113 = vmatprep.subr.mxu0 0.0
      %2114 = vmatpush1.msra.mxu0 0.0
      %2115 = vmatprep.subr.mxu0 0.0
      %2116 = vmatpush1.msra.mxu0 0.0
      %2117 = vmatprep.subr.mxu0 0.0
      %2118 = vmatpush1.msra.mxu0 0.0
      %2119 = vmatprep.subr.mxu0 0.0
      %2120 = vmatpush1.msra.mxu0 0.0
      %2121 = vmatprep.subr.mxu0 0.0
      %2122 = vmatpush1.msra.mxu0 0.0
      %2123 = vmatprep.subr.mxu0 0.0
      %2124 = vmatpush1.msra.mxu0 0.0
      %2125 = vmatprep.subr.mxu0 0.0
      %2126 = vmatpush1.msra.mxu0 0.0
      %2127 = vmatprep.subr.mxu0 0.0
      %2128 = vmatpush1.msra.mxu0 0.0
      %2129 = vmatprep.subr.mxu0 0.0
      %2130 = vmatpush1.msra.mxu0 0.0
      %2131 = vmatprep.subr.mxu0 0.0
      %2132 = vmatpush1.msra.mxu0 0.0
      %2133 = vmatprep.subr.mxu0 0.0
      %2134 = vmatpush1.msra.mxu0 0.0
      %2135 = vmatprep.subr.mxu0 0.0
      %2136 = vmatpush1.msra.mxu0 0.0
      %2137 = vmatprep.mubr.f32.mxu0 0.0
      %2138 = vmatmul.mubr.f32.gmra.mrb[0].mxu0 %v2068
      %v2139 = vpop.f32.mrb[0].mxu0
      %v2140 = vadd.f32 0.0, %v2139
      %v2141 = vpop.f32.mrb[0].mxu0
      %2142 = vmatprep.mubr.f32.mxu0 0.0
      %2143 = vmatmul.mubr.f32.gmra.mrb[0].mxu0 %v2071
      %v2144 = vpop.f32.mrb[0].mxu0
      %v2145 = vadd.f32 0.0, %v2144
      %v2146 = vpop.f32.mrb[0].mxu0
      %2147 = vdwg.mxu0
      %v2148 = vmul.f32 %v1414, %v1877
      %v2149 = vmul.f32 %v1416, %v1882
      %v2150 = vmul.f32 %v1418, %v1887
      %v2151 = vmul.f32 %v1420, %v1892
      %v2152 = vmul.f32 %v1422, %v1897
      %v2153 = vmul.f32 %v1424, %v1902
      %v2154 = vmul.f32 %v1426, %v1907
      %v2155 = vmul.f32 %v1428, %v1912
      %v2156 = vmul.f32 %v1430, %v1917
      %v2157 = vmul.f32 %v1432, %v1922
      %v2158 = vmul.f32 %v1434, %v1927
      %v2159 = vmul.f32 %v1436, %v1932
      %v2160 = vmul.f32 %v1438, %v1937
      %v2161 = vmul.f32 %v1440, %v1942
      %v2162 = vmul.f32 %v1442, %v1947
      %v2163 = vmul.f32 %v1444, %v1952
      %v2164 = vmul.f32 %v1446, %v1957
      %v2165 = vmul.f32 %v1448, %v1962
      %v2166 = vmul.f32 %v1450, %v1967
      %v2167 = vmul.f32 %v1452, %v1972
      %v2168 = vmul.f32 %v1454, %v1977
      %v2169 = vmul.f32 %v1456, %v1982
      %v2170 = vmul.f32 %v1458, %v1987
      %v2171 = vmul.f32 %v1460, %v1992
      %v2172 = vmul.f32 %v1462, %v1997
      %v2173 = vmul.f32 %v1464, %v2002
      %v2174 = vmul.f32 %v1466, %v2007
      %v2175 = vmul.f32 %v1468, %v2012
      %v2176 = vmul.f32 %v1470, %v2017
      %v2177 = vmul.f32 %v1472, %v2022
      %v2178 = vmul.f32 %v1474, %v2027
      %v2179 = vmul.f32 %v1476, %v2032
      %v2181 = vsel %vm594, %v1414, 0
      %v2184 = vsel %vm594, %v1416, 0
      %v2187 = vsel %vm594, %v1418, 0
      %v2190 = vsel %vm594, %v1420, 0
      %v2193 = vsel %vm594, %v1422, 0
      %v2196 = vsel %vm594, %v1424, 0
      %v2199 = vsel %vm594, %v1426, 0
      %v2202 = vsel %vm594, %v1428, 0
      %v2205 = vsel %vm594, %v1430, 0
      %v2208 = vsel %vm594, %v1432, 0
      %v2211 = vsel %vm594, %v1434, 0
      %v2214 = vsel %vm594, %v1436, 0
      %v2217 = vsel %vm594, %v1438, 0
      %v2220 = vsel %vm594, %v1440, 0
      %v2223 = vsel %vm594, %v1442, 0
      %v2226 = vsel %vm594, %v1444, 0
      %v2229 = vsel %vm594, %v1446, 0
      %v2232 = vsel %vm594, %v1448, 0
      %v2235 = vsel %vm594, %v1450, 0
      %v2238 = vsel %vm594, %v1452, 0
      %v2241 = vsel %vm594, %v1454, 0
      %v2244 = vsel %vm594, %v1456, 0
      %v2247 = vsel %vm594, %v1458, 0
      %v2250 = vsel %vm594, %v1460, 0
      %v2253 = vsel %vm594, %v1462, 0
      %v2256 = vsel %vm594, %v1464, 0
      %v2259 = vsel %vm594, %v1466, 0
      %v2262 = vsel %vm594, %v1468, 0
      %v2265 = vsel %vm594, %v1470, 0
      %v2268 = vsel %vm594, %v1472, 0
      %v2271 = vsel %vm594, %v1474, 0
      %v2274 = vsel %vm594, %v1476, 0
      %2276 = vmatprep.subr.mxu0 0.0
      %2277 = vmatpush1.msra.mxu0 %v2140
      %2278 = vmatprep.subr.mxu0 0.0
      %2279 = vmatpush1.msra.mxu0 %v2145
      %2280 = vmatprep.subr.mxu0 0.0
      %2281 = vmatpush1.msra.mxu0 0.0
      %2282 = vmatprep.subr.mxu0 0.0
      %2283 = vmatpush1.msra.mxu0 0.0
      %2284 = vmatprep.subr.mxu0 0.0
      %2285 = vmatpush1.msra.mxu0 0.0
      %2286 = vmatprep.subr.mxu0 0.0
      %2287 = vmatpush1.msra.mxu0 0.0
      %2288 = vmatprep.subr.mxu0 0.0
      %2289 = vmatpush1.msra.mxu0 0.0
      %2290 = vmatprep.subr.mxu0 0.0
      %2291 = vmatpush1.msra.mxu0 0.0
      %2292 = vmatprep.subr.mxu0 0.0
      %2293 = vmatpush1.msra.mxu0 0.0
      %2294 = vmatprep.subr.mxu0 0.0
      %2295 = vmatpush1.msra.mxu0 0.0
      %2296 = vmatprep.subr.mxu0 0.0
      %2297 = vmatpush1.msra.mxu0 0.0
      %2298 = vmatprep.subr.mxu0 0.0
      %2299 = vmatpush1.msra.mxu0 0.0
      %2300 = vmatprep.subr.mxu0 0.0
      %2301 = vmatpush1.msra.mxu0 0.0
      %2302 = vmatprep.subr.mxu0 0.0
      %2303 = vmatpush1.msra.mxu0 0.0
      %2304 = vmatprep.subr.mxu0 0.0
      %2305 = vmatpush1.msra.mxu0 0.0
      %2306 = vmatprep.subr.mxu0 0.0
      %2307 = vmatpush1.msra.mxu0 0.0
      %2308 = vmatprep.subr.mxu0 0.0
      %2309 = vmatpush1.msra.mxu0 0.0
      %2310 = vmatprep.subr.mxu0 0.0
      %2311 = vmatpush1.msra.mxu0 0.0
      %2312 = vmatprep.subr.mxu0 0.0
      %2313 = vmatpush1.msra.mxu0 0.0
      %2314 = vmatprep.subr.mxu0 0.0
      %2315 = vmatpush1.msra.mxu0 0.0
      %2316 = vmatprep.subr.mxu0 0.0
      %2317 = vmatpush1.msra.mxu0 0.0
      %2318 = vmatprep.subr.mxu0 0.0
      %2319 = vmatpush1.msra.mxu0 0.0
      %2320 = vmatprep.subr.mxu0 0.0
      %2321 = vmatpush1.msra.mxu0 0.0
      %2322 = vmatprep.subr.mxu0 0.0
      %2323 = vmatpush1.msra.mxu0 0.0
      %2324 = vmatprep.subr.mxu0 0.0
      %2325 = vmatpush1.msra.mxu0 0.0
      %2326 = vmatprep.subr.mxu0 0.0
      %2327 = vmatpush1.msra.mxu0 0.0
      %2328 = vmatprep.subr.mxu0 0.0
      %2329 = vmatpush1.msra.mxu0 0.0
      %2330 = vmatprep.subr.mxu0 0.0
      %2331 = vmatpush1.msra.mxu0 0.0
      %2332 = vmatprep.subr.mxu0 0.0
      %2333 = vmatpush1.msra.mxu0 0.0
      %2334 = vmatprep.subr.mxu0 0.0
      %2335 = vmatpush1.msra.mxu0 0.0
      %2336 = vmatprep.subr.mxu0 0.0
      %2337 = vmatpush1.msra.mxu0 0.0
      %2338 = vmatprep.subr.mxu0 0.0
      %2339 = vmatpush1.msra.mxu0 0.0
      %2340 = vmatprep.mubr.f32.mxu0 0.0
      %2341 = vmatmul.mubr.f32.gmra.mrb[0].mxu0 %v2181
      %v2342 = vpop.f32.mrb[0].mxu0
      %v2343 = vadd.f32 1e-06, %v2342
      %v2344 = vpop.f32.mrb[0].mxu0
      %2345 = vmatprep.mubr.f32.mxu0 0.0
      %2346 = vmatmul.mubr.f32.gmra.mrb[0].mxu0 %v2184
      %v2347 = vpop.f32.mrb[0].mxu0
      %v2348 = vadd.f32 1e-06, %v2347
      %v2349 = vpop.f32.mrb[0].mxu0
      %2350 = vmatprep.mubr.f32.mxu0 0.0
      %2351 = vmatmul.mubr.f32.gmra.mrb[0].mxu0 %v2187
      %v2352 = vpop.f32.mrb[0].mxu0
      %v2353 = vadd.f32 1e-06, %v2352
      %v2354 = vpop.f32.mrb[0].mxu0
      %2355 = vmatprep.mubr.f32.mxu0 0.0
      %2356 = vmatmul.mubr.f32.gmra.mrb[0].mxu0 %v2190
      %v2357 = vpop.f32.mrb[0].mxu0
      %v2358 = vadd.f32 1e-06, %v2357
      %v2359 = vpop.f32.mrb[0].mxu0
      %2360 = vmatprep.mubr.f32.mxu0 0.0
      %2361 = vmatmul.mubr.f32.gmra.mrb[0].mxu0 %v2193
      %v2362 = vpop.f32.mrb[0].mxu0
      %v2363 = vadd.f32 1e-06, %v2362
      %v2364 = vpop.f32.mrb[0].mxu0
      %2365 = vmatprep.mubr.f32.mxu0 0.0
      %2366 = vmatmul.mubr.f32.gmra.mrb[0].mxu0 %v2196
      %v2367 = vpop.f32.mrb[0].mxu0
      %v2368 = vadd.f32 1e-06, %v2367
      %v2369 = vpop.f32.mrb[0].mxu0
      %2370 = vmatprep.mubr.f32.mxu0 0.0
      %2371 = vmatmul.mubr.f32.gmra.mrb[0].mxu0 %v2199
      %v2372 = vpop.f32.mrb[0].mxu0
      %v2373 = vadd.f32 1e-06, %v2372
      %v2374 = vpop.f32.mrb[0].mxu0
      %2375 = vmatprep.mubr.f32.mxu0 0.0
      %2376 = vmatmul.mubr.f32.gmra.mrb[0].mxu0 %v2202
      %v2377 = vpop.f32.mrb[0].mxu0
      %v2378 = vadd.f32 1e-06, %v2377
      %v2379 = vpop.f32.mrb[0].mxu0
      %2380 = vmatprep.mubr.f32.mxu0 0.0
      %2381 = vmatmul.mubr.f32.gmra.mrb[0].mxu0 %v2205
      %v2382 = vpop.f32.mrb[0].mxu0
      %v2383 = vadd.f32 1e-06, %v2382
      %v2384 = vpop.f32.mrb[0].mxu0
      %2385 = vmatprep.mubr.f32.mxu0 0.0
      %2386 = vmatmul.mubr.f32.gmra.mrb[0].mxu0 %v2208
      %v2387 = vpop.f32.mrb[0].mxu0
      %v2388 = vadd.f32 1e-06, %v2387
      %v2389 = vpop.f32.mrb[0].mxu0
      %2390 = vmatprep.mubr.f32.mxu0 0.0
      %2391 = vmatmul.mubr.f32.gmra.mrb[0].mxu0 %v2211
      %v2392 = vpop.f32.mrb[0].mxu0
      %v2393 = vadd.f32 1e-06, %v2392
      %v2394 = vpop.f32.mrb[0].mxu0
      %2395 = vmatprep.mubr.f32.mxu0 0.0
      %2396 = vmatmul.mubr.f32.gmra.mrb[0].mxu0 %v2214
      %v2397 = vpop.f32.mrb[0].mxu0
      %v2398 = vadd.f32 1e-06, %v2397
      %v2399 = vpop.f32.mrb[0].mxu0
      %2400 = vmatprep.mubr.f32.mxu0 0.0
      %2401 = vmatmul.mubr.f32.gmra.mrb[0].mxu0 %v2217
      %v2402 = vpop.f32.mrb[0].mxu0
      %v2403 = vadd.f32 1e-06, %v2402
      %v2404 = vpop.f32.mrb[0].mxu0
      %2405 = vmatprep.mubr.f32.mxu0 0.0
      %2406 = vmatmul.mubr.f32.gmra.mrb[0].mxu0 %v2220
      %v2407 = vpop.f32.mrb[0].mxu0
      %v2408 = vadd.f32 1e-06, %v2407
      %v2409 = vpop.f32.mrb[0].mxu0
      %2410 = vmatprep.mubr.f32.mxu0 0.0
      %2411 = vmatmul.mubr.f32.gmra.mrb[0].mxu0 %v2223
      %v2412 = vpop.f32.mrb[0].mxu0
      %v2413 = vadd.f32 1e-06, %v2412
      %v2414 = vpop.f32.mrb[0].mxu0
      %2415 = vmatprep.mubr.f32.mxu0 0.0
      %2416 = vmatmul.mubr.f32.gmra.mrb[0].mxu0 %v2226
      %v2417 = vpop.f32.mrb[0].mxu0
      %v2418 = vadd.f32 1e-06, %v2417
      %v2419 = vpop.f32.mrb[0].mxu0
      %2420 = vmatprep.mubr.f32.mxu0 0.0
      %2421 = vmatmul.mubr.f32.gmra.mrb[0].mxu0 %v2229
      %v2422 = vpop.f32.mrb[0].mxu0
      %v2423 = vadd.f32 1e-06, %v2422
      %v2424 = vpop.f32.mrb[0].mxu0
      %2425 = vmatprep.mubr.f32.mxu0 0.0
      %2426 = vmatmul.mubr.f32.gmra.mrb[0].mxu0 %v2232
      %v2427 = vpop.f32.mrb[0].mxu0
      %v2428 = vadd.f32 1e-06, %v2427
      %v2429 = vpop.f32.mrb[0].mxu0
      %2430 = vmatprep.mubr.f32.mxu0 0.0
      %2431 = vmatmul.mubr.f32.gmra.mrb[0].mxu0 %v2235
      %v2432 = vpop.f32.mrb[0].mxu0
      %v2433 = vadd.f32 1e-06, %v2432
      %v2434 = vpop.f32.mrb[0].mxu0
      %2435 = vmatprep.mubr.f32.mxu0 0.0
      %2436 = vmatmul.mubr.f32.gmra.mrb[0].mxu0 %v2238
      %v2437 = vpop.f32.mrb[0].mxu0
      %v2438 = vadd.f32 1e-06, %v2437
      %v2439 = vpop.f32.mrb[0].mxu0
      %2440 = vmatprep.mubr.f32.mxu0 0.0
      %2441 = vmatmul.mubr.f32.gmra.mrb[0].mxu0 %v2241
      %v2442 = vpop.f32.mrb[0].mxu0
      %v2443 = vadd.f32 1e-06, %v2442
      %v2444 = vpop.f32.mrb[0].mxu0
      %2445 = vmatprep.mubr.f32.mxu0 0.0
      %2446 = vmatmul.mubr.f32.gmra.mrb[0].mxu0 %v2244
      %v2447 = vpop.f32.mrb[0].mxu0
      %v2448 = vadd.f32 1e-06, %v2447
      %v2449 = vpop.f32.mrb[0].mxu0
      %2450 = vmatprep.mubr.f32.mxu0 0.0
      %2451 = vmatmul.mubr.f32.gmra.mrb[0].mxu0 %v2247
      %v2452 = vpop.f32.mrb[0].mxu0
      %v2453 = vadd.f32 1e-06, %v2452
      %v2454 = vpop.f32.mrb[0].mxu0
      %2455 = vmatprep.mubr.f32.mxu0 0.0
      %2456 = vmatmul.mubr.f32.gmra.mrb[0].mxu0 %v2250
      %v2457 = vpop.f32.mrb[0].mxu0
      %v2458 = vadd.f32 1e-06, %v2457
      %v2459 = vpop.f32.mrb[0].mxu0
      %2460 = vmatprep.mubr.f32.mxu0 0.0
      %2461 = vmatmul.mubr.f32.gmra.mrb[0].mxu0 %v2253
      %v2462 = vpop.f32.mrb[0].mxu0
      %v2463 = vadd.f32 1e-06, %v2462
      %v2464 = vpop.f32.mrb[0].mxu0
      %2465 = vmatprep.mubr.f32.mxu0 0.0
      %2466 = vmatmul.mubr.f32.gmra.mrb[0].mxu0 %v2256
      %v2467 = vpop.f32.mrb[0].mxu0
      %v2468 = vadd.f32 1e-06, %v2467
      %v2469 = vpop.f32.mrb[0].mxu0
      %2470 = vmatprep.mubr.f32.mxu0 0.0
      %2471 = vmatmul.mubr.f32.gmra.mrb[0].mxu0 %v2259
      %v2472 = vpop.f32.mrb[0].mxu0
      %v2473 = vadd.f32 1e-06, %v2472
      %v2474 = vpop.f32.mrb[0].mxu0
      %2475 = vmatprep.mubr.f32.mxu0 0.0
      %2476 = vmatmul.mubr.f32.gmra.mrb[0].mxu0 %v2262
      %v2477 = vpop.f32.mrb[0].mxu0
      %v2478 = vadd.f32 1e-06, %v2477
      %v2479 = vpop.f32.mrb[0].mxu0
      %2480 = vmatprep.mubr.f32.mxu0 0.0
      %2481 = vmatmul.mubr.f32.gmra.mrb[0].mxu0 %v2265
      %v2482 = vpop.f32.mrb[0].mxu0
      %v2483 = vadd.f32 1e-06, %v2482
      %v2484 = vpop.f32.mrb[0].mxu0
      %2485 = vmatprep.mubr.f32.mxu0 0.0
      %2486 = vmatmul.mubr.f32.gmra.mrb[0].mxu0 %v2268
      %v2487 = vpop.f32.mrb[0].mxu0
      %v2488 = vadd.f32 1e-06, %v2487
      %v2489 = vpop.f32.mrb[0].mxu0
      %2490 = vmatprep.mubr.f32.mxu0 0.0
      %2491 = vmatmul.mubr.f32.gmra.mrb[0].mxu0 %v2271
      %v2492 = vpop.f32.mrb[0].mxu0
      %v2493 = vadd.f32 1e-06, %v2492
      %v2494 = vpop.f32.mrb[0].mxu0
      %2495 = vmatprep.mubr.f32.mxu0 0.0
      %2496 = vmatmul.mubr.f32.gmra.mrb[0].mxu0 %v2274
      %v2497 = vpop.f32.mrb[0].mxu0
      %v2498 = vadd.f32 1e-06, %v2497
      %v2499 = vpop.f32.mrb[0].mxu0
      %2500 = vdwg.mxu0
      %v2501 = vrcp.pop %v2343
      %v2502 = vmul.f32 %v2148, %v2501
      %v2503 = vrcp.pop %v2348
      %v2504 = vmul.f32 %v2149, %v2503
      %v2505 = vrcp.pop %v2353
      %v2506 = vmul.f32 %v2150, %v2505
      %v2507 = vrcp.pop %v2358
      %v2508 = vmul.f32 %v2151, %v2507
      %v2509 = vrcp.pop %v2363
      %v2510 = vmul.f32 %v2152, %v2509
      %v2511 = vrcp.pop %v2368
      %v2512 = vmul.f32 %v2153, %v2511
      %v2513 = vrcp.pop %v2373
      %v2514 = vmul.f32 %v2154, %v2513
      %v2515 = vrcp.pop %v2378
      %v2516 = vmul.f32 %v2155, %v2515
      %v2517 = vrcp.pop %v2383
      %v2518 = vmul.f32 %v2156, %v2517
      %v2519 = vrcp.pop %v2388
      %v2520 = vmul.f32 %v2157, %v2519
      %v2521 = vrcp.pop %v2393
      %v2522 = vmul.f32 %v2158, %v2521
      %v2523 = vrcp.pop %v2398
      %v2524 = vmul.f32 %v2159, %v2523
      %v2525 = vrcp.pop %v2403
      %v2526 = vmul.f32 %v2160, %v2525
      %v2527 = vrcp.pop %v2408
      %v2528 = vmul.f32 %v2161, %v2527
      %v2529 = vrcp.pop %v2413
      %v2530 = vmul.f32 %v2162, %v2529
      %v2531 = vrcp.pop %v2418
      %v2532 = vmul.f32 %v2163, %v2531
      %v2533 = vrcp.pop %v2423
      %v2534 = vmul.f32 %v2164, %v2533
      %v2535 = vrcp.pop %v2428
      %v2536 = vmul.f32 %v2165, %v2535
      %v2537 = vrcp.pop %v2433
      %v2538 = vmul.f32 %v2166, %v2537
      %v2539 = vrcp.pop %v2438
      %v2540 = vmul.f32 %v2167, %v2539
      %v2541 = vrcp.pop %v2443
      %v2542 = vmul.f32 %v2168, %v2541
      %v2543 = vrcp.pop %v2448
      %v2544 = vmul.f32 %v2169, %v2543
      %v2545 = vrcp.pop %v2453
      %v2546 = vmul.f32 %v2170, %v2545
      %v2547 = vrcp.pop %v2458
      %v2548 = vmul.f32 %v2171, %v2547
      %v2549 = vrcp.pop %v2463
      %v2550 = vmul.f32 %v2172, %v2549
      %v2551 = vrcp.pop %v2468
      %v2552 = vmul.f32 %v2173, %v2551
      %v2553 = vrcp.pop %v2473
      %v2554 = vmul.f32 %v2174, %v2553
      %v2555 = vrcp.pop %v2478
      %v2556 = vmul.f32 %v2175, %v2555
      %v2557 = vrcp.pop %v2483
      %v2558 = vmul.f32 %v2176, %v2557
      %v2559 = vrcp.pop %v2488
      %v2560 = vmul.f32 %v2177, %v2559
      %v2561 = vrcp.pop %v2493
      %v2562 = vmul.f32 %v2178, %v2561
      %v2563 = vrcp.pop %v2498
      %v2564 = vmul.f32 %v2179, %v2563
      %2565 = vmatprep.subr.mxu0 0.0
      %2566 = vmatpush1.msra.mxu0 %v2502
      %2567 = vmatprep.subr.mxu0 0.0
      %2568 = vmatpush1.msra.mxu0 %v2504
      %2569 = vmatprep.subr.mxu0 0.0
      %2570 = vmatpush1.msra.mxu0 %v2506
      %2571 = vmatprep.subr.mxu0 0.0
      %2572 = vmatpush1.msra.mxu0 %v2508
      %2573 = vmatprep.subr.mxu0 0.0
      %2574 = vmatpush1.msra.mxu0 %v2510
      %2575 = vmatprep.subr.mxu0 0.0
      %2576 = vmatpush1.msra.mxu0 %v2512
      %2577 = vmatprep.subr.mxu0 0.0
      %2578 = vmatpush1.msra.mxu0 %v2514
      %2579 = vmatprep.subr.mxu0 0.0
      %2580 = vmatpush1.msra.mxu0 %v2516
      %2581 = vmatprep.subr.mxu0 0.0
      %2582 = vmatpush1.msra.mxu0 %v2518
      %2583 = vmatprep.subr.mxu0 0.0
      %2584 = vmatpush1.msra.mxu0 %v2520
      %2585 = vmatprep.subr.mxu0 0.0
      %2586 = vmatpush1.msra.mxu0 %v2522
      %2587 = vmatprep.subr.mxu0 0.0
      %2588 = vmatpush1.msra.mxu0 %v2524
      %2589 = vmatprep.subr.mxu0 0.0
      %2590 = vmatpush1.msra.mxu0 %v2526
      %2591 = vmatprep.subr.mxu0 0.0
      %2592 = vmatpush1.msra.mxu0 %v2528
      %2593 = vmatprep.subr.mxu0 0.0
      %2594 = vmatpush1.msra.mxu0 %v2530
      %2595 = vmatprep.subr.mxu0 0.0
      %2596 = vmatpush1.msra.mxu0 %v2532
      %2597 = vmatprep.subr.mxu0 0.0
      %2598 = vmatpush1.msra.mxu0 %v2534
      %2599 = vmatprep.subr.mxu0 0.0
      %2600 = vmatpush1.msra.mxu0 %v2536
      %2601 = vmatprep.subr.mxu0 0.0
      %2602 = vmatpush1.msra.mxu0 %v2538
      %2603 = vmatprep.subr.mxu0 0.0
      %2604 = vmatpush1.msra.mxu0 %v2540
      %2605 = vmatprep.subr.mxu0 0.0
      %2606 = vmatpush1.msra.mxu0 %v2542
      %2607 = vmatprep.subr.mxu0 0.0
      %2608 = vmatpush1.msra.mxu0 %v2544
      %2609 = vmatprep.subr.mxu0 0.0
      %2610 = vmatpush1.msra.mxu0 %v2546
      %2611 = vmatprep.subr.mxu0 0.0
      %2612 = vmatpush1.msra.mxu0 %v2548
      %2613 = vmatprep.subr.mxu0 0.0
      %2614 = vmatpush1.msra.mxu0 %v2550
      %2615 = vmatprep.subr.mxu0 0.0
      %2616 = vmatpush1.msra.mxu0 %v2552
      %2617 = vmatprep.subr.mxu0 0.0
      %2618 = vmatpush1.msra.mxu0 %v2554
      %2619 = vmatprep.subr.mxu0 0.0
      %2620 = vmatpush1.msra.mxu0 %v2556
      %2621 = vmatprep.subr.mxu0 0.0
      %2622 = vmatpush1.msra.mxu0 %v2558
      %2623 = vmatprep.subr.mxu0 0.0
      %2624 = vmatpush1.msra.mxu0 %v2560
      %2625 = vmatprep.subr.mxu0 0.0
      %2626 = vmatpush1.msra.mxu0 %v2562
      %2627 = vmatprep.subr.mxu0 0.0
      %2628 = vmatpush1.msra.mxu0 %v2564
      %2629 = vmatprep.mubr.f32.mxu0 %v165
      %2630 = vmatmul.mubr.f32.gmra.mrb[0].mxu0 %v164
      %v2631 = vpop.f32.mrb[0].mxu0
      %v2632 = vadd.f32 0.0, %v2631
      %v2633 = vpop.f32.mrb[0].mxu0
      %2634 = vmatprep.mubr.f32.mxu0 %v167
      %2635 = vmatmul.mubr.f32.gmra.mrb[0].mxu0 %v166
      %v2636 = vpop.f32.mrb[0].mxu0
      %v2637 = vadd.f32 0.0, %v2636
      %v2638 = vpop.f32.mrb[0].mxu0
      %2639 = vmatprep.mubr.f32.mxu0 %v169
      %2640 = vmatmul.mubr.f32.gmra.mrb[0].mxu0 %v168
      %v2641 = vpop.f32.mrb[0].mxu0
      %v2642 = vadd.f32 0.0, %v2641
      %v2643 = vpop.f32.mrb[0].mxu0
      %2644 = vmatprep.mubr.f32.mxu0 %v171
      %2645 = vmatmul.mubr.f32.gmra.mrb[0].mxu0 %v170
      %v2646 = vpop.f32.mrb[0].mxu0
      %v2647 = vadd.f32 0.0, %v2646
      %v2648 = vpop.f32.mrb[0].mxu0
      %2649 = vdwg.mxu0
      %2650 = vxpose.xlu0.b32.start [1/16] %v2502, 128
      %2651 = vxpose.xlu0.b32.cont [2/16] %v2504, 128
      %2652 = vxpose.xlu0.b32.cont [3/16] %v2506, 128
      %2653 = vxpose.xlu0.b32.cont [4/16] %v2508, 128
      %2654 = vxpose.xlu0.b32.cont [5/16] %v2510, 128
      %2655 = vxpose.xlu0.b32.cont [6/16] %v2512, 128
      %2656 = vxpose.xlu0.b32.cont [7/16] %v2514, 128
      %2657 = vxpose.xlu0.b32.cont [8/16] %v2516, 128
      %2658 = vxpose.xlu0.b32.cont [9/16] %v2518, 128
      %2659 = vxpose.xlu0.b32.cont [10/16] %v2520, 128
      %2660 = vxpose.xlu0.b32.cont [11/16] %v2522, 128
      %2661 = vxpose.xlu0.b32.cont [12/16] %v2524, 128
      %2662 = vxpose.xlu0.b32.cont [13/16] %v2526, 128
      %2663 = vxpose.xlu0.b32.cont [14/16] %v2528, 128
      %2664 = vxpose.xlu0.b32.cont [15/16] %v2530, 128
      %2665 = vxpose.xlu0.b32.end [16/16] %v2532, 128
      %v2666 = vpop.trf.xlu0
      %v2667 = vpop.trf.xlu0
      %v2668 = vpop.trf.xlu0
      %v2669 = vpop.trf.xlu0
      %v2670 = vpop.trf.xlu0
      %v2671 = vpop.trf.xlu0
      %v2672 = vpop.trf.xlu0
      %v2673 = vpop.trf.xlu0
      %v2674 = vpop.trf.xlu0
      %v2675 = vpop.trf.xlu0
      %v2676 = vpop.trf.xlu0
      %v2677 = vpop.trf.xlu0
      %v2678 = vpop.trf.xlu0
      %v2679 = vpop.trf.xlu0
      %v2680 = vpop.trf.xlu0
      %v2681 = vpop.trf.xlu0
      %2682 = vxpose.xlu0.b32.start [1/16] %v2534, 128
      %2683 = vxpose.xlu0.b32.cont [2/16] %v2536, 128
      %2684 = vxpose.xlu0.b32.cont [3/16] %v2538, 128
      %2685 = vxpose.xlu0.b32.cont [4/16] %v2540, 128
      %2686 = vxpose.xlu0.b32.cont [5/16] %v2542, 128
      %2687 = vxpose.xlu0.b32.cont [6/16] %v2544, 128
      %2688 = vxpose.xlu0.b32.cont [7/16] %v2546, 128
      %2689 = vxpose.xlu0.b32.cont [8/16] %v2548, 128
      %2690 = vxpose.xlu0.b32.cont [9/16] %v2550, 128
      %2691 = vxpose.xlu0.b32.cont [10/16] %v2552, 128
      %2692 = vxpose.xlu0.b32.cont [11/16] %v2554, 128
      %2693 = vxpose.xlu0.b32.cont [12/16] %v2556, 128
      %2694 = vxpose.xlu0.b32.cont [13/16] %v2558, 128
      %2695 = vxpose.xlu0.b32.cont [14/16] %v2560, 128
      %2696 = vxpose.xlu0.b32.cont [15/16] %v2562, 128
      %2697 = vxpose.xlu0.b32.end [16/16] %v2564, 128
      %v2698 = vpop.trf.xlu0
      %v2699 = vpop.trf.xlu0
      %v2700 = vpop.trf.xlu0
      %v2701 = vpop.trf.xlu0
      %v2702 = vpop.trf.xlu0
      %v2703 = vpop.trf.xlu0
      %v2704 = vpop.trf.xlu0
      %v2705 = vpop.trf.xlu0
      %v2706 = vpop.trf.xlu0
      %v2707 = vpop.trf.xlu0
      %v2708 = vpop.trf.xlu0
      %v2709 = vpop.trf.xlu0
      %v2710 = vpop.trf.xlu0
      %v2711 = vpop.trf.xlu0
      %v2712 = vpop.trf.xlu0
      %v2713 = vpop.trf.xlu0
      %2714 = vmatprep.subr.mxu0 0.0
      %2715 = vmatpush1.msra.mxu0 %v2502
      %2716 = vmatprep.subr.mxu0 0.0
      %2717 = vmatpush1.msra.mxu0 %v2504
      %2718 = vmatprep.subr.mxu0 0.0
      %2719 = vmatpush1.msra.mxu0 %v2506
      %2720 = vmatprep.subr.mxu0 0.0
      %2721 = vmatpush1.msra.mxu0 %v2508
      %2722 = vmatprep.subr.mxu0 0.0
      %2723 = vmatpush1.msra.mxu0 %v2510
      %2724 = vmatprep.subr.mxu0 0.0
      %2725 = vmatpush1.msra.mxu0 %v2512
      %2726 = vmatprep.subr.mxu0 0.0
      %2727 = vmatpush1.msra.mxu0 %v2514
      %2728 = vmatprep.subr.mxu0 0.0
      %2729 = vmatpush1.msra.mxu0 %v2516
      %2730 = vmatprep.subr.mxu0 0.0
      %2731 = vmatpush1.msra.mxu0 %v2518
      %2732 = vmatprep.subr.mxu0 0.0
      %2733 = vmatpush1.msra.mxu0 %v2520
      %2734 = vmatprep.subr.mxu0 0.0
      %2735 = vmatpush1.msra.mxu0 %v2522
      %2736 = vmatprep.subr.mxu0 0.0
      %2737 = vmatpush1.msra.mxu0 %v2524
      %2738 = vmatprep.subr.mxu0 0.0
      %2739 = vmatpush1.msra.mxu0 %v2526
      %2740 = vmatprep.subr.mxu0 0.0
      %2741 = vmatpush1.msra.mxu0 %v2528
      %2742 = vmatprep.subr.mxu0 0.0
      %2743 = vmatpush1.msra.mxu0 %v2530
      %2744 = vmatprep.subr.mxu0 0.0
      %2745 = vmatpush1.msra.mxu0 %v2532
      %2746 = vmatprep.subr.mxu0 0.0
      %2747 = vmatpush1.msra.mxu0 %v2534
      %2748 = vmatprep.subr.mxu0 0.0
      %2749 = vmatpush1.msra.mxu0 %v2536
      %2750 = vmatprep.subr.mxu0 0.0
      %2751 = vmatpush1.msra.mxu0 %v2538
      %2752 = vmatprep.subr.mxu0 0.0
      %2753 = vmatpush1.msra.mxu0 %v2540
      %2754 = vmatprep.subr.mxu0 0.0
      %2755 = vmatpush1.msra.mxu0 %v2542
      %2756 = vmatprep.subr.mxu0 0.0
      %2757 = vmatpush1.msra.mxu0 %v2544
      %2758 = vmatprep.subr.mxu0 0.0
      %2759 = vmatpush1.msra.mxu0 %v2546
      %2760 = vmatprep.subr.mxu0 0.0
      %2761 = vmatpush1.msra.mxu0 %v2548
      %2762 = vmatprep.subr.mxu0 0.0
      %2763 = vmatpush1.msra.mxu0 %v2550
      %2764 = vmatprep.subr.mxu0 0.0
      %2765 = vmatpush1.msra.mxu0 %v2552
      %2766 = vmatprep.subr.mxu0 0.0
      %2767 = vmatpush1.msra.mxu0 %v2554
      %2768 = vmatprep.subr.mxu0 0.0
      %2769 = vmatpush1.msra.mxu0 %v2556
      %2770 = vmatprep.subr.mxu0 0.0
      %2771 = vmatpush1.msra.mxu0 %v2558
      %2772 = vmatprep.subr.mxu0 0.0
      %2773 = vmatpush1.msra.mxu0 %v2560
      %2774 = vmatprep.subr.mxu0 0.0
      %2775 = vmatpush1.msra.mxu0 %v2562
      %2776 = vmatprep.subr.mxu0 0.0
      %2777 = vmatpush1.msra.mxu0 %v2564
      %2778 = vmatprep.mubr.f32.mxu0 %v2698
      %2779 = vmatmul.mubr.f32.gmra.mrb[0].mxu0 %v2666
      %v2780 = vpop.f32.mrb[0].mxu0
      %v2781 = vadd.f32 0.0, %v2780
      %v2782 = vpop.f32.mrb[0].mxu0
      %2783 = vmatprep.mubr.f32.mxu0 %v2699
      %2784 = vmatmul.mubr.f32.gmra.mrb[0].mxu0 %v2667
      %v2785 = vpop.f32.mrb[0].mxu0
      %v2786 = vadd.f32 0.0, %v2785
      %v2787 = vpop.f32.mrb[0].mxu0
      %2788 = vdwg.mxu0
      %v2789 = vmul.f32 %v1803, %v2632
      %v2790 = vmul.f32 %v1805, %v2637
      %v2791 = vmul.f32 %v1807, %v2642
      %v2792 = vmul.f32 %v1809, %v2647
      %v2794 = vsel %vm594, %v1803, 0
      %v2797 = vsel %vm594, %v1805, 0
      %v2800 = vsel %vm594, %v1807, 0
      %v2803 = vsel %vm594, %v1809, 0
      %2805 = vmatprep.subr.mxu0 0.0
      %2806 = vmatpush1.msra.mxu0 %v2781
      %2807 = vmatprep.subr.mxu0 0.0
      %2808 = vmatpush1.msra.mxu0 %v2786
      %2809 = vmatprep.subr.mxu0 0.0
      %2810 = vmatpush1.msra.mxu0 0.0
      %2811 = vmatprep.subr.mxu0 0.0
      %2812 = vmatpush1.msra.mxu0 0.0
      %2813 = vmatprep.subr.mxu0 0.0
      %2814 = vmatpush1.msra.mxu0 0.0
      %2815 = vmatprep.subr.mxu0 0.0
      %2816 = vmatpush1.msra.mxu0 0.0
      %2817 = vmatprep.subr.mxu0 0.0
      %2818 = vmatpush1.msra.mxu0 0.0
      %2819 = vmatprep.subr.mxu0 0.0
      %2820 = vmatpush1.msra.mxu0 0.0
      %2821 = vmatprep.subr.mxu0 0.0
      %2822 = vmatpush1.msra.mxu0 0.0
      %2823 = vmatprep.subr.mxu0 0.0
      %2824 = vmatpush1.msra.mxu0 0.0
      %2825 = vmatprep.subr.mxu0 0.0
      %2826 = vmatpush1.msra.mxu0 0.0
      %2827 = vmatprep.subr.mxu0 0.0
      %2828 = vmatpush1.msra.mxu0 0.0
      %2829 = vmatprep.subr.mxu0 0.0
      %2830 = vmatpush1.msra.mxu0 0.0
      %2831 = vmatprep.subr.mxu0 0.0
      %2832 = vmatpush1.msra.mxu0 0.0
      %2833 = vmatprep.subr.mxu0 0.0
      %2834 = vmatpush1.msra.mxu0 0.0
      %2835 = vmatprep.subr.mxu0 0.0
      %2836 = vmatpush1.msra.mxu0 0.0
      %2837 = vmatprep.subr.mxu0 0.0
      %2838 = vmatpush1.msra.mxu0 0.0
      %2839 = vmatprep.subr.mxu0 0.0
      %2840 = vmatpush1.msra.mxu0 0.0
      %2841 = vmatprep.subr.mxu0 0.0
      %2842 = vmatpush1.msra.mxu0 0.0
      %2843 = vmatprep.subr.mxu0 0.0
      %2844 = vmatpush1.msra.mxu0 0.0
      %2845 = vmatprep.subr.mxu0 0.0
      %2846 = vmatpush1.msra.mxu0 0.0
      %2847 = vmatprep.subr.mxu0 0.0
      %2848 = vmatpush1.msra.mxu0 0.0
      %2849 = vmatprep.subr.mxu0 0.0
      %2850 = vmatpush1.msra.mxu0 0.0
      %2851 = vmatprep.subr.mxu0 0.0
      %2852 = vmatpush1.msra.mxu0 0.0
      %2853 = vmatprep.subr.mxu0 0.0
      %2854 = vmatpush1.msra.mxu0 0.0
      %2855 = vmatprep.subr.mxu0 0.0
      %2856 = vmatpush1.msra.mxu0 0.0
      %2857 = vmatprep.subr.mxu0 0.0
      %2858 = vmatpush1.msra.mxu0 0.0
      %2859 = vmatprep.subr.mxu0 0.0
      %2860 = vmatpush1.msra.mxu0 0.0
      %2861 = vmatprep.subr.mxu0 0.0
      %2862 = vmatpush1.msra.mxu0 0.0
      %2863 = vmatprep.subr.mxu0 0.0
      %2864 = vmatpush1.msra.mxu0 0.0
      %2865 = vmatprep.subr.mxu0 0.0
      %2866 = vmatpush1.msra.mxu0 0.0
      %2867 = vmatprep.subr.mxu0 0.0
      %2868 = vmatpush1.msra.mxu0 0.0
      %2869 = vmatprep.mubr.f32.mxu0 0.0
      %2870 = vmatmul.mubr.f32.gmra.mrb[0].mxu0 %v2794
      %v2871 = vpop.f32.mrb[0].mxu0
      %v2872 = vadd.f32 1e-06, %v2871
      %v2873 = vpop.f32.mrb[0].mxu0
      %2874 = vmatprep.mubr.f32.mxu0 0.0
      %2875 = vmatmul.mubr.f32.gmra.mrb[0].mxu0 %v2797
      %v2876 = vpop.f32.mrb[0].mxu0
      %v2877 = vadd.f32 1e-06, %v2876
      %v2878 = vpop.f32.mrb[0].mxu0
      %2879 = vmatprep.mubr.f32.mxu0 0.0
      %2880 = vmatmul.mubr.f32.gmra.mrb[0].mxu0 %v2800
      %v2881 = vpop.f32.mrb[0].mxu0
      %v2882 = vadd.f32 1e-06, %v2881
      %v2883 = vpop.f32.mrb[0].mxu0
      %2884 = vmatprep.mubr.f32.mxu0 0.0
      %2885 = vmatmul.mubr.f32.gmra.mrb[0].mxu0 %v2803
      %v2886 = vpop.f32.mrb[0].mxu0
      %v2887 = vadd.f32 1e-06, %v2886
      %v2888 = vpop.f32.mrb[0].mxu0
      %2889 = vdwg.mxu0
      %v2890 = vrcp.pop %v2872
      %v2891 = vmul.f32 %v2789, %v2890
      %v2892 = vrcp.pop %v2877
      %v2893 = vmul.f32 %v2790, %v2892
      %v2894 = vrcp.pop %v2882
      %v2895 = vmul.f32 %v2791, %v2894
      %v2896 = vrcp.pop %v2887
      %v2897 = vmul.f32 %v2792, %v2896
      %2898 = vmatprep.subr.mxu0 0.0
      %2899 = vmatpush1.msra.mxu0 %v2891
      %2900 = vmatprep.subr.mxu0 0.0
      %2901 = vmatpush1.msra.mxu0 %v2893
      %2902 = vmatprep.subr.mxu0 0.0
      %2903 = vmatpush1.msra.mxu0 %v2895
      %2904 = vmatprep.subr.mxu0 0.0
      %2905 = vmatpush1.msra.mxu0 %v2897
      %2906 = vmatprep.subr.mxu0 0.0
      %2907 = vmatpush1.msra.mxu0 0.0
      %2908 = vmatprep.subr.mxu0 0.0
      %2909 = vmatpush1.msra.mxu0 0.0
      %2910 = vmatprep.subr.mxu0 0.0
      %2911 = vmatpush1.msra.mxu0 0.0
      %2912 = vmatprep.subr.mxu0 0.0
      %2913 = vmatpush1.msra.mxu0 0.0
      %2914 = vmatprep.subr.mxu0 0.0
      %2915 = vmatpush1.msra.mxu0 0.0
      %2916 = vmatprep.subr.mxu0 0.0
      %2917 = vmatpush1.msra.mxu0 0.0
      %2918 = vmatprep.subr.mxu0 0.0
      %2919 = vmatpush1.msra.mxu0 0.0
      %2920 = vmatprep.subr.mxu0 0.0
      %2921 = vmatpush1.msra.mxu0 0.0
      %2922 = vmatprep.subr.mxu0 0.0
      %2923 = vmatpush1.msra.mxu0 0.0
      %2924 = vmatprep.subr.mxu0 0.0
      %2925 = vmatpush1.msra.mxu0 0.0
      %2926 = vmatprep.subr.mxu0 0.0
      %2927 = vmatpush1.msra.mxu0 0.0
      %2928 = vmatprep.subr.mxu0 0.0
      %2929 = vmatpush1.msra.mxu0 0.0
      %2930 = vmatprep.subr.mxu0 0.0
      %2931 = vmatpush1.msra.mxu0 0.0
      %2932 = vmatprep.subr.mxu0 0.0
      %2933 = vmatpush1.msra.mxu0 0.0
      %2934 = vmatprep.subr.mxu0 0.0
      %2935 = vmatpush1.msra.mxu0 0.0
      %2936 = vmatprep.subr.mxu0 0.0
      %2937 = vmatpush1.msra.mxu0 0.0
      %2938 = vmatprep.subr.mxu0 0.0
      %2939 = vmatpush1.msra.mxu0 0.0
      %2940 = vmatprep.subr.mxu0 0.0
      %2941 = vmatpush1.msra.mxu0 0.0
      %2942 = vmatprep.subr.mxu0 0.0
      %2943 = vmatpush1.msra.mxu0 0.0
      %2944 = vmatprep.subr.mxu0 0.0
      %2945 = vmatpush1.msra.mxu0 0.0
      %2946 = vmatprep.subr.mxu0 0.0
      %2947 = vmatpush1.msra.mxu0 0.0
      %2948 = vmatprep.subr.mxu0 0.0
      %2949 = vmatpush1.msra.mxu0 0.0
      %2950 = vmatprep.subr.mxu0 0.0
      %2951 = vmatpush1.msra.mxu0 0.0
      %2952 = vmatprep.subr.mxu0 0.0
      %2953 = vmatpush1.msra.mxu0 0.0
      %2954 = vmatprep.subr.mxu0 0.0
      %2955 = vmatpush1.msra.mxu0 0.0
      %2956 = vmatprep.subr.mxu0 0.0
      %2957 = vmatpush1.msra.mxu0 0.0
      %2958 = vmatprep.subr.mxu0 0.0
      %2959 = vmatpush1.msra.mxu0 0.0
      %2960 = vmatprep.subr.mxu0 0.0
      %2961 = vmatpush1.msra.mxu0 0.0
      %2962 = vmatprep.mubr.f32.mxu0 0.0
      %2963 = vmatmul.mubr.f32.gmra.mrb[0].mxu0 %v242
      %v2964 = vpop.f32.mrb[0].mxu0
      %v2965 = vadd.f32 0.0, %v2964
      %v2966 = vpop.f32.mrb[0].mxu0
      %2967 = vmatprep.mubr.f32.mxu0 0.0
      %2968 = vmatmul.mubr.f32.gmra.mrb[0].mxu0 %v245
      %v2969 = vpop.f32.mrb[0].mxu0
      %v2970 = vadd.f32 0.0, %v2969
      %v2971 = vpop.f32.mrb[0].mxu0
      %2972 = vmatprep.mubr.f32.mxu0 0.0
      %2973 = vmatmul.mubr.f32.gmra.mrb[0].mxu0 %v248
      %v2974 = vpop.f32.mrb[0].mxu0
      %v2975 = vadd.f32 0.0, %v2974
      %v2976 = vpop.f32.mrb[0].mxu0
      %2977 = vmatprep.mubr.f32.mxu0 0.0
      %2978 = vmatmul.mubr.f32.gmra.mrb[0].mxu0 %v251
      %v2979 = vpop.f32.mrb[0].mxu0
      %v2980 = vadd.f32 0.0, %v2979
      %v2981 = vpop.f32.mrb[0].mxu0
      %2982 = vmatprep.mubr.f32.mxu0 0.0
      %2983 = vmatmul.mubr.f32.gmra.mrb[0].mxu0 %v254
      %v2984 = vpop.f32.mrb[0].mxu0
      %v2985 = vadd.f32 0.0, %v2984
      %v2986 = vpop.f32.mrb[0].mxu0
      %2987 = vmatprep.mubr.f32.mxu0 0.0
      %2988 = vmatmul.mubr.f32.gmra.mrb[0].mxu0 %v257
      %v2989 = vpop.f32.mrb[0].mxu0
      %v2990 = vadd.f32 0.0, %v2989
      %v2991 = vpop.f32.mrb[0].mxu0
      %2992 = vmatprep.mubr.f32.mxu0 0.0
      %2993 = vmatmul.mubr.f32.gmra.mrb[0].mxu0 %v260
      %v2994 = vpop.f32.mrb[0].mxu0
      %v2995 = vadd.f32 0.0, %v2994
      %v2996 = vpop.f32.mrb[0].mxu0
      %2997 = vmatprep.mubr.f32.mxu0 0.0
      %2998 = vmatmul.mubr.f32.gmra.mrb[0].mxu0 %v263
      %v2999 = vpop.f32.mrb[0].mxu0
      %v3000 = vadd.f32 0.0, %v2999
      %v3001 = vpop.f32.mrb[0].mxu0
      %3002 = vmatprep.mubr.f32.mxu0 0.0
      %3003 = vmatmul.mubr.f32.gmra.mrb[0].mxu0 %v266
      %v3004 = vpop.f32.mrb[0].mxu0
      %v3005 = vadd.f32 0.0, %v3004
      %v3006 = vpop.f32.mrb[0].mxu0
      %3007 = vmatprep.mubr.f32.mxu0 0.0
      %3008 = vmatmul.mubr.f32.gmra.mrb[0].mxu0 %v269
      %v3009 = vpop.f32.mrb[0].mxu0
      %v3010 = vadd.f32 0.0, %v3009
      %v3011 = vpop.f32.mrb[0].mxu0
      %3012 = vmatprep.mubr.f32.mxu0 0.0
      %3013 = vmatmul.mubr.f32.gmra.mrb[0].mxu0 %v272
      %v3014 = vpop.f32.mrb[0].mxu0
      %v3015 = vadd.f32 0.0, %v3014
      %v3016 = vpop.f32.mrb[0].mxu0
      %3017 = vmatprep.mubr.f32.mxu0 0.0
      %3018 = vmatmul.mubr.f32.gmra.mrb[0].mxu0 %v275
      %v3019 = vpop.f32.mrb[0].mxu0
      %v3020 = vadd.f32 0.0, %v3019
      %v3021 = vpop.f32.mrb[0].mxu0
      %3022 = vmatprep.mubr.f32.mxu0 0.0
      %3023 = vmatmul.mubr.f32.gmra.mrb[0].mxu0 %v278
      %v3024 = vpop.f32.mrb[0].mxu0
      %v3025 = vadd.f32 0.0, %v3024
      %v3026 = vpop.f32.mrb[0].mxu0
      %3027 = vmatprep.mubr.f32.mxu0 0.0
      %3028 = vmatmul.mubr.f32.gmra.mrb[0].mxu0 %v281
      %v3029 = vpop.f32.mrb[0].mxu0
      %v3030 = vadd.f32 0.0, %v3029
      %v3031 = vpop.f32.mrb[0].mxu0
      %3032 = vmatprep.mubr.f32.mxu0 0.0
      %3033 = vmatmul.mubr.f32.gmra.mrb[0].mxu0 %v284
      %v3034 = vpop.f32.mrb[0].mxu0
      %v3035 = vadd.f32 0.0, %v3034
      %v3036 = vpop.f32.mrb[0].mxu0
      %3037 = vmatprep.mubr.f32.mxu0 0.0
      %3038 = vmatmul.mubr.f32.gmra.mrb[0].mxu0 %v287
      %v3039 = vpop.f32.mrb[0].mxu0
      %v3040 = vadd.f32 0.0, %v3039
      %v3041 = vpop.f32.mrb[0].mxu0
      %3042 = vmatprep.mubr.f32.mxu0 0.0
      %3043 = vmatmul.mubr.f32.gmra.mrb[0].mxu0 %v290
      %v3044 = vpop.f32.mrb[0].mxu0
      %v3045 = vadd.f32 0.0, %v3044
      %v3046 = vpop.f32.mrb[0].mxu0
      %3047 = vmatprep.mubr.f32.mxu0 0.0
      %3048 = vmatmul.mubr.f32.gmra.mrb[0].mxu0 %v293
      %v3049 = vpop.f32.mrb[0].mxu0
      %v3050 = vadd.f32 0.0, %v3049
      %v3051 = vpop.f32.mrb[0].mxu0
      %3052 = vmatprep.mubr.f32.mxu0 0.0
      %3053 = vmatmul.mubr.f32.gmra.mrb[0].mxu0 %v296
      %v3054 = vpop.f32.mrb[0].mxu0
      %v3055 = vadd.f32 0.0, %v3054
      %v3056 = vpop.f32.mrb[0].mxu0
      %3057 = vmatprep.mubr.f32.mxu0 0.0
      %3058 = vmatmul.mubr.f32.gmra.mrb[0].mxu0 %v299
      %v3059 = vpop.f32.mrb[0].mxu0
      %v3060 = vadd.f32 0.0, %v3059
      %v3061 = vpop.f32.mrb[0].mxu0
      %3062 = vmatprep.mubr.f32.mxu0 0.0
      %3063 = vmatmul.mubr.f32.gmra.mrb[0].mxu0 %v302
      %v3064 = vpop.f32.mrb[0].mxu0
      %v3065 = vadd.f32 0.0, %v3064
      %v3066 = vpop.f32.mrb[0].mxu0
      %3067 = vmatprep.mubr.f32.mxu0 0.0
      %3068 = vmatmul.mubr.f32.gmra.mrb[0].mxu0 %v305
      %v3069 = vpop.f32.mrb[0].mxu0
      %v3070 = vadd.f32 0.0, %v3069
      %v3071 = vpop.f32.mrb[0].mxu0
      %3072 = vmatprep.mubr.f32.mxu0 0.0
      %3073 = vmatmul.mubr.f32.gmra.mrb[0].mxu0 %v308
      %v3074 = vpop.f32.mrb[0].mxu0
      %v3075 = vadd.f32 0.0, %v3074
      %v3076 = vpop.f32.mrb[0].mxu0
      %3077 = vmatprep.mubr.f32.mxu0 0.0
      %3078 = vmatmul.mubr.f32.gmra.mrb[0].mxu0 %v311
      %v3079 = vpop.f32.mrb[0].mxu0
      %v3080 = vadd.f32 0.0, %v3079
      %v3081 = vpop.f32.mrb[0].mxu0
      %3082 = vmatprep.mubr.f32.mxu0 0.0
      %3083 = vmatmul.mubr.f32.gmra.mrb[0].mxu0 %v314
      %v3084 = vpop.f32.mrb[0].mxu0
      %v3085 = vadd.f32 0.0, %v3084
      %v3086 = vpop.f32.mrb[0].mxu0
      %3087 = vmatprep.mubr.f32.mxu0 0.0
      %3088 = vmatmul.mubr.f32.gmra.mrb[0].mxu0 %v317
      %v3089 = vpop.f32.mrb[0].mxu0
      %v3090 = vadd.f32 0.0, %v3089
      %v3091 = vpop.f32.mrb[0].mxu0
      %3092 = vmatprep.mubr.f32.mxu0 0.0
      %3093 = vmatmul.mubr.f32.gmra.mrb[0].mxu0 %v320
      %v3094 = vpop.f32.mrb[0].mxu0
      %v3095 = vadd.f32 0.0, %v3094
      %v3096 = vpop.f32.mrb[0].mxu0
      %3097 = vmatprep.mubr.f32.mxu0 0.0
      %3098 = vmatmul.mubr.f32.gmra.mrb[0].mxu0 %v323
      %v3099 = vpop.f32.mrb[0].mxu0
      %v3100 = vadd.f32 0.0, %v3099
      %v3101 = vpop.f32.mrb[0].mxu0
      %3102 = vmatprep.mubr.f32.mxu0 0.0
      %3103 = vmatmul.mubr.f32.gmra.mrb[0].mxu0 %v326
      %v3104 = vpop.f32.mrb[0].mxu0
      %v3105 = vadd.f32 0.0, %v3104
      %v3106 = vpop.f32.mrb[0].mxu0
      %3107 = vmatprep.mubr.f32.mxu0 0.0
      %3108 = vmatmul.mubr.f32.gmra.mrb[0].mxu0 %v329
      %v3109 = vpop.f32.mrb[0].mxu0
      %v3110 = vadd.f32 0.0, %v3109
      %v3111 = vpop.f32.mrb[0].mxu0
      %3112 = vmatprep.mubr.f32.mxu0 0.0
      %3113 = vmatmul.mubr.f32.gmra.mrb[0].mxu0 %v332
      %v3114 = vpop.f32.mrb[0].mxu0
      %v3115 = vadd.f32 0.0, %v3114
      %v3116 = vpop.f32.mrb[0].mxu0
      %3117 = vmatprep.mubr.f32.mxu0 0.0
      %3118 = vmatmul.mubr.f32.gmra.mrb[0].mxu0 %v335
      %v3119 = vpop.f32.mrb[0].mxu0
      %v3120 = vadd.f32 0.0, %v3119
      %v3121 = vpop.f32.mrb[0].mxu0
      %3122 = vdwg.mxu0
      %3123 = vxpose.xlu0.b32.start [1/16] %v2891, 128
      %3124 = vxpose.xlu0.b32.cont [2/16] %v2893, 128
      %3125 = vxpose.xlu0.b32.cont [3/16] %v2895, 128
      %3126 = vxpose.xlu0.b32.cont [4/16] %v2897, 128
      %3127 = vxpose.xlu0.b32.cont [5/16] 0.0, 128
      %3128 = vxpose.xlu0.b32.cont [6/16] 0.0, 128
      %3129 = vxpose.xlu0.b32.cont [7/16] 0.0, 128
      %3130 = vxpose.xlu0.b32.cont [8/16] 0.0, 128
      %3131 = vxpose.xlu0.b32.cont [9/16] 0.0, 128
      %3132 = vxpose.xlu0.b32.cont [10/16] 0.0, 128
      %3133 = vxpose.xlu0.b32.cont [11/16] 0.0, 128
      %3134 = vxpose.xlu0.b32.cont [12/16] 0.0, 128
      %3135 = vxpose.xlu0.b32.cont [13/16] 0.0, 128
      %3136 = vxpose.xlu0.b32.cont [14/16] 0.0, 128
      %3137 = vxpose.xlu0.b32.cont [15/16] 0.0, 128
      %3138 = vxpose.xlu0.b32.end [16/16] 0.0, 128
      %v3139 = vpop.trf.xlu0
      %v3140 = vpop.trf.xlu0
      %v3141 = vpop.trf.xlu0
      %v3142 = vpop.trf.xlu0
      %v3143 = vpop.trf.xlu0
      %v3144 = vpop.trf.xlu0
      %v3145 = vpop.trf.xlu0
      %v3146 = vpop.trf.xlu0
      %v3147 = vpop.trf.xlu0
      %v3148 = vpop.trf.xlu0
      %v3149 = vpop.trf.xlu0
      %v3150 = vpop.trf.xlu0
      %v3151 = vpop.trf.xlu0
      %v3152 = vpop.trf.xlu0
      %v3153 = vpop.trf.xlu0
      %v3154 = vpop.trf.xlu0
      %v3156 = vsel %vm240, %v3139, 0
      %v3159 = vsel %vm240, %v3140, 0
      %3161 = vmatprep.subr.mxu0 0.0
      %3162 = vmatpush1.msra.mxu0 %v2891
      %3163 = vmatprep.subr.mxu0 0.0
      %3164 = vmatpush1.msra.mxu0 %v2893
      %3165 = vmatprep.subr.mxu0 0.0
      %3166 = vmatpush1.msra.mxu0 %v2895
      %3167 = vmatprep.subr.mxu0 0.0
      %3168 = vmatpush1.msra.mxu0 %v2897
      %3169 = vmatprep.subr.mxu0 0.0
      %3170 = vmatpush1.msra.mxu0 0.0
      %3171 = vmatprep.subr.mxu0 0.0
      %3172 = vmatpush1.msra.mxu0 0.0
      %3173 = vmatprep.subr.mxu0 0.0
      %3174 = vmatpush1.msra.mxu0 0.0
      %3175 = vmatprep.subr.mxu0 0.0
      %3176 = vmatpush1.msra.mxu0 0.0
      %3177 = vmatprep.subr.mxu0 0.0
      %3178 = vmatpush1.msra.mxu0 0.0
      %3179 = vmatprep.subr.mxu0 0.0
      %3180 = vmatpush1.msra.mxu0 0.0
      %3181 = vmatprep.subr.mxu0 0.0
      %3182 = vmatpush1.msra.mxu0 0.0
      %3183 = vmatprep.subr.mxu0 0.0
      %3184 = vmatpush1.msra.mxu0 0.0
      %3185 = vmatprep.subr.mxu0 0.0
      %3186 = vmatpush1.msra.mxu0 0.0
      %3187 = vmatprep.subr.mxu0 0.0
      %3188 = vmatpush1.msra.mxu0 0.0
      %3189 = vmatprep.subr.mxu0 0.0
      %3190 = vmatpush1.msra.mxu0 0.0
      %3191 = vmatprep.subr.mxu0 0.0
      %3192 = vmatpush1.msra.mxu0 0.0
      %3193 = vmatprep.subr.mxu0 0.0
      %3194 = vmatpush1.msra.mxu0 0.0
      %3195 = vmatprep.subr.mxu0 0.0
      %3196 = vmatpush1.msra.mxu0 0.0
      %3197 = vmatprep.subr.mxu0 0.0
      %3198 = vmatpush1.msra.mxu0 0.0
      %3199 = vmatprep.subr.mxu0 0.0
      %3200 = vmatpush1.msra.mxu0 0.0
      %3201 = vmatprep.subr.mxu0 0.0
      %3202 = vmatpush1.msra.mxu0 0.0
      %3203 = vmatprep.subr.mxu0 0.0
      %3204 = vmatpush1.msra.mxu0 0.0
      %3205 = vmatprep.subr.mxu0 0.0
      %3206 = vmatpush1.msra.mxu0 0.0
      %3207 = vmatprep.subr.mxu0 0.0
      %3208 = vmatpush1.msra.mxu0 0.0
      %3209 = vmatprep.subr.mxu0 0.0
      %3210 = vmatpush1.msra.mxu0 0.0
      %3211 = vmatprep.subr.mxu0 0.0
      %3212 = vmatpush1.msra.mxu0 0.0
      %3213 = vmatprep.subr.mxu0 0.0
      %3214 = vmatpush1.msra.mxu0 0.0
      %3215 = vmatprep.subr.mxu0 0.0
      %3216 = vmatpush1.msra.mxu0 0.0
      %3217 = vmatprep.subr.mxu0 0.0
      %3218 = vmatpush1.msra.mxu0 0.0
      %3219 = vmatprep.subr.mxu0 0.0
      %3220 = vmatpush1.msra.mxu0 0.0
      %3221 = vmatprep.subr.mxu0 0.0
      %3222 = vmatpush1.msra.mxu0 0.0
      %3223 = vmatprep.subr.mxu0 0.0
      %3224 = vmatpush1.msra.mxu0 0.0
      %3225 = vmatprep.mubr.f32.mxu0 0.0
      %3226 = vmatmul.mubr.f32.gmra.mrb[0].mxu0 %v3156
      %v3227 = vpop.f32.mrb[0].mxu0
      %v3228 = vadd.f32 0.0, %v3227
      %v3229 = vpop.f32.mrb[0].mxu0
      %3230 = vmatprep.mubr.f32.mxu0 0.0
      %3231 = vmatmul.mubr.f32.gmra.mrb[0].mxu0 %v3159
      %v3232 = vpop.f32.mrb[0].mxu0
      %v3233 = vadd.f32 0.0, %v3232
      %v3234 = vpop.f32.mrb[0].mxu0
      %3235 = vdwg.mxu0
      %v3236 = vmul.f32 %v2502, %v2965
      %v3237 = vmul.f32 %v2504, %v2970
      %v3238 = vmul.f32 %v2506, %v2975
      %v3239 = vmul.f32 %v2508, %v2980
      %v3240 = vmul.f32 %v2510, %v2985
      %v3241 = vmul.f32 %v2512, %v2990
      %v3242 = vmul.f32 %v2514, %v2995
      %v3243 = vmul.f32 %v2516, %v3000
      %v3244 = vmul.f32 %v2518, %v3005
      %v3245 = vmul.f32 %v2520, %v3010
      %v3246 = vmul.f32 %v2522, %v3015
      %v3247 = vmul.f32 %v2524, %v3020
      %v3248 = vmul.f32 %v2526, %v3025
      %v3249 = vmul.f32 %v2528, %v3030
      %v3250 = vmul.f32 %v2530, %v3035
      %v3251 = vmul.f32 %v2532, %v3040
      %v3252 = vmul.f32 %v2534, %v3045
      %v3253 = vmul.f32 %v2536, %v3050
      %v3254 = vmul.f32 %v2538, %v3055
      %v3255 = vmul.f32 %v2540, %v3060
      %v3256 = vmul.f32 %v2542, %v3065
      %v3257 = vmul.f32 %v2544, %v3070
      %v3258 = vmul.f32 %v2546, %v3075
      %v3259 = vmul.f32 %v2548, %v3080
      %v3260 = vmul.f32 %v2550, %v3085
      %v3261 = vmul.f32 %v2552, %v3090
      %v3262 = vmul.f32 %v2554, %v3095
      %v3263 = vmul.f32 %v2556, %v3100
      %v3264 = vmul.f32 %v2558, %v3105
      %v3265 = vmul.f32 %v2560, %v3110
      %v3266 = vmul.f32 %v2562, %v3115
      %v3267 = vmul.f32 %v2564, %v3120
      %v3269 = vsel %vm594, %v2502, 0
      %v3272 = vsel %vm594, %v2504, 0
      %v3275 = vsel %vm594, %v2506, 0
      %v3278 = vsel %vm594, %v2508, 0
      %v3281 = vsel %vm594, %v2510, 0
      %v3284 = vsel %vm594, %v2512, 0
      %v3287 = vsel %vm594, %v2514, 0
      %v3290 = vsel %vm594, %v2516, 0
      %v3293 = vsel %vm594, %v2518, 0
      %v3296 = vsel %vm594, %v2520, 0
      %v3299 = vsel %vm594, %v2522, 0
      %v3302 = vsel %vm594, %v2524, 0
      %v3305 = vsel %vm594, %v2526, 0
      %v3308 = vsel %vm594, %v2528, 0
      %v3311 = vsel %vm594, %v2530, 0
      %v3314 = vsel %vm594, %v2532, 0
      %v3317 = vsel %vm594, %v2534, 0
      %v3320 = vsel %vm594, %v2536, 0
      %v3323 = vsel %vm594, %v2538, 0
      %v3326 = vsel %vm594, %v2540, 0
      %v3329 = vsel %vm594, %v2542, 0
      %v3332 = vsel %vm594, %v2544, 0
      %v3335 = vsel %vm594, %v2546, 0
      %v3338 = vsel %vm594, %v2548, 0
      %v3341 = vsel %vm594, %v2550, 0
      %v3344 = vsel %vm594, %v2552, 0
      %v3347 = vsel %vm594, %v2554, 0
      %v3350 = vsel %vm594, %v2556, 0
      %v3353 = vsel %vm594, %v2558, 0
      %v3356 = vsel %vm594, %v2560, 0
      %v3359 = vsel %vm594, %v2562, 0
      %v3362 = vsel %vm594, %v2564, 0
      %3364 = vmatprep.subr.mxu0 0.0
      %3365 = vmatpush1.msra.mxu0 %v3228
      %3366 = vmatprep.subr.mxu0 0.0
      %3367 = vmatpush1.msra.mxu0 %v3233
      %3368 = vmatprep.subr.mxu0 0.0
      %3369 = vmatpush1.msra.mxu0 0.0
      %3370 = vmatprep.subr.mxu0 0.0
      %3371 = vmatpush1.msra.mxu0 0.0
      %3372 = vmatprep.subr.mxu0 0.0
      %3373 = vmatpush1.msra.mxu0 0.0
      %3374 = vmatprep.subr.mxu0 0.0
      %3375 = vmatpush1.msra.mxu0 0.0
      %3376 = vmatprep.subr.mxu0 0.0
      %3377 = vmatpush1.msra.mxu0 0.0
      %3378 = vmatprep.subr.mxu0 0.0
      %3379 = vmatpush1.msra.mxu0 0.0
      %3380 = vmatprep.subr.mxu0 0.0
      %3381 = vmatpush1.msra.mxu0 0.0
      %3382 = vmatprep.subr.mxu0 0.0
      %3383 = vmatpush1.msra.mxu0 0.0
      %3384 = vmatprep.subr.mxu0 0.0
      %3385 = vmatpush1.msra.mxu0 0.0
      %3386 = vmatprep.subr.mxu0 0.0
      %3387 = vmatpush1.msra.mxu0 0.0
      %3388 = vmatprep.subr.mxu0 0.0
      %3389 = vmatpush1.msra.mxu0 0.0
      %3390 = vmatprep.subr.mxu0 0.0
      %3391 = vmatpush1.msra.mxu0 0.0
      %3392 = vmatprep.subr.mxu0 0.0
      %3393 = vmatpush1.msra.mxu0 0.0
      %3394 = vmatprep.subr.mxu0 0.0
      %3395 = vmatpush1.msra.mxu0 0.0
      %3396 = vmatprep.subr.mxu0 0.0
      %3397 = vmatpush1.msra.mxu0 0.0
      %3398 = vmatprep.subr.mxu0 0.0
      %3399 = vmatpush1.msra.mxu0 0.0
      %3400 = vmatprep.subr.mxu0 0.0
      %3401 = vmatpush1.msra.mxu0 0.0
      %3402 = vmatprep.subr.mxu0 0.0
      %3403 = vmatpush1.msra.mxu0 0.0
      %3404 = vmatprep.subr.mxu0 0.0
      %3405 = vmatpush1.msra.mxu0 0.0
      %3406 = vmatprep.subr.mxu0 0.0
      %3407 = vmatpush1.msra.mxu0 0.0
      %3408 = vmatprep.subr.mxu0 0.0
      %3409 = vmatpush1.msra.mxu0 0.0
      %3410 = vmatprep.subr.mxu0 0.0
      %3411 = vmatpush1.msra.mxu0 0.0
      %3412 = vmatprep.subr.mxu0 0.0
      %3413 = vmatpush1.msra.mxu0 0.0
      %3414 = vmatprep.subr.mxu0 0.0
      %3415 = vmatpush1.msra.mxu0 0.0
      %3416 = vmatprep.subr.mxu0 0.0
      %3417 = vmatpush1.msra.mxu0 0.0
      %3418 = vmatprep.subr.mxu0 0.0
      %3419 = vmatpush1.msra.mxu0 0.0
      %3420 = vmatprep.subr.mxu0 0.0
      %3421 = vmatpush1.msra.mxu0 0.0
      %3422 = vmatprep.subr.mxu0 0.0
      %3423 = vmatpush1.msra.mxu0 0.0
      %3424 = vmatprep.subr.mxu0 0.0
      %3425 = vmatpush1.msra.mxu0 0.0
      %3426 = vmatprep.subr.mxu0 0.0
      %3427 = vmatpush1.msra.mxu0 0.0
      %3428 = vmatprep.mubr.f32.mxu0 0.0
      %3429 = vmatmul.mubr.f32.gmra.mrb[0].mxu0 %v3269
      %v3430 = vpop.f32.mrb[0].mxu0
      %v3431 = vadd.f32 1e-06, %v3430
      %v3432 = vpop.f32.mrb[0].mxu0
      %3433 = vmatprep.mubr.f32.mxu0 0.0
      %3434 = vmatmul.mubr.f32.gmra.mrb[0].mxu0 %v3272
      %v3435 = vpop.f32.mrb[0].mxu0
      %v3436 = vadd.f32 1e-06, %v3435
      %v3437 = vpop.f32.mrb[0].mxu0
      %3438 = vmatprep.mubr.f32.mxu0 0.0
      %3439 = vmatmul.mubr.f32.gmra.mrb[0].mxu0 %v3275
      %v3440 = vpop.f32.mrb[0].mxu0
      %v3441 = vadd.f32 1e-06, %v3440
      %v3442 = vpop.f32.mrb[0].mxu0
      %3443 = vmatprep.mubr.f32.mxu0 0.0
      %3444 = vmatmul.mubr.f32.gmra.mrb[0].mxu0 %v3278
      %v3445 = vpop.f32.mrb[0].mxu0
      %v3446 = vadd.f32 1e-06, %v3445
      %v3447 = vpop.f32.mrb[0].mxu0
      %3448 = vmatprep.mubr.f32.mxu0 0.0
      %3449 = vmatmul.mubr.f32.gmra.mrb[0].mxu0 %v3281
      %v3450 = vpop.f32.mrb[0].mxu0
      %v3451 = vadd.f32 1e-06, %v3450
      %v3452 = vpop.f32.mrb[0].mxu0
      %3453 = vmatprep.mubr.f32.mxu0 0.0
      %3454 = vmatmul.mubr.f32.gmra.mrb[0].mxu0 %v3284
      %v3455 = vpop.f32.mrb[0].mxu0
      %v3456 = vadd.f32 1e-06, %v3455
      %v3457 = vpop.f32.mrb[0].mxu0
      %3458 = vmatprep.mubr.f32.mxu0 0.0
      %3459 = vmatmul.mubr.f32.gmra.mrb[0].mxu0 %v3287
      %v3460 = vpop.f32.mrb[0].mxu0
      %v3461 = vadd.f32 1e-06, %v3460
      %v3462 = vpop.f32.mrb[0].mxu0
      %3463 = vmatprep.mubr.f32.mxu0 0.0
      %3464 = vmatmul.mubr.f32.gmra.mrb[0].mxu0 %v3290
      %v3465 = vpop.f32.mrb[0].mxu0
      %v3466 = vadd.f32 1e-06, %v3465
      %v3467 = vpop.f32.mrb[0].mxu0
      %3468 = vmatprep.mubr.f32.mxu0 0.0
      %3469 = vmatmul.mubr.f32.gmra.mrb[0].mxu0 %v3293
      %v3470 = vpop.f32.mrb[0].mxu0
      %v3471 = vadd.f32 1e-06, %v3470
      %v3472 = vpop.f32.mrb[0].mxu0
      %3473 = vmatprep.mubr.f32.mxu0 0.0
      %3474 = vmatmul.mubr.f32.gmra.mrb[0].mxu0 %v3296
      %v3475 = vpop.f32.mrb[0].mxu0
      %v3476 = vadd.f32 1e-06, %v3475
      %v3477 = vpop.f32.mrb[0].mxu0
      %3478 = vmatprep.mubr.f32.mxu0 0.0
      %3479 = vmatmul.mubr.f32.gmra.mrb[0].mxu0 %v3299
      %v3480 = vpop.f32.mrb[0].mxu0
      %v3481 = vadd.f32 1e-06, %v3480
      %v3482 = vpop.f32.mrb[0].mxu0
      %3483 = vmatprep.mubr.f32.mxu0 0.0
      %3484 = vmatmul.mubr.f32.gmra.mrb[0].mxu0 %v3302
      %v3485 = vpop.f32.mrb[0].mxu0
      %v3486 = vadd.f32 1e-06, %v3485
      %v3487 = vpop.f32.mrb[0].mxu0
      %3488 = vmatprep.mubr.f32.mxu0 0.0
      %3489 = vmatmul.mubr.f32.gmra.mrb[0].mxu0 %v3305
      %v3490 = vpop.f32.mrb[0].mxu0
      %v3491 = vadd.f32 1e-06, %v3490
      %v3492 = vpop.f32.mrb[0].mxu0
      %3493 = vmatprep.mubr.f32.mxu0 0.0
      %3494 = vmatmul.mubr.f32.gmra.mrb[0].mxu0 %v3308
      %v3495 = vpop.f32.mrb[0].mxu0
      %v3496 = vadd.f32 1e-06, %v3495
      %v3497 = vpop.f32.mrb[0].mxu0
      %3498 = vmatprep.mubr.f32.mxu0 0.0
      %3499 = vmatmul.mubr.f32.gmra.mrb[0].mxu0 %v3311
      %v3500 = vpop.f32.mrb[0].mxu0
      %v3501 = vadd.f32 1e-06, %v3500
      %v3502 = vpop.f32.mrb[0].mxu0
      %3503 = vmatprep.mubr.f32.mxu0 0.0
      %3504 = vmatmul.mubr.f32.gmra.mrb[0].mxu0 %v3314
      %v3505 = vpop.f32.mrb[0].mxu0
      %v3506 = vadd.f32 1e-06, %v3505
      %v3507 = vpop.f32.mrb[0].mxu0
      %3508 = vmatprep.mubr.f32.mxu0 0.0
      %3509 = vmatmul.mubr.f32.gmra.mrb[0].mxu0 %v3317
      %v3510 = vpop.f32.mrb[0].mxu0
      %v3511 = vadd.f32 1e-06, %v3510
      %v3512 = vpop.f32.mrb[0].mxu0
      %3513 = vmatprep.mubr.f32.mxu0 0.0
      %3514 = vmatmul.mubr.f32.gmra.mrb[0].mxu0 %v3320
      %v3515 = vpop.f32.mrb[0].mxu0
      %v3516 = vadd.f32 1e-06, %v3515
      %v3517 = vpop.f32.mrb[0].mxu0
      %3518 = vmatprep.mubr.f32.mxu0 0.0
      %3519 = vmatmul.mubr.f32.gmra.mrb[0].mxu0 %v3323
      %v3520 = vpop.f32.mrb[0].mxu0
      %v3521 = vadd.f32 1e-06, %v3520
      %v3522 = vpop.f32.mrb[0].mxu0
      %3523 = vmatprep.mubr.f32.mxu0 0.0
      %3524 = vmatmul.mubr.f32.gmra.mrb[0].mxu0 %v3326
      %v3525 = vpop.f32.mrb[0].mxu0
      %v3526 = vadd.f32 1e-06, %v3525
      %v3527 = vpop.f32.mrb[0].mxu0
      %3528 = vmatprep.mubr.f32.mxu0 0.0
      %3529 = vmatmul.mubr.f32.gmra.mrb[0].mxu0 %v3329
      %v3530 = vpop.f32.mrb[0].mxu0
      %v3531 = vadd.f32 1e-06, %v3530
      %v3532 = vpop.f32.mrb[0].mxu0
      %3533 = vmatprep.mubr.f32.mxu0 0.0
      %3534 = vmatmul.mubr.f32.gmra.mrb[0].mxu0 %v3332
      %v3535 = vpop.f32.mrb[0].mxu0
      %v3536 = vadd.f32 1e-06, %v3535
      %v3537 = vpop.f32.mrb[0].mxu0
      %3538 = vmatprep.mubr.f32.mxu0 0.0
      %3539 = vmatmul.mubr.f32.gmra.mrb[0].mxu0 %v3335
      %v3540 = vpop.f32.mrb[0].mxu0
      %v3541 = vadd.f32 1e-06, %v3540
      %v3542 = vpop.f32.mrb[0].mxu0
      %3543 = vmatprep.mubr.f32.mxu0 0.0
      %3544 = vmatmul.mubr.f32.gmra.mrb[0].mxu0 %v3338
      %v3545 = vpop.f32.mrb[0].mxu0
      %v3546 = vadd.f32 1e-06, %v3545
      %v3547 = vpop.f32.mrb[0].mxu0
      %3548 = vmatprep.mubr.f32.mxu0 0.0
      %3549 = vmatmul.mubr.f32.gmra.mrb[0].mxu0 %v3341
      %v3550 = vpop.f32.mrb[0].mxu0
      %v3551 = vadd.f32 1e-06, %v3550
      %v3552 = vpop.f32.mrb[0].mxu0
      %3553 = vmatprep.mubr.f32.mxu0 0.0
      %3554 = vmatmul.mubr.f32.gmra.mrb[0].mxu0 %v3344
      %v3555 = vpop.f32.mrb[0].mxu0
      %v3556 = vadd.f32 1e-06, %v3555
      %v3557 = vpop.f32.mrb[0].mxu0
      %3558 = vmatprep.mubr.f32.mxu0 0.0
      %3559 = vmatmul.mubr.f32.gmra.mrb[0].mxu0 %v3347
      %v3560 = vpop.f32.mrb[0].mxu0
      %v3561 = vadd.f32 1e-06, %v3560
      %v3562 = vpop.f32.mrb[0].mxu0
      %3563 = vmatprep.mubr.f32.mxu0 0.0
      %3564 = vmatmul.mubr.f32.gmra.mrb[0].mxu0 %v3350
      %v3565 = vpop.f32.mrb[0].mxu0
      %v3566 = vadd.f32 1e-06, %v3565
      %v3567 = vpop.f32.mrb[0].mxu0
      %3568 = vmatprep.mubr.f32.mxu0 0.0
      %3569 = vmatmul.mubr.f32.gmra.mrb[0].mxu0 %v3353
      %v3570 = vpop.f32.mrb[0].mxu0
      %v3571 = vadd.f32 1e-06, %v3570
      %v3572 = vpop.f32.mrb[0].mxu0
      %3573 = vmatprep.mubr.f32.mxu0 0.0
      %3574 = vmatmul.mubr.f32.gmra.mrb[0].mxu0 %v3356
      %v3575 = vpop.f32.mrb[0].mxu0
      %v3576 = vadd.f32 1e-06, %v3575
      %v3577 = vpop.f32.mrb[0].mxu0
      %3578 = vmatprep.mubr.f32.mxu0 0.0
      %3579 = vmatmul.mubr.f32.gmra.mrb[0].mxu0 %v3359
      %v3580 = vpop.f32.mrb[0].mxu0
      %v3581 = vadd.f32 1e-06, %v3580
      %v3582 = vpop.f32.mrb[0].mxu0
      %3583 = vmatprep.mubr.f32.mxu0 0.0
      %3584 = vmatmul.mubr.f32.gmra.mrb[0].mxu0 %v3362
      %v3585 = vpop.f32.mrb[0].mxu0
      %v3586 = vadd.f32 1e-06, %v3585
      %v3587 = vpop.f32.mrb[0].mxu0
      %3588 = vdwg.mxu0
      %v3589 = vrcp.pop %v3431
      %v3590 = vmul.f32 %v3236, %v3589
      %v3591 = vrcp.pop %v3436
      %v3592 = vmul.f32 %v3237, %v3591
      %v3593 = vrcp.pop %v3441
      %v3594 = vmul.f32 %v3238, %v3593
      %v3595 = vrcp.pop %v3446
      %v3596 = vmul.f32 %v3239, %v3595
      %v3597 = vrcp.pop %v3451
      %v3598 = vmul.f32 %v3240, %v3597
      %v3599 = vrcp.pop %v3456
      %v3600 = vmul.f32 %v3241, %v3599
      %v3601 = vrcp.pop %v3461
      %v3602 = vmul.f32 %v3242, %v3601
      %v3603 = vrcp.pop %v3466
      %v3604 = vmul.f32 %v3243, %v3603
      %v3605 = vrcp.pop %v3471
      %v3606 = vmul.f32 %v3244, %v3605
      %v3607 = vrcp.pop %v3476
      %v3608 = vmul.f32 %v3245, %v3607
      %v3609 = vrcp.pop %v3481
      %v3610 = vmul.f32 %v3246, %v3609
      %v3611 = vrcp.pop %v3486
      %v3612 = vmul.f32 %v3247, %v3611
      %v3613 = vrcp.pop %v3491
      %v3614 = vmul.f32 %v3248, %v3613
      %v3615 = vrcp.pop %v3496
      %v3616 = vmul.f32 %v3249, %v3615
      %v3617 = vrcp.pop %v3501
      %v3618 = vmul.f32 %v3250, %v3617
      %v3619 = vrcp.pop %v3506
      %v3620 = vmul.f32 %v3251, %v3619
      %v3621 = vrcp.pop %v3511
      %v3622 = vmul.f32 %v3252, %v3621
      %v3623 = vrcp.pop %v3516
      %v3624 = vmul.f32 %v3253, %v3623
      %v3625 = vrcp.pop %v3521
      %v3626 = vmul.f32 %v3254, %v3625
      %v3627 = vrcp.pop %v3526
      %v3628 = vmul.f32 %v3255, %v3627
      %v3629 = vrcp.pop %v3531
      %v3630 = vmul.f32 %v3256, %v3629
      %v3631 = vrcp.pop %v3536
      %v3632 = vmul.f32 %v3257, %v3631
      %v3633 = vrcp.pop %v3541
      %v3634 = vmul.f32 %v3258, %v3633
      %v3635 = vrcp.pop %v3546
      %v3636 = vmul.f32 %v3259, %v3635
      %v3637 = vrcp.pop %v3551
      %v3638 = vmul.f32 %v3260, %v3637
      %v3639 = vrcp.pop %v3556
      %v3640 = vmul.f32 %v3261, %v3639
      %v3641 = vrcp.pop %v3561
      %v3642 = vmul.f32 %v3262, %v3641
      %v3643 = vrcp.pop %v3566
      %v3644 = vmul.f32 %v3263, %v3643
      %v3645 = vrcp.pop %v3571
      %v3646 = vmul.f32 %v3264, %v3645
      %v3647 = vrcp.pop %v3576
      %v3648 = vmul.f32 %v3265, %v3647
      %v3649 = vrcp.pop %v3581
      %v3650 = vmul.f32 %v3266, %v3649
      %v3651 = vrcp.pop %v3586
      %v3652 = vmul.f32 %v3267, %v3651
      %v3654 = vsel %vm594, %v2891, 0
      %v3657 = vsel %vm594, %v2893, 0
      %v3660 = vsel %vm594, %v2895, 0
      %v3663 = vsel %vm594, %v2897, 0
      %v3666 = vsel %vm594, %v3590, 0
      %v3669 = vsel %vm594, %v3592, 0
      %v3672 = vsel %vm594, %v3594, 0
      %v3675 = vsel %vm594, %v3596, 0
      %v3678 = vsel %vm594, %v3598, 0
      %v3681 = vsel %vm594, %v3600, 0
      %v3684 = vsel %vm594, %v3602, 0
      %v3687 = vsel %vm594, %v3604, 0
      %v3690 = vsel %vm594, %v3606, 0
      %v3693 = vsel %vm594, %v3608, 0
      %v3696 = vsel %vm594, %v3610, 0
      %v3699 = vsel %vm594, %v3612, 0
      %v3702 = vsel %vm594, %v3614, 0
      %v3705 = vsel %vm594, %v3616, 0
      %v3708 = vsel %vm594, %v3618, 0
      %v3711 = vsel %vm594, %v3620, 0
      %v3714 = vsel %vm594, %v3622, 0
      %v3717 = vsel %vm594, %v3624, 0
      %v3720 = vsel %vm594, %v3626, 0
      %v3723 = vsel %vm594, %v3628, 0
      %v3726 = vsel %vm594, %v3630, 0
      %v3729 = vsel %vm594, %v3632, 0
      %v3732 = vsel %vm594, %v3634, 0
      %v3735 = vsel %vm594, %v3636, 0
      %v3738 = vsel %vm594, %v3638, 0
      %v3741 = vsel %vm594, %v3640, 0
      %v3744 = vsel %vm594, %v3642, 0
      %v3747 = vsel %vm594, %v3644, 0
      %v3750 = vsel %vm594, %v3646, 0
      %v3753 = vsel %vm594, %v3648, 0
      %v3756 = vsel %vm594, %v3650, 0
      %v3759 = vsel %vm594, %v3652, 0
      %3761 = vmatprep.subr.mxu0 0.0
      %3762 = vmatpush1.xpose.msra.mxu0 %v3666
      %3763 = vmatprep.subr.mxu0 0.0
      %3764 = vmatpush1.xpose.msra.mxu0 %v3669
      %3765 = vmatprep.subr.mxu0 0.0
      %3766 = vmatpush1.xpose.msra.mxu0 %v3672
      %3767 = vmatprep.subr.mxu0 0.0
      %3768 = vmatpush1.xpose.msra.mxu0 %v3675
      %3769 = vmatprep.subr.mxu0 0.0
      %3770 = vmatpush1.xpose.msra.mxu0 %v3678
      %3771 = vmatprep.subr.mxu0 0.0
      %3772 = vmatpush1.xpose.msra.mxu0 %v3681
      %3773 = vmatprep.subr.mxu0 0.0
      %3774 = vmatpush1.xpose.msra.mxu0 %v3684
      %3775 = vmatprep.subr.mxu0 0.0
      %3776 = vmatpush1.xpose.msra.mxu0 %v3687
      %3777 = vmatprep.subr.mxu0 0.0
      %3778 = vmatpush1.xpose.msra.mxu0 %v3690
      %3779 = vmatprep.subr.mxu0 0.0
      %3780 = vmatpush1.xpose.msra.mxu0 %v3693
      %3781 = vmatprep.subr.mxu0 0.0
      %3782 = vmatpush1.xpose.msra.mxu0 %v3696
      %3783 = vmatprep.subr.mxu0 0.0
      %3784 = vmatpush1.xpose.msra.mxu0 %v3699
      %3785 = vmatprep.subr.mxu0 0.0
      %3786 = vmatpush1.xpose.msra.mxu0 %v3702
      %3787 = vmatprep.subr.mxu0 0.0
      %3788 = vmatpush1.xpose.msra.mxu0 %v3705
      %3789 = vmatprep.subr.mxu0 0.0
      %3790 = vmatpush1.xpose.msra.mxu0 %v3708
      %3791 = vmatprep.subr.mxu0 0.0
      %3792 = vmatpush1.xpose.msra.mxu0 %v3711
      %3793 = vmatprep.subr.mxu0 0.0
      %3794 = vmatpush1.xpose.msra.mxu0 %v3714
      %3795 = vmatprep.subr.mxu0 0.0
      %3796 = vmatpush1.xpose.msra.mxu0 %v3717
      %3797 = vmatprep.subr.mxu0 0.0
      %3798 = vmatpush1.xpose.msra.mxu0 %v3720
      %3799 = vmatprep.subr.mxu0 0.0
      %3800 = vmatpush1.xpose.msra.mxu0 %v3723
      %3801 = vmatprep.subr.mxu0 0.0
      %3802 = vmatpush1.xpose.msra.mxu0 %v3726
      %3803 = vmatprep.subr.mxu0 0.0
      %3804 = vmatpush1.xpose.msra.mxu0 %v3729
      %3805 = vmatprep.subr.mxu0 0.0
      %3806 = vmatpush1.xpose.msra.mxu0 %v3732
      %3807 = vmatprep.subr.mxu0 0.0
      %3808 = vmatpush1.xpose.msra.mxu0 %v3735
      %3809 = vmatprep.subr.mxu0 0.0
      %3810 = vmatpush1.xpose.msra.mxu0 %v3738
      %3811 = vmatprep.subr.mxu0 0.0
      %3812 = vmatpush1.xpose.msra.mxu0 %v3741
      %3813 = vmatprep.subr.mxu0 0.0
      %3814 = vmatpush1.xpose.msra.mxu0 %v3744
      %3815 = vmatprep.subr.mxu0 0.0
      %3816 = vmatpush1.xpose.msra.mxu0 %v3747
      %3817 = vmatprep.subr.mxu0 0.0
      %3818 = vmatpush1.xpose.msra.mxu0 %v3750
      %3819 = vmatprep.subr.mxu0 0.0
      %3820 = vmatpush1.xpose.msra.mxu0 %v3753
      %3821 = vmatprep.subr.mxu0 0.0
      %3822 = vmatpush1.xpose.msra.mxu0 %v3756
      %3823 = vmatprep.subr.mxu0 0.0
      %3824 = vmatpush1.xpose.msra.mxu0 %v3759
      %3825 = vmatprep.mubr.f32.mxu0 0.0
      %3826 = vmatmul.mubr.f32.gmra.mrb[0].mxu0 %v3654
      %v3827 = vpop.f32.mrb[0].mxu0
      %v3828 = vadd.f32 0.0, %v3827
      %v3829 = vpop.f32.mrb[0].mxu0
      %v3830 = vadd.f32 0.0, %v3829
      %3831 = vmatprep.mubr.f32.mxu0 0.0
      %3832 = vmatmul.mubr.f32.gmra.mrb[0].mxu0 %v3657
      %v3833 = vpop.f32.mrb[0].mxu0
      %v3834 = vadd.f32 0.0, %v3833
      %v3835 = vpop.f32.mrb[0].mxu0
      %v3836 = vadd.f32 0.0, %v3835
      %3837 = vmatprep.mubr.f32.mxu0 0.0
      %3838 = vmatmul.mubr.f32.gmra.mrb[0].mxu0 %v3660
      %v3839 = vpop.f32.mrb[0].mxu0
      %v3840 = vadd.f32 0.0, %v3839
      %v3841 = vpop.f32.mrb[0].mxu0
      %v3842 = vadd.f32 0.0, %v3841
      %3843 = vmatprep.mubr.f32.mxu0 0.0
      %3844 = vmatmul.mubr.f32.gmra.mrb[0].mxu0 %v3663
      %v3845 = vpop.f32.mrb[0].mxu0
      %v3846 = vadd.f32 0.0, %v3845
      %v3847 = vpop.f32.mrb[0].mxu0
      %v3848 = vadd.f32 0.0, %v3847
      %3849 = vdwg.mxu0
      %3850 = vst [vmem:[%s163] sm:$0xff] %v3828
      %3851 = vst [vmem:[%s163 + $0x8] sm:$0xff] %v3830
      %3852 = vst [vmem:[%s163 + $0x10] sm:$0xff] %v3834
      %3853 = vst [vmem:[%s163 + $0x18] sm:$0xff] %v3836
      %3854 = vst [vmem:[%s163 + $0x20] sm:$0xff] %v3840
      %3855 = vst [vmem:[%s163 + $0x28] sm:$0xff] %v3842
      %3856 = vst [vmem:[%s163 + $0x30] sm:$0xff] %v3846
      %3857 = vst [vmem:[%s163 + $0x38] sm:$0xff] %v3848
      %p3858 = scmp.lt.s32.totalorder %s13, 1
      %s3859 = scalar_select %p3858, %s13, 1
      %s3860 = smul.addr %s3859, 8
      %s3861 = smul.addr %s3860, 8
      %s3862 = scalar_lea.vmem %s2, %s3861
      // Predicated region
      $region29: #{_lambda_.1} parent=27 // pred_check
        %p3863 = pneg %p83
      $region30: #{_lambda_.1} parent=27 // pred_check_branch
        %3865 = sbr.rel (%p3863) target = $region32
      $region31: #{_lambda_.1} parent=27 // pred_region
        _
      $region32: #{_lambda_.1} parent=27 // pred_fallthru
        _
    $region28: #{_lambda_.1} parent=5 // pred_fallthru
      _
    %p3866 = scmp.le.s32.totalorder 2, %s8
    // Predicated region
    $region33: #{_lambda_.1} parent=5 // pred_check
      %p3867 = pneg %p3866
    $region34: #{_lambda_.1} parent=5 // pred_check_branch
      %3869 = sbr.rel (%p3867) target = $region36
    $region35: #{_lambda_.1} parent=5 // pred_region
      %s3870 = ssub.s32 %s8, 2
      // Predicated region
      $region37: #{_lambda_.1} parent=35 // pred_check
        %p3871 = pneg %p89
      $region38: #{_lambda_.1} parent=35 // pred_check_branch
        %3873 = sbr.rel (%p3871) target = $region40
      $region39: #{_lambda_.1} parent=35 // pred_region
        %p3874 = scmp.lt.s32.totalorder %s14, 1
        %s3875 = scalar_select %p3874, %s14, 1
        %s3876 = smul.addr %s3875, 8
        %s3877 = smul.addr %s3876, 8
        %s3878 = scalar_lea.vmem %s2, %s3877
      $region40: #{_lambda_.1} parent=35 // pred_fallthru
        _
    $region36: #{_lambda_.1} parent=5 // pred_fallthru
      _
  $region6: #{_lambda_.1} parent=0 // loop_footer
    %s12 = sadd.s32 1, %s8
  $region7: #{_lambda_.1} parent=0 // loop_footer_branch
    %7 = sbr.rel target = $region3
  $region8: #{_lambda_.1} parent=0 // loop_exit
    _

</llo_original>
